<compile_context>
chip_gen: v5e
topology: v5e:2x2
jax: 0.10.0
libtpu: 0.0.40
codegen_flags: <defaults>
</compile_context>

<pallas_src>
import functools

import jax
import jax.numpy as jnp
from jax.experimental import pallas as pl
from jax.experimental.pallas import tpu as pltpu

_VMEM = pl.BlockSpec(memory_space=pltpu.MemorySpace.VMEM)
_BN_EPS = 1e-5


# --------------------------------- in-kernel helpers ---------------------------------
def _dense_relu(x, w_ref, b_ref):
    """relu(x @ W + b); MXU operands in bf16, f32 accumulation."""
    y = jnp.dot(x.astype(jnp.bfloat16), w_ref[...],
                preferred_element_type=jnp.float32) + b_ref[...]
    return jnp.maximum(y, 0.0)


def _time_masks(n_rows, length):
    """(n_rows, 1) f32 masks over the flattened (B*L) row axis: t != 0 / t != L-1."""
    t = jax.lax.broadcasted_iota(jnp.int32, (n_rows, 1), 0) % length
    not_first = (t != 0).astype(jnp.float32)             # rows where x[t-1] is valid
    not_last = (t != (length - 1)).astype(jnp.float32)   # rows where x[t+1] is valid
    return not_first, not_last


def _tconv_shift_input(x, w_ref, not_first, not_last):
    """ConvTranspose1d(k=3, s=1, p=1) on time-major (B*L, Cin) activations.

    w_ref: (3, Cin, Cout) bf16, w_ref[k] == W_pt[:, :, k].
      out[t] = x[t+1] @ W0 + x[t] @ W1 + x[t-1] @ W2    (zero outside [0, L))
    Shifts are XLU rolls on the flattened row axis; rows that would read across a batch
    boundary are exactly the t==0 / t==L-1 rows and are masked to zero (f32 rolls/masks on
    purpose: safe on v5e's f32-only VPU and avoids packed-bf16 odd-sublane rolls).
    """
    n = x.shape[0]
    x_prev = pltpu.roll(x, 1, 0) * not_first        # x[t-1]
    x_next = pltpu.roll(x, n - 1, 0) * not_last     # x[t+1]  (roll by -1 == n-1)

    def mm(a, k):
        return jnp.dot(a.astype(jnp.bfloat16), w_ref[k],
                       preferred_element_type=jnp.float32)

    return mm(x_next, 0) + mm(x, 1) + mm(x_prev, 2)


def _tconv_shift_output(x, w_ref, b_ref, not_first, not_last):
    """Same transposed conv, but rolls the per-tap partial products instead of the input
    (cheaper when Cout < Cin, i.e. for the 128-padded deconv3 with Cin=256)."""
    n = x.shape[0]
    xb = x.astype(jnp.bfloat16)

    def mm(k):
        return jnp.dot(xb, w_ref[k], preferred_element_type=jnp.float32)

    s0, s1, s2 = mm(0), mm(1), mm(2)
    # out[t] = s0[t+1] + s1[t] + s2[t-1]
    y = s1 + pltpu.roll(s0, n - 1, 0) * not_last + pltpu.roll(s2, 1, 0) * not_first
    return y + b_ref[...]


def _bn_relu(y, g_ref, be_ref):
    """Training-mode BatchNorm1d (biased batch variance) + ReLU.

    Two-pass (centered) variance to avoid E[y^2]-mu^2 cancellation. Per-channel stats over
    all (batch, time) rows of the (B*L, C) activation; shift folds to just beta.
    """
    mu = jnp.mean(y, axis=0, keepdims=True)
    yc = y - mu
    var = jnp.mean(yc * yc, axis=0, keepdims=True)
    scale = g_ref[...] * jax.lax.rsqrt(var + _BN_EPS)
    return jnp.maximum(yc * scale + be_ref[...], 0.0)


# ------------------------------------ fused kernel ------------------------------------
def _decoder_kernel(x_ref,
                    w1_ref, b1_ref, w2_ref, b2_ref, w3_ref, b3_ref,
                    wd1_ref, g1_ref, be1_ref,
                    wd2_ref, g2_ref, be2_ref,
                    wd3_ref, bd3_ref,
                    o_ref, *, batch, length):
    # ---- linear stack: rows are (b, channel), lanes are features ----
    h = _dense_relu(x_ref[...], w1_ref, b1_ref)
    h = _dense_relu(h, w2_ref, b2_ref)
    h = _dense_relu(h, w3_ref, b3_ref)                 # (B*64, L): rows (b, c), lanes t

    # ---- NCL -> NLC: one value-level batched transpose, kept in vregs (no scratch) ----
    xc = jnp.swapaxes(h.reshape(batch, 64, length), 1, 2)
    xc = xc.reshape(batch * length, 64)                # (B*L, 64): rows (b, t), lanes c

    not_first, not_last = _time_masks(xc.shape[0], length)

    # bd1/bd2 bias adds omitted: they cancel exactly under training-mode BN mean
    # subtraction (reinstate them if eval-mode / running-stats BN is ever used).
    y = _bn_relu(_tconv_shift_input(xc, wd1_ref, not_first, not_last), g1_ref, be1_ref)
    y = _bn_relu(_tconv_shift_input(y, wd2_ref, not_first, not_last), g2_ref, be2_ref)
    y = jnp.tanh(_tconv_shift_output(y, wd3_ref, bd3_ref, not_first, not_last))
    o_ref[...] = y.astype(o_ref.dtype)                 # (B*L, 128) lane-dense bf16 store


# ----------------------------------------- wrapper -----------------------------------------
def decoder_forward(x, p):
    """x: (B, 64, latent) float32  ->  (B, channels, 64) float32 (PyTorch NCL)."""
    B, d1, latent = x.shape
    assert d1 == 64, "Decoder requires dim1 == 64 (deconv1.in_channels)"
    L = p["w3"].shape[1]                      # 64: linear_3 out == conv length
    channels = p["wd3"].shape[-1]
    cout_pad = 128                            # lane-dense padded output channels
    n = B * L

    bf = jnp.bfloat16
    # MXU operands pre-cast to bf16 (accumulation stays f32); biases / BN params stay f32.
    # linear1 width padded 392 -> 400 (multiple of the bf16 sublane tile, 16) so the K dim
    # of the dominant 392x784 matmul has no remainder tile; padded cols/rows are zero.
    h1 = p["w1"].shape[1]
    h1p = 16 * ((h1 + 15) // 16)
    w1p = jnp.zeros((latent, h1p), bf).at[:, :h1].set(p["w1"].astype(bf))
    b1p = jnp.zeros((1, h1p), jnp.float32).at[:, :h1].set(p["b1"])
    w2p = jnp.zeros((h1p, p["w2"].shape[1]), bf).at[:h1, :].set(p["w2"].astype(bf))

    wd3p = jnp.zeros((3, p["wd3"].shape[1], cout_pad), bf)
    wd3p = wd3p.at[:, :, :channels].set(p["wd3"].astype(bf))
    bd3p = jnp.zeros((1, cout_pad), jnp.float32).at[:, :channels].set(p["bd3"])

    # --- cost / VMEM estimates -------------------------------------------------------
    flops = 2 * n * (latent * h1p + h1p * 784 + 784 * L
                     + 3 * (64 * 128 + 128 * 256 + 256 * cout_pad))
    bf16_weight_elems = (w1p.size + w2p.size + p["w3"].size
                         + p["wd1"].size + p["wd2"].size + wd3p.size)
    f32_small_elems = (b1p.size + p["b2"].size + p["b3"].size + p["g1"].size
                       + p["be1"].size + p["g2"].size + p["be2"].size + bd3p.size)
    bytes_accessed = int(4 * x.size + 2 * n * cout_pad
                         + 2 * bf16_weight_elems + 4 * f32_small_elems)
    # Live f32 working set per (b, t) row across the fused stack (rough upper bound).
    act_bytes = 4 * n * (h1p + 784 + 3 * 64 + 128 + 2 * 256 + cout_pad)
    # Scoped VMEM computed from footprint; floor for headroom, cap below v7x's 64 MiB
    # physical VMEM (if the computed value ever hits the cap, switch to the batch-grid
    # + two-pass-BN design noted in the module TODO).
    vmem_limit = int(min(max(2 * (2 * bf16_weight_elems + 4 * (f32_small_elems + x.size))
                             + 2 * act_bytes,
                             16 * 1024 * 1024),
                         56 * 1024 * 1024))

    kernel = functools.partial(_decoder_kernel, batch=B, length=L)
    out = pl.pallas_call(
        kernel,
        out_shape=jax.ShapeDtypeStruct((n, cout_pad), jnp.bfloat16),
        in_specs=[_VMEM] * 15,
        out_specs=_VMEM,
        compiler_params=pltpu.CompilerParams(vmem_limit_bytes=vmem_limit),
        cost_estimate=pl.CostEstimate(flops=flops,
                                      transcendentals=n * cout_pad,
                                      bytes_accessed=bytes_accessed),
    )(
        x.reshape(B * d1, latent),
        w1p, b1p, w2p, p["b2"], p["w3"].astype(bf), p["b3"],
        p["wd1"].astype(bf), p["g1"], p["be1"],
        p["wd2"].astype(bf), p["g2"], p["be2"],
        wd3p, bd3p,
    )
    # Lane-dense bf16 (B*L, 128) slab -> PyTorch NCL (B, channels, L) f32: layout glue only.
    out = out.reshape(B, L, cout_pad)[:, :, :channels]
    return jnp.swapaxes(out, 1, 2).astype(jnp.float32)


# ------------------------------------ deterministic params ------------------------------------
def init_params(key, latent, channels):
    ks = jax.random.split(key, 6)

    def lin(k, fan_in, fan_out):
        kw, kb = jax.random.split(k)
        w = jax.random.normal(kw, (fan_in, fan_out), jnp.float32) / (fan_in ** 0.5)
        b = 0.01 * jax.random.normal(kb, (1, fan_out), jnp.float32)
        return w, b

    def tconv(k, cin, cout):
        kw, kb = jax.random.split(k)
        # tap-major layout (3, Cin, Cout); wd[k, ci, co] == W_pt[ci, co, k]
        w = jax.random.normal(kw, (3, cin, cout), jnp.float32) / ((3 * cin) ** 0.5)
        b = 0.01 * jax.random.normal(kb, (1, cout), jnp.float32)
        return w, b

    w1, b1 = lin(ks[0], latent, 392)
    w2, b2 = lin(ks[1], 392, 784)
    w3, b3 = lin(ks[2], 784, 64)
    wd1, bd1 = tconv(ks[3], 64, 128)
    wd2, bd2 = tconv(ks[4], 128, 256)
    wd3, bd3 = tconv(ks[5], 256, channels)
    return dict(
        w1=w1, b1=b1, w2=w2, b2=b2, w3=w3, b3=b3,
        wd1=wd1, bd1=bd1, g1=jnp.ones((1, 128), jnp.float32), be1=jnp.zeros((1, 128), jnp.float32),
        wd2=wd2, bd2=bd2, g2=jnp.ones((1, 256), jnp.float32), be2=jnp.zeros((1, 256), jnp.float32),
        wd3=wd3, bd3=bd3,
    )


# ------------------------------------ pure-JAX reference ------------------------------------
def reference_forward(x, p):
    h = jax.nn.relu(x @ p["w1"] + p["b1"][0])
    h = jax.nn.relu(h @ p["w2"] + p["b2"][0])
    h = jax.nn.relu(h @ p["w3"] + p["b3"][0])          # (B, 64, 64) == NCL

    def tconv(x_ncl, wt, b):
        xl = jnp.swapaxes(x_ncl, 1, 2)                 # (N, L, Ci)
        xp = jnp.pad(xl, ((0, 0), (1, 1), (0, 0)))
        y = xp[:, 2:, :] @ wt[0] + xp[:, 1:-1, :] @ wt[1] + xp[:, :-2, :] @ wt[2]
        return jnp.swapaxes(y + b[0], 1, 2)            # (N, Co, L)

    def bn(x_ncl, g, be, eps=_BN_EPS):
        mu = jnp.mean(x_ncl, axis=(0, 2), keepdims=True)
        var = jnp.mean((x_ncl - mu) ** 2, axis=(0, 2), keepdims=True)
        return (x_ncl - mu) * jax.lax.rsqrt(var + eps) * g[0][None, :, None] + be[0][None, :, None]

    h = jax.nn.relu(bn(tconv(h, p["wd1"], p["bd1"]), p["g1"], p["be1"]))
    h = jax.nn.relu(bn(tconv(h, p["wd2"], p["bd2"]), p["g2"], p["be2"]))
    return jnp.tanh(tconv(h, p["wd3"], p["bd3"]))


if __name__ == "__main__":
    B, LATENT, CHANNELS, D1 = 2, 32, 4, 64   # D1=64 forced by deconv1.in_channels
    key = jax.random.PRNGKey(0)
    kx, kp = jax.random.split(key)
    x = jax.random.normal(kx, (B, D1, LATENT), jnp.float32)
    params = init_params(kp, LATENT, CHANNELS)

    fwd = jax.jit(decoder_forward)
    y = jax.block_until_ready(fwd(x, params))
    assert y.shape == (B, CHANNELS, 64) and y.dtype == jnp.float32

    y_ref = reference_forward(x, params)
    max_err = float(jnp.max(jnp.abs(y - y_ref)))
    assert max_err < 5e-2, f"mismatch vs reference: {max_err}"

    print("KERNEL_OK")
</pallas_src>

<mosaic_0001>
module attributes {stable_mosaic.version = 11 : i64} {
  func.func @_decoder_kernel(%arg0: memref<128x32xf32, #tpu.memory_space<vmem>>, %arg1: memref<32x400xbf16, #tpu.memory_space<vmem>>, %arg2: memref<1x400xf32, #tpu.memory_space<vmem>>, %arg3: memref<400x784xbf16, #tpu.memory_space<vmem>>, %arg4: memref<1x784xf32, #tpu.memory_space<vmem>>, %arg5: memref<784x64xbf16, #tpu.memory_space<vmem>>, %arg6: memref<1x64xf32, #tpu.memory_space<vmem>>, %arg7: memref<3x64x128xbf16, #tpu.memory_space<vmem>>, %arg8: memref<1x128xf32, #tpu.memory_space<vmem>>, %arg9: memref<1x128xf32, #tpu.memory_space<vmem>>, %arg10: memref<3x128x256xbf16, #tpu.memory_space<vmem>>, %arg11: memref<1x256xf32, #tpu.memory_space<vmem>>, %arg12: memref<1x256xf32, #tpu.memory_space<vmem>>, %arg13: memref<3x256x128xbf16, #tpu.memory_space<vmem>>, %arg14: memref<1x128xf32, #tpu.memory_space<vmem>>, %arg15: memref<128x128xbf16, #tpu.memory_space<vmem>>) attributes {dimension_semantics = [], scalar_prefetch = 0 : i64, scratch_operands = 0 : i64, tpu.core_type = #tpu.core_type<tc>} {
    %c0 = arith.constant 0 : index
    %c0_0 = arith.constant 0 : index
    %0 = vector.load %arg0[%c0, %c0_0] : memref<128x32xf32, #tpu.memory_space<vmem>>, vector<128x32xf32>
    %1 = arith.truncf %0 : vector<128x32xf32> to vector<128x32xbf16>
    %c0_1 = arith.constant 0 : index
    %c0_2 = arith.constant 0 : index
    %2 = vector.load %arg1[%c0_1, %c0_2] : memref<32x400xbf16, #tpu.memory_space<vmem>>, vector<32x400xbf16>
    %cst = arith.constant dense<0.000000e+00> : vector<128x400xf32>
    %3 = tpu.matmul %1, %2, %cst {dimension_numbers = #tpu.dot_dimension_numbers<[1], [0], [0], [1], [0, 0, 1, 1], [], []>} : vector<128x32xbf16>, vector<32x400xbf16>, vector<128x400xf32> -> vector<128x400xf32>
    %c0_3 = arith.constant 0 : index
    %c0_4 = arith.constant 0 : index
    %4 = vector.load %arg2[%c0_3, %c0_4] : memref<1x400xf32, #tpu.memory_space<vmem>>, vector<1x400xf32>
    %5 = vector.broadcast %4 : vector<1x400xf32> to vector<128x400xf32>
    %6 = arith.addf %3, %5 : vector<128x400xf32>
    %cst_5 = arith.constant 0.000000e+00 : f32
    %7 = vector.broadcast %cst_5 : f32 to vector<128x400xf32>
    %8 = arith.maximumf %6, %7 : vector<128x400xf32>
    %9 = arith.truncf %8 : vector<128x400xf32> to vector<128x400xbf16>
    %c0_6 = arith.constant 0 : index
    %c0_7 = arith.constant 0 : index
    %10 = vector.load %arg3[%c0_6, %c0_7] : memref<400x784xbf16, #tpu.memory_space<vmem>>, vector<400x784xbf16>
    %cst_8 = arith.constant dense<0.000000e+00> : vector<128x784xf32>
    %11 = tpu.matmul %9, %10, %cst_8 {dimension_numbers = #tpu.dot_dimension_numbers<[1], [0], [0], [1], [0, 0, 1, 1], [], []>} : vector<128x400xbf16>, vector<400x784xbf16>, vector<128x784xf32> -> vector<128x784xf32>
    %c0_9 = arith.constant 0 : index
    %c0_10 = arith.constant 0 : index
    %12 = vector.load %arg4[%c0_9, %c0_10] : memref<1x784xf32, #tpu.memory_space<vmem>>, vector<1x784xf32>
    %13 = vector.broadcast %12 : vector<1x784xf32> to vector<128x784xf32>
    %14 = arith.addf %11, %13 : vector<128x784xf32>
    %cst_11 = arith.constant 0.000000e+00 : f32
    %15 = vector.broadcast %cst_11 : f32 to vector<128x784xf32>
    %16 = arith.maximumf %14, %15 : vector<128x784xf32>
    %17 = arith.truncf %16 : vector<128x784xf32> to vector<128x784xbf16>
    %c0_12 = arith.constant 0 : index
    %c0_13 = arith.constant 0 : index
    %18 = vector.load %arg5[%c0_12, %c0_13] : memref<784x64xbf16, #tpu.memory_space<vmem>>, vector<784x64xbf16>
    %cst_14 = arith.constant dense<0.000000e+00> : vector<128x64xf32>
    %19 = tpu.matmul %17, %18, %cst_14 {dimension_numbers = #tpu.dot_dimension_numbers<[1], [0], [0], [1], [0, 0, 1, 1], [], []>} : vector<128x784xbf16>, vector<784x64xbf16>, vector<128x64xf32> -> vector<128x64xf32>
    %c0_15 = arith.constant 0 : index
    %c0_16 = arith.constant 0 : index
    %20 = vector.load %arg6[%c0_15, %c0_16] : memref<1x64xf32, #tpu.memory_space<vmem>>, vector<1x64xf32>
    %21 = vector.broadcast %20 : vector<1x64xf32> to vector<128x64xf32>
    %22 = arith.addf %19, %21 : vector<128x64xf32>
    %cst_17 = arith.constant 0.000000e+00 : f32
    %23 = vector.broadcast %cst_17 : f32 to vector<128x64xf32>
    %24 = arith.maximumf %22, %23 : vector<128x64xf32>
    %25 = vector.shape_cast %24 : vector<128x64xf32> to vector<2x64x64xf32>
    %26 = tpu.transpose %25, [0, 2, 1] : vector<2x64x64xf32> -> vector<2x64x64xf32>
    %27 = vector.shape_cast %26 : vector<2x64x64xf32> to vector<128x64xf32>
    %28 = tpu.iota {dimensions = array<i32: 0>} : vector<128x1xi32>
    %c64_i32 = arith.constant 64 : i32
    %c0_i32 = arith.constant 0 : i32
    %29 = arith.cmpi eq, %c64_i32, %c0_i32 : i32
    %c1_i32 = arith.constant 1 : i32
    %30 = arith.select %29, %c1_i32, %c64_i32 : i32
    %31 = vector.broadcast %30 : i32 to vector<128x1xi32>
    %32 = arith.remsi %28, %31 : vector<128x1xi32>
    %c0_i32_18 = arith.constant 0 : i32
    %33 = vector.broadcast %c0_i32_18 : i32 to vector<128x1xi32>
    %34 = arith.cmpi ne, %32, %33 : vector<128x1xi32>
    %c0_i32_19 = arith.constant 0 : i32
    %35 = vector.broadcast %c0_i32_19 : i32 to vector<128x1xi32>
    %36 = arith.cmpi slt, %32, %35 : vector<128x1xi32>
    %c0_i32_20 = arith.constant 0 : i32
    %37 = arith.cmpi slt, %30, %c0_i32_20 : i32
    %38 = vector.broadcast %37 : i1 to vector<128x1xi1>
    %39 = vector.broadcast %38 : vector<128x1xi1> to vector<128x1xi1>
    %40 = arith.xori %36, %39 : vector<128x1xi1>
    %41 = arith.andi %40, %34 : vector<128x1xi1>
    %42 = vector.broadcast %30 : i32 to vector<128x1xi32>
    %43 = arith.addi %32, %42 : vector<128x1xi32>
    %44 = arith.select %41, %43, %32 : vector<128x1xi1>, vector<128x1xi32>
    %c0_i32_21 = arith.constant 0 : i32
    %45 = vector.broadcast %c0_i32_21 : i32 to vector<128x1xi32>
    %46 = arith.cmpi ne, %44, %45 : vector<128x1xi32>
    %47 = arith.extui %46 : vector<128x1xi1> to vector<128x1xi32>
    %48 = arith.sitofp %47 : vector<128x1xi32> to vector<128x1xf32>
    %c63_i32 = arith.constant 63 : i32
    %49 = vector.broadcast %c63_i32 : i32 to vector<128x1xi32>
    %50 = arith.cmpi ne, %44, %49 : vector<128x1xi32>
    %51 = arith.extui %50 : vector<128x1xi1> to vector<128x1xi32>
    %52 = arith.sitofp %51 : vector<128x1xi32> to vector<128x1xf32>
    %c1_i32_22 = arith.constant 1 : i32
    %53 = tpu.dynamic_rotate %27 by %c1_i32_22 dim 0 : vector<128x64xf32>, i32 -> vector<128x64xf32>
    %54 = vector.broadcast %48 : vector<128x1xf32> to vector<128x64xf32>
    %55 = arith.mulf %53, %54 : vector<128x64xf32>
    %c127_i32 = arith.constant 127 : i32
    %56 = tpu.dynamic_rotate %27 by %c127_i32 dim 0 : vector<128x64xf32>, i32 -> vector<128x64xf32>
    %57 = vector.broadcast %52 : vector<128x1xf32> to vector<128x64xf32>
    %58 = arith.mulf %56, %57 : vector<128x64xf32>
    %59 = arith.truncf %58 : vector<128x64xf32> to vector<128x64xbf16>
    %c0_23 = arith.constant 0 : index
    %c0_24 = arith.constant 0 : index
    %c0_25 = arith.constant 0 : index
    %60 = vector.load %arg7[%c0_23, %c0_24, %c0_25] : memref<3x64x128xbf16, #tpu.memory_space<vmem>>, vector<1x64x128xbf16>
    %61 = vector.shape_cast %60 : vector<1x64x128xbf16> to vector<64x128xbf16>
    %cst_26 = arith.constant dense<0.000000e+00> : vector<128x128xf32>
    %62 = tpu.matmul %59, %61, %cst_26 {dimension_numbers = #tpu.dot_dimension_numbers<[1], [0], [0], [1], [0, 0, 1, 1], [], []>} : vector<128x64xbf16>, vector<64x128xbf16>, vector<128x128xf32> -> vector<128x128xf32>
    %63 = arith.truncf %27 : vector<128x64xf32> to vector<128x64xbf16>
    %c1 = arith.constant 1 : index
    %c0_27 = arith.constant 0 : index
    %c0_28 = arith.constant 0 : index
    %64 = vector.load %arg7[%c1, %c0_27, %c0_28] : memref<3x64x128xbf16, #tpu.memory_space<vmem>>, vector<1x64x128xbf16>
    %65 = vector.shape_cast %64 : vector<1x64x128xbf16> to vector<64x128xbf16>
    %cst_29 = arith.constant dense<0.000000e+00> : vector<128x128xf32>
    %66 = tpu.matmul %63, %65, %cst_29 {dimension_numbers = #tpu.dot_dimension_numbers<[1], [0], [0], [1], [0, 0, 1, 1], [], []>} : vector<128x64xbf16>, vector<64x128xbf16>, vector<128x128xf32> -> vector<128x128xf32>
    %67 = arith.addf %62, %66 : vector<128x128xf32>
    %68 = arith.truncf %55 : vector<128x64xf32> to vector<128x64xbf16>
    %c2 = arith.constant 2 : index
    %c0_30 = arith.constant 0 : index
    %c0_31 = arith.constant 0 : index
    %69 = vector.load %arg7[%c2, %c0_30, %c0_31] : memref<3x64x128xbf16, #tpu.memory_space<vmem>>, vector<1x64x128xbf16>
    %70 = vector.shape_cast %69 : vector<1x64x128xbf16> to vector<64x128xbf16>
    %cst_32 = arith.constant dense<0.000000e+00> : vector<128x128xf32>
    %71 = tpu.matmul %68, %70, %cst_32 {dimension_numbers = #tpu.dot_dimension_numbers<[1], [0], [0], [1], [0, 0, 1, 1], [], []>} : vector<128x64xbf16>, vector<64x128xbf16>, vector<128x128xf32> -> vector<128x128xf32>
    %72 = arith.addf %67, %71 : vector<128x128xf32>
    %cst_33 = arith.constant dense<0.000000e+00> : vector<128xf32>
    %73 = vector.multi_reduction <add>, %72, %cst_33 [0] : vector<128x128xf32> to vector<128xf32>
    %74 = vector.shape_cast %73 : vector<128xf32> to vector<1x128xf32>
    %cst_34 = arith.constant 1.280000e+02 : f32
    %75 = vector.broadcast %cst_34 : f32 to vector<1x128xf32>
    %76 = arith.divf %74, %75 : vector<1x128xf32>
    %77 = vector.broadcast %76 : vector<1x128xf32> to vector<128x128xf32>
    %78 = arith.subf %72, %77 : vector<128x128xf32>
    %79 = arith.mulf %78, %78 : vector<128x128xf32>
    %cst_35 = arith.constant dense<0.000000e+00> : vector<128xf32>
    %80 = vector.multi_reduction <add>, %79, %cst_35 [0] : vector<128x128xf32> to vector<128xf32>
    %81 = vector.shape_cast %80 : vector<128xf32> to vector<1x128xf32>
    %cst_36 = arith.constant 1.280000e+02 : f32
    %82 = vector.broadcast %cst_36 : f32 to vector<1x128xf32>
    %83 = arith.divf %81, %82 : vector<1x128xf32>
    %c0_37 = arith.constant 0 : index
    %c0_38 = arith.constant 0 : index
    %84 = vector.load %arg8[%c0_37, %c0_38] : memref<1x128xf32, #tpu.memory_space<vmem>>, vector<1x128xf32>
    %cst_39 = arith.constant 9.99999974E-6 : f32
    %85 = vector.broadcast %cst_39 : f32 to vector<1x128xf32>
    %86 = arith.addf %83, %85 : vector<1x128xf32>
    %87 = math.rsqrt %86 : vector<1x128xf32>
    %88 = arith.mulf %84, %87 : vector<1x128xf32>
    %89 = vector.broadcast %88 : vector<1x128xf32> to vector<128x128xf32>
    %90 = arith.mulf %78, %89 : vector<128x128xf32>
    %c0_40 = arith.constant 0 : index
    %c0_41 = arith.constant 0 : index
    %91 = vector.load %arg9[%c0_40, %c0_41] : memref<1x128xf32, #tpu.memory_space<vmem>>, vector<1x128xf32>
    %92 = vector.broadcast %91 : vector<1x128xf32> to vector<128x128xf32>
    %93 = arith.addf %90, %92 : vector<128x128xf32>
    %cst_42 = arith.constant 0.000000e+00 : f32
    %94 = vector.broadcast %cst_42 : f32 to vector<128x128xf32>
    %95 = arith.maximumf %93, %94 : vector<128x128xf32>
    %c1_i32_43 = arith.constant 1 : i32
    %96 = tpu.dynamic_rotate %95 by %c1_i32_43 dim 0 : vector<128x128xf32>, i32 -> vector<128x128xf32>
    %97 = vector.broadcast %48 : vector<128x1xf32> to vector<128x128xf32>
    %98 = arith.mulf %96, %97 : vector<128x128xf32>
    %c127_i32_44 = arith.constant 127 : i32
    %99 = tpu.dynamic_rotate %95 by %c127_i32_44 dim 0 : vector<128x128xf32>, i32 -> vector<128x128xf32>
    %100 = vector.broadcast %52 : vector<128x1xf32> to vector<128x128xf32>
    %101 = arith.mulf %99, %100 : vector<128x128xf32>
    %102 = arith.truncf %101 : vector<128x128xf32> to vector<128x128xbf16>
    %c0_45 = arith.constant 0 : index
    %c0_46 = arith.constant 0 : index
    %c0_47 = arith.constant 0 : index
    %103 = vector.load %arg10[%c0_45, %c0_46, %c0_47] : memref<3x128x256xbf16, #tpu.memory_space<vmem>>, vector<1x128x256xbf16>
    %104 = vector.shape_cast %103 : vector<1x128x256xbf16> to vector<128x256xbf16>
    %cst_48 = arith.constant dense<0.000000e+00> : vector<128x256xf32>
    %105 = tpu.matmul %102, %104, %cst_48 {dimension_numbers = #tpu.dot_dimension_numbers<[1], [0], [0], [1], [0, 0, 1, 1], [], []>} : vector<128x128xbf16>, vector<128x256xbf16>, vector<128x256xf32> -> vector<128x256xf32>
    %106 = arith.truncf %95 : vector<128x128xf32> to vector<128x128xbf16>
    %c1_49 = arith.constant 1 : index
    %c0_50 = arith.constant 0 : index
    %c0_51 = arith.constant 0 : index
    %107 = vector.load %arg10[%c1_49, %c0_50, %c0_51] : memref<3x128x256xbf16, #tpu.memory_space<vmem>>, vector<1x128x256xbf16>
    %108 = vector.shape_cast %107 : vector<1x128x256xbf16> to vector<128x256xbf16>
    %cst_52 = arith.constant dense<0.000000e+00> : vector<128x256xf32>
    %109 = tpu.matmul %106, %108, %cst_52 {dimension_numbers = #tpu.dot_dimension_numbers<[1], [0], [0], [1], [0, 0, 1, 1], [], []>} : vector<128x128xbf16>, vector<128x256xbf16>, vector<128x256xf32> -> vector<128x256xf32>
    %110 = arith.addf %105, %109 : vector<128x256xf32>
    %111 = arith.truncf %98 : vector<128x128xf32> to vector<128x128xbf16>
    %c2_53 = arith.constant 2 : index
    %c0_54 = arith.constant 0 : index
    %c0_55 = arith.constant 0 : index
    %112 = vector.load %arg10[%c2_53, %c0_54, %c0_55] : memref<3x128x256xbf16, #tpu.memory_space<vmem>>, vector<1x128x256xbf16>
    %113 = vector.shape_cast %112 : vector<1x128x256xbf16> to vector<128x256xbf16>
    %cst_56 = arith.constant dense<0.000000e+00> : vector<128x256xf32>
    %114 = tpu.matmul %111, %113, %cst_56 {dimension_numbers = #tpu.dot_dimension_numbers<[1], [0], [0], [1], [0, 0, 1, 1], [], []>} : vector<128x128xbf16>, vector<128x256xbf16>, vector<128x256xf32> -> vector<128x256xf32>
    %115 = arith.addf %110, %114 : vector<128x256xf32>
    %cst_57 = arith.constant dense<0.000000e+00> : vector<256xf32>
    %116 = vector.multi_reduction <add>, %115, %cst_57 [0] : vector<128x256xf32> to vector<256xf32>
    %117 = vector.shape_cast %116 : vector<256xf32> to vector<1x256xf32>
    %cst_58 = arith.constant 1.280000e+02 : f32
    %118 = vector.broadcast %cst_58 : f32 to vector<1x256xf32>
    %119 = arith.divf %117, %118 : vector<1x256xf32>
    %120 = vector.broadcast %119 : vector<1x256xf32> to vector<128x256xf32>
    %121 = arith.subf %115, %120 : vector<128x256xf32>
    %122 = arith.mulf %121, %121 : vector<128x256xf32>
    %cst_59 = arith.constant dense<0.000000e+00> : vector<256xf32>
    %123 = vector.multi_reduction <add>, %122, %cst_59 [0] : vector<128x256xf32> to vector<256xf32>
    %124 = vector.shape_cast %123 : vector<256xf32> to vector<1x256xf32>
    %cst_60 = arith.constant 1.280000e+02 : f32
    %125 = vector.broadcast %cst_60 : f32 to vector<1x256xf32>
    %126 = arith.divf %124, %125 : vector<1x256xf32>
    %c0_61 = arith.constant 0 : index
    %c0_62 = arith.constant 0 : index
    %127 = vector.load %arg11[%c0_61, %c0_62] : memref<1x256xf32, #tpu.memory_space<vmem>>, vector<1x256xf32>
    %cst_63 = arith.constant 9.99999974E-6 : f32
    %128 = vector.broadcast %cst_63 : f32 to vector<1x256xf32>
    %129 = arith.addf %126, %128 : vector<1x256xf32>
    %130 = math.rsqrt %129 : vector<1x256xf32>
    %131 = arith.mulf %127, %130 : vector<1x256xf32>
    %132 = vector.broadcast %131 : vector<1x256xf32> to vector<128x256xf32>
    %133 = arith.mulf %121, %132 : vector<128x256xf32>
    %c0_64 = arith.constant 0 : index
    %c0_65 = arith.constant 0 : index
    %134 = vector.load %arg12[%c0_64, %c0_65] : memref<1x256xf32, #tpu.memory_space<vmem>>, vector<1x256xf32>
    %135 = vector.broadcast %134 : vector<1x256xf32> to vector<128x256xf32>
    %136 = arith.addf %133, %135 : vector<128x256xf32>
    %cst_66 = arith.constant 0.000000e+00 : f32
    %137 = vector.broadcast %cst_66 : f32 to vector<128x256xf32>
    %138 = arith.maximumf %136, %137 : vector<128x256xf32>
    %139 = arith.truncf %138 : vector<128x256xf32> to vector<128x256xbf16>
    %c0_67 = arith.constant 0 : index
    %c0_68 = arith.constant 0 : index
    %c0_69 = arith.constant 0 : index
    %140 = vector.load %arg13[%c0_67, %c0_68, %c0_69] : memref<3x256x128xbf16, #tpu.memory_space<vmem>>, vector<1x256x128xbf16>
    %141 = vector.shape_cast %140 : vector<1x256x128xbf16> to vector<256x128xbf16>
    %cst_70 = arith.constant dense<0.000000e+00> : vector<128x128xf32>
    %142 = tpu.matmul %139, %141, %cst_70 {dimension_numbers = #tpu.dot_dimension_numbers<[1], [0], [0], [1], [0, 0, 1, 1], [], []>} : vector<128x256xbf16>, vector<256x128xbf16>, vector<128x128xf32> -> vector<128x128xf32>
    %c1_71 = arith.constant 1 : index
    %c0_72 = arith.constant 0 : index
    %c0_73 = arith.constant 0 : index
    %143 = vector.load %arg13[%c1_71, %c0_72, %c0_73] : memref<3x256x128xbf16, #tpu.memory_space<vmem>>, vector<1x256x128xbf16>
    %144 = vector.shape_cast %143 : vector<1x256x128xbf16> to vector<256x128xbf16>
    %cst_74 = arith.constant dense<0.000000e+00> : vector<128x128xf32>
    %145 = tpu.matmul %139, %144, %cst_74 {dimension_numbers = #tpu.dot_dimension_numbers<[1], [0], [0], [1], [0, 0, 1, 1], [], []>} : vector<128x256xbf16>, vector<256x128xbf16>, vector<128x128xf32> -> vector<128x128xf32>
    %c2_75 = arith.constant 2 : index
    %c0_76 = arith.constant 0 : index
    %c0_77 = arith.constant 0 : index
    %146 = vector.load %arg13[%c2_75, %c0_76, %c0_77] : memref<3x256x128xbf16, #tpu.memory_space<vmem>>, vector<1x256x128xbf16>
    %147 = vector.shape_cast %146 : vector<1x256x128xbf16> to vector<256x128xbf16>
    %cst_78 = arith.constant dense<0.000000e+00> : vector<128x128xf32>
    %148 = tpu.matmul %139, %147, %cst_78 {dimension_numbers = #tpu.dot_dimension_numbers<[1], [0], [0], [1], [0, 0, 1, 1], [], []>} : vector<128x256xbf16>, vector<256x128xbf16>, vector<128x128xf32> -> vector<128x128xf32>
    %c127_i32_79 = arith.constant 127 : i32
    %149 = tpu.dynamic_rotate %142 by %c127_i32_79 dim 0 : vector<128x128xf32>, i32 -> vector<128x128xf32>
    %150 = vector.broadcast %52 : vector<128x1xf32> to vector<128x128xf32>
    %151 = arith.mulf %149, %150 : vector<128x128xf32>
    %152 = arith.addf %145, %151 : vector<128x128xf32>
    %c1_i32_80 = arith.constant 1 : i32
    %153 = tpu.dynamic_rotate %148 by %c1_i32_80 dim 0 : vector<128x128xf32>, i32 -> vector<128x128xf32>
    %154 = vector.broadcast %48 : vector<128x1xf32> to vector<128x128xf32>
    %155 = arith.mulf %153, %154 : vector<128x128xf32>
    %156 = arith.addf %152, %155 : vector<128x128xf32>
    %c0_81 = arith.constant 0 : index
    %c0_82 = arith.constant 0 : index
    %157 = vector.load %arg14[%c0_81, %c0_82] : memref<1x128xf32, #tpu.memory_space<vmem>>, vector<1x128xf32>
    %158 = vector.broadcast %157 : vector<1x128xf32> to vector<128x128xf32>
    %159 = arith.addf %156, %158 : vector<128x128xf32>
    %160 = math.tanh %159 : vector<128x128xf32>
    %161 = arith.truncf %160 : vector<128x128xf32> to vector<128x128xbf16>
    %c0_83 = arith.constant 0 : index
    %c0_84 = arith.constant 0 : index
    %162 = vector.load %arg15[%c0_83, %c0_84] : memref<128x128xbf16, #tpu.memory_space<vmem>>, vector<128x128xbf16>
    tpu.vector_store %arg15[%c0_83, %c0_84], %161 {strides = array<i32>} : memref<128x128xbf16, #tpu.memory_space<vmem>>, vector<128x128xbf16>,
    return
  }
}

</mosaic_0001>

<llo_original>
// kernel: decoder_forward.1
$region0: #{decoder_forward.1}
  #allocation0 [shape = 'u32[]', space=smem, size = 0x4, offset = 0x4, fixed_abs, tag = 'smem constant byte address 0x4 - core index']
  #allocation1 [shape = 'u32[72,128]{1,0:T(1,128)}', space=vmem, size = 0x9000, scoped, tag = 'internal scratch']
  %s0 = inlined_call_operand.vmem [shape: f32[128,32], index: 0, kind: input, shape index: {}]
  %s1 = inlined_call_operand.vmem [shape: bf16[32,400], index: 1, kind: input, shape index: {}]
  %s2 = inlined_call_operand.vmem [shape: f32[1,400], index: 2, kind: input, shape index: {}]
  %s3 = inlined_call_operand.vmem [shape: bf16[400,784], index: 3, kind: input, shape index: {}]
  %s4 = inlined_call_operand.vmem [shape: f32[1,784], index: 4, kind: input, shape index: {}]
  %s5 = inlined_call_operand.vmem [shape: bf16[784,64], index: 5, kind: input, shape index: {}]
  %s6 = inlined_call_operand.vmem [shape: f32[1,64], index: 6, kind: input, shape index: {}]
  %s7 = inlined_call_operand.vmem [shape: bf16[3,64,128], index: 7, kind: input, shape index: {}]
  %s8 = inlined_call_operand.vmem [shape: f32[1,128], index: 8, kind: input, shape index: {}]
  %s9 = inlined_call_operand.vmem [shape: f32[1,128], index: 9, kind: input, shape index: {}]
  %s10 = inlined_call_operand.vmem [shape: bf16[3,128,256], index: 10, kind: input, shape index: {}]
  %s11 = inlined_call_operand.vmem [shape: f32[1,256], index: 11, kind: input, shape index: {}]
  %s12 = inlined_call_operand.vmem [shape: f32[1,256], index: 12, kind: input, shape index: {}]
  %s13 = inlined_call_operand.vmem [shape: bf16[3,256,128], index: 13, kind: input, shape index: {}]
  %s14 = inlined_call_operand.vmem [shape: f32[1,128], index: 14, kind: input, shape index: {}]
  %s15 = inlined_call_operand.vmem [shape: bf16[128,128], index: 15, kind: output, shape index: {}]
  %s16 = sld [smem:[#allocation0]]
  $region70: #{decoder_forward.1} parent=0
    _
  %s18 = ssub.s32 1, %s16
  %s19 = scalar_select 0, %s18, %s16
  // Predicated region
  $region2: #{decoder_forward.1} parent=0 // pred_check
    _
  $region3: #{decoder_forward.1} parent=0 // pred_check_branch
    %21 = sbr.rel (0) target = $region5
  $region4: #{decoder_forward.1} parent=0 // pred_region
    _
  $region5: #{decoder_forward.1} parent=0 // pred_fallthru
    _
  // Predicated region
  $region6: #{decoder_forward.1} parent=0 // pred_check
    _
  $region7: #{decoder_forward.1} parent=0 // pred_check_branch
    %23 = sbr.rel (0) target = $region9
  $region8: #{decoder_forward.1} parent=0 // pred_region
    _
  $region9: #{decoder_forward.1} parent=0 // pred_fallthru
    _
  // Predicated region
  $region10: #{decoder_forward.1} parent=0 // pred_check
    _
  $region11: #{decoder_forward.1} parent=0 // pred_check_branch
    %25 = sbr.rel (0) target = $region13
  $region12: #{decoder_forward.1} parent=0 // pred_region
    _
  $region13: #{decoder_forward.1} parent=0 // pred_fallthru
    _
  // Predicated region
  $region14: #{decoder_forward.1} parent=0 // pred_check
    _
  $region15: #{decoder_forward.1} parent=0 // pred_check_branch
    %27 = sbr.rel (0) target = $region17
  $region16: #{decoder_forward.1} parent=0 // pred_region
    _
  $region17: #{decoder_forward.1} parent=0 // pred_fallthru
    _
  // Predicated region
  $region18: #{decoder_forward.1} parent=0 // pred_check
    _
  $region19: #{decoder_forward.1} parent=0 // pred_check_branch
    %29 = sbr.rel (0) target = $region21
  $region20: #{decoder_forward.1} parent=0 // pred_region
    _
  $region21: #{decoder_forward.1} parent=0 // pred_fallthru
    _
  // Predicated region
  $region22: #{decoder_forward.1} parent=0 // pred_check
    _
  $region23: #{decoder_forward.1} parent=0 // pred_check_branch
    %31 = sbr.rel (0) target = $region25
  $region24: #{decoder_forward.1} parent=0 // pred_region
    _
  $region25: #{decoder_forward.1} parent=0 // pred_fallthru
    _
  // Predicated region
  $region26: #{decoder_forward.1} parent=0 // pred_check
    _
  $region27: #{decoder_forward.1} parent=0 // pred_check_branch
    %33 = sbr.rel (0) target = $region29
  $region28: #{decoder_forward.1} parent=0 // pred_region
    _
  $region29: #{decoder_forward.1} parent=0 // pred_fallthru
    _
  // Predicated region
  $region30: #{decoder_forward.1} parent=0 // pred_check
    _
  $region31: #{decoder_forward.1} parent=0 // pred_check_branch
    %35 = sbr.rel (0) target = $region33
  $region32: #{decoder_forward.1} parent=0 // pred_region
    _
  $region33: #{decoder_forward.1} parent=0 // pred_fallthru
    _
  // Predicated region
  $region34: #{decoder_forward.1} parent=0 // pred_check
    _
  $region35: #{decoder_forward.1} parent=0 // pred_check_branch
    %37 = sbr.rel (0) target = $region37
  $region36: #{decoder_forward.1} parent=0 // pred_region
    _
  $region37: #{decoder_forward.1} parent=0 // pred_fallthru
    _
  // Predicated region
  $region38: #{decoder_forward.1} parent=0 // pred_check
    _
  $region39: #{decoder_forward.1} parent=0 // pred_check_branch
    %39 = sbr.rel (0) target = $region41
  $region40: #{decoder_forward.1} parent=0 // pred_region
    _
  $region41: #{decoder_forward.1} parent=0 // pred_fallthru
    _
  // Predicated region
  $region42: #{decoder_forward.1} parent=0 // pred_check
    _
  $region43: #{decoder_forward.1} parent=0 // pred_check_branch
    %41 = sbr.rel (0) target = $region45
  $region44: #{decoder_forward.1} parent=0 // pred_region
    _
  $region45: #{decoder_forward.1} parent=0 // pred_fallthru
    _
  // Predicated region
  $region46: #{decoder_forward.1} parent=0 // pred_check
    _
  $region47: #{decoder_forward.1} parent=0 // pred_check_branch
    %43 = sbr.rel (0) target = $region49
  $region48: #{decoder_forward.1} parent=0 // pred_region
    _
  $region49: #{decoder_forward.1} parent=0 // pred_fallthru
    _
  // Predicated region
  $region50: #{decoder_forward.1} parent=0 // pred_check
    _
  $region51: #{decoder_forward.1} parent=0 // pred_check_branch
    %45 = sbr.rel (0) target = $region53
  $region52: #{decoder_forward.1} parent=0 // pred_region
    _
  $region53: #{decoder_forward.1} parent=0 // pred_fallthru
    _
  // Predicated region
  $region54: #{decoder_forward.1} parent=0 // pred_check
    _
  $region55: #{decoder_forward.1} parent=0 // pred_check_branch
    %47 = sbr.rel (0) target = $region57
  $region56: #{decoder_forward.1} parent=0 // pred_region
    _
  $region57: #{decoder_forward.1} parent=0 // pred_fallthru
    _
  // Predicated region
  $region58: #{decoder_forward.1} parent=0 // pred_check
    _
  $region59: #{decoder_forward.1} parent=0 // pred_check_branch
    %49 = sbr.rel (0) target = $region61
  $region60: #{decoder_forward.1} parent=0 // pred_region
    _
  $region61: #{decoder_forward.1} parent=0 // pred_fallthru
    _
  %v51 = vld [vmem:[%s0] sm:$0xff]
  %v52 = vld [vmem:[%s0 + $0x8] sm:$0xff]
  %v53 = vld [vmem:[%s0 + $0x10] sm:$0xff]
  %v54 = vld [vmem:[%s0 + $0x18] sm:$0xff]
  %v55 = vld [vmem:[%s0 + $0x20] sm:$0xff]
  %v56 = vld [vmem:[%s0 + $0x28] sm:$0xff]
  %v57 = vld [vmem:[%s0 + $0x30] sm:$0xff]
  %v58 = vld [vmem:[%s0 + $0x38] sm:$0xff]
  %v59 = vld [vmem:[%s0 + $0x40] sm:$0xff]
  %v60 = vld [vmem:[%s0 + $0x48] sm:$0xff]
  %v61 = vld [vmem:[%s0 + $0x50] sm:$0xff]
  %v62 = vld [vmem:[%s0 + $0x58] sm:$0xff]
  %v63 = vld [vmem:[%s0 + $0x60] sm:$0xff]
  %v64 = vld [vmem:[%s0 + $0x68] sm:$0xff]
  %v65 = vld [vmem:[%s0 + $0x70] sm:$0xff]
  %v66 = vld [vmem:[%s0 + $0x78] sm:$0xff]
  %v67 = vpack.c.bf16 %v52, %v51
  %v68 = vpack.c.bf16 %v54, %v53
  %v69 = vpack.c.bf16 %v56, %v55
  %v70 = vpack.c.bf16 %v58, %v57
  %v71 = vpack.c.bf16 %v60, %v59
  %v72 = vpack.c.bf16 %v62, %v61
  %v73 = vpack.c.bf16 %v64, %v63
  %v74 = vpack.c.bf16 %v66, %v65
  %v75 = vld [vmem:[%s1] sm:$0xff]
  %v76 = vld [vmem:[%s1 + $0x8] sm:$0xff]
  %v77 = vld [vmem:[%s1 + $0x10] sm:$0xff]
  %v78 = vld [vmem:[%s1 + $0x18] sm:$0xff]
  %v79 = vld [vmem:[%s1 + $0x20] sm:$0xff]
  %v80 = vld [vmem:[%s1 + $0x28] sm:$0xff]
  %v81 = vld [vmem:[%s1 + $0x30] sm:$0xff]
  %v82 = vld [vmem:[%s1 + $0x38] sm:$0xff]
  %v83 = vld [vmem:[%s2] sm:$0xf]
  %v85 = vperm.slane %v83, 0
  %v86 = vperm.slane %v83, 1
  %v87 = vperm.slane %v83, 2
  %v88 = vperm.slane %v83, 3
  %v101 = vunpack.c.l.b16 %v75
  %v102 = vunpack.c.h.b16 %v75
  %v103 = vunpack.c.l.b16 %v76
  %v104 = vunpack.c.h.b16 %v76
  %v105 = vunpack.c.l.b16 %v77
  %v106 = vunpack.c.h.b16 %v77
  %v107 = vunpack.c.l.b16 %v78
  %v108 = vunpack.c.h.b16 %v78
  %v109 = vunpack.c.l.b16 %v79
  %v110 = vunpack.c.h.b16 %v79
  %v111 = vunpack.c.l.b16 %v80
  %v112 = vunpack.c.h.b16 %v80
  %v113 = vunpack.c.l.b16 %v81
  %v114 = vunpack.c.h.b16 %v81
  %v115 = vunpack.c.l.b16 %v82
  %v116 = vunpack.c.h.b16 %v82
  %v117 = vpack.c.b16 %v105, %v101
  %v118 = vpack.c.b16 %v106, %v102
  %v119 = vpack.c.b16 %v107, %v103
  %v120 = vpack.c.b16 %v108, %v104
  %v121 = vpack.c.b16 %v113, %v109
  %v122 = vpack.c.b16 %v114, %v110
  %v123 = vpack.c.b16 %v115, %v111
  %v124 = vpack.c.b16 %v116, %v112
  %vm133 = vcmask 261120
  %v135 = vsel %vm133, %v67, 0
  %v138 = vsel %vm133, %v68, 0
  %v141 = vsel %vm133, %v69, 0
  %v144 = vsel %vm133, %v70, 0
  %v147 = vsel %vm133, %v71, 0
  %v150 = vsel %vm133, %v72, 0
  %v153 = vsel %vm133, %v73, 0
  %v156 = vsel %vm133, %v74, 0
  %158 = vmatpush.bf16.msra.mxu0 0
  %159 = vmatpush.bf16.msra.mxu0 0
  %160 = vmatpush.bf16.msra.mxu0 0
  %161 = vmatpush.bf16.msra.mxu0 0
  %162 = vmatpush.bf16.msra.mxu0 0
  %163 = vmatpush.bf16.msra.mxu0 0
  %164 = vmatpush.bf16.msra.mxu0 %v121
  %165 = vmatpush.bf16.msra.mxu0 %v117
  %166 = vmatmul.bf16.gmra.mxu0 %v135
  %v167 = vpop.f32.mrf.mxu0
  %v168 = vadd.f32 %v85, %v167
  %v169 = vpop.f32.mrf.mxu0
  %v170 = vadd.f32 %v85, %v169
  %171 = vmatmul.bf16.gmra.mxu0 %v138
  %v172 = vpop.f32.mrf.mxu0
  %v173 = vadd.f32 %v85, %v172
  %v174 = vpop.f32.mrf.mxu0
  %v175 = vadd.f32 %v85, %v174
  %176 = vmatmul.bf16.gmra.mxu0 %v141
  %v177 = vpop.f32.mrf.mxu0
  %v178 = vadd.f32 %v85, %v177
  %v179 = vpop.f32.mrf.mxu0
  %v180 = vadd.f32 %v85, %v179
  %181 = vmatmul.bf16.gmra.mxu0 %v144
  %v182 = vpop.f32.mrf.mxu0
  %v183 = vadd.f32 %v85, %v182
  %v184 = vpop.f32.mrf.mxu0
  %v185 = vadd.f32 %v85, %v184
  %186 = vmatmul.bf16.gmra.mxu0 %v147
  %v187 = vpop.f32.mrf.mxu0
  %v188 = vadd.f32 %v85, %v187
  %v189 = vpop.f32.mrf.mxu0
  %v190 = vadd.f32 %v85, %v189
  %191 = vmatmul.bf16.gmra.mxu0 %v150
  %v192 = vpop.f32.mrf.mxu0
  %v193 = vadd.f32 %v85, %v192
  %v194 = vpop.f32.mrf.mxu0
  %v195 = vadd.f32 %v85, %v194
  %196 = vmatmul.bf16.gmra.mxu0 %v153
  %v197 = vpop.f32.mrf.mxu0
  %v198 = vadd.f32 %v85, %v197
  %v199 = vpop.f32.mrf.mxu0
  %v200 = vadd.f32 %v85, %v199
  %201 = vmatmul.bf16.gmra.mxu0 %v156
  %v202 = vpop.f32.mrf.mxu0
  %v203 = vadd.f32 %v85, %v202
  %v204 = vpop.f32.mrf.mxu0
  %v205 = vadd.f32 %v85, %v204
  %206 = vdwg.mxu0
  %207 = vmatpush.bf16.msra.mxu0 0
  %208 = vmatpush.bf16.msra.mxu0 0
  %209 = vmatpush.bf16.msra.mxu0 0
  %210 = vmatpush.bf16.msra.mxu0 0
  %211 = vmatpush.bf16.msra.mxu0 0
  %212 = vmatpush.bf16.msra.mxu0 0
  %213 = vmatpush.bf16.msra.mxu0 %v122
  %214 = vmatpush.bf16.msra.mxu0 %v118
  %215 = vmatmul.bf16.gmra.mxu0 %v135
  %v216 = vpop.f32.mrf.mxu0
  %v217 = vadd.f32 %v86, %v216
  %v218 = vpop.f32.mrf.mxu0
  %v219 = vadd.f32 %v86, %v218
  %220 = vmatmul.bf16.gmra.mxu0 %v138
  %v221 = vpop.f32.mrf.mxu0
  %v222 = vadd.f32 %v86, %v221
  %v223 = vpop.f32.mrf.mxu0
  %v224 = vadd.f32 %v86, %v223
  %225 = vmatmul.bf16.gmra.mxu0 %v141
  %v226 = vpop.f32.mrf.mxu0
  %v227 = vadd.f32 %v86, %v226
  %v228 = vpop.f32.mrf.mxu0
  %v229 = vadd.f32 %v86, %v228
  %230 = vmatmul.bf16.gmra.mxu0 %v144
  %v231 = vpop.f32.mrf.mxu0
  %v232 = vadd.f32 %v86, %v231
  %v233 = vpop.f32.mrf.mxu0
  %v234 = vadd.f32 %v86, %v233
  %235 = vmatmul.bf16.gmra.mxu0 %v147
  %v236 = vpop.f32.mrf.mxu0
  %v237 = vadd.f32 %v86, %v236
  %v238 = vpop.f32.mrf.mxu0
  %v239 = vadd.f32 %v86, %v238
  %240 = vmatmul.bf16.gmra.mxu0 %v150
  %v241 = vpop.f32.mrf.mxu0
  %v242 = vadd.f32 %v86, %v241
  %v243 = vpop.f32.mrf.mxu0
  %v244 = vadd.f32 %v86, %v243
  %245 = vmatmul.bf16.gmra.mxu0 %v153
  %v246 = vpop.f32.mrf.mxu0
  %v247 = vadd.f32 %v86, %v246
  %v248 = vpop.f32.mrf.mxu0
  %v249 = vadd.f32 %v86, %v248
  %250 = vmatmul.bf16.gmra.mxu0 %v156
  %v251 = vpop.f32.mrf.mxu0
  %v252 = vadd.f32 %v86, %v251
  %v253 = vpop.f32.mrf.mxu0
  %v254 = vadd.f32 %v86, %v253
  %255 = vdwg.mxu0
  %256 = vmatpush.bf16.msra.mxu0 0
  %257 = vmatpush.bf16.msra.mxu0 0
  %258 = vmatpush.bf16.msra.mxu0 0
  %259 = vmatpush.bf16.msra.mxu0 0
  %260 = vmatpush.bf16.msra.mxu0 0
  %261 = vmatpush.bf16.msra.mxu0 0
  %262 = vmatpush.bf16.msra.mxu0 %v123
  %263 = vmatpush.bf16.msra.mxu0 %v119
  %264 = vmatmul.bf16.gmra.mxu0 %v135
  %v265 = vpop.f32.mrf.mxu0
  %v266 = vadd.f32 %v87, %v265
  %v267 = vpop.f32.mrf.mxu0
  %v268 = vadd.f32 %v87, %v267
  %269 = vmatmul.bf16.gmra.mxu0 %v138
  %v270 = vpop.f32.mrf.mxu0
  %v271 = vadd.f32 %v87, %v270
  %v272 = vpop.f32.mrf.mxu0
  %v273 = vadd.f32 %v87, %v272
  %274 = vmatmul.bf16.gmra.mxu0 %v141
  %v275 = vpop.f32.mrf.mxu0
  %v276 = vadd.f32 %v87, %v275
  %v277 = vpop.f32.mrf.mxu0
  %v278 = vadd.f32 %v87, %v277
  %279 = vmatmul.bf16.gmra.mxu0 %v144
  %v280 = vpop.f32.mrf.mxu0
  %v281 = vadd.f32 %v87, %v280
  %v282 = vpop.f32.mrf.mxu0
  %v283 = vadd.f32 %v87, %v282
  %284 = vmatmul.bf16.gmra.mxu0 %v147
  %v285 = vpop.f32.mrf.mxu0
  %v286 = vadd.f32 %v87, %v285
  %v287 = vpop.f32.mrf.mxu0
  %v288 = vadd.f32 %v87, %v287
  %289 = vmatmul.bf16.gmra.mxu0 %v150
  %v290 = vpop.f32.mrf.mxu0
  %v291 = vadd.f32 %v87, %v290
  %v292 = vpop.f32.mrf.mxu0
  %v293 = vadd.f32 %v87, %v292
  %294 = vmatmul.bf16.gmra.mxu0 %v153
  %v295 = vpop.f32.mrf.mxu0
  %v296 = vadd.f32 %v87, %v295
  %v297 = vpop.f32.mrf.mxu0
  %v298 = vadd.f32 %v87, %v297
  %299 = vmatmul.bf16.gmra.mxu0 %v156
  %v300 = vpop.f32.mrf.mxu0
  %v301 = vadd.f32 %v87, %v300
  %v302 = vpop.f32.mrf.mxu0
  %v303 = vadd.f32 %v87, %v302
  %304 = vdwg.mxu0
  %305 = vmatpush.bf16.msra.mxu0 0
  %306 = vmatpush.bf16.msra.mxu0 0
  %307 = vmatpush.bf16.msra.mxu0 0
  %308 = vmatpush.bf16.msra.mxu0 0
  %309 = vmatpush.bf16.msra.mxu0 0
  %310 = vmatpush.bf16.msra.mxu0 0
  %311 = vmatpush.bf16.msra.mxu0 %v124
  %312 = vmatpush.bf16.msra.mxu0 %v120
  %313 = vmatmul.bf16.gmra.mxu0 %v135
  %v314 = vpop.f32.mrf.mxu0
  %v315 = vadd.f32 %v88, %v314
  %v316 = vpop.f32.mrf.mxu0
  %v317 = vadd.f32 %v88, %v316
  %318 = vmatmul.bf16.gmra.mxu0 %v138
  %v319 = vpop.f32.mrf.mxu0
  %v320 = vadd.f32 %v88, %v319
  %v321 = vpop.f32.mrf.mxu0
  %v322 = vadd.f32 %v88, %v321
  %323 = vmatmul.bf16.gmra.mxu0 %v141
  %v324 = vpop.f32.mrf.mxu0
  %v325 = vadd.f32 %v88, %v324
  %v326 = vpop.f32.mrf.mxu0
  %v327 = vadd.f32 %v88, %v326
  %328 = vmatmul.bf16.gmra.mxu0 %v144
  %v329 = vpop.f32.mrf.mxu0
  %v330 = vadd.f32 %v88, %v329
  %v331 = vpop.f32.mrf.mxu0
  %v332 = vadd.f32 %v88, %v331
  %333 = vmatmul.bf16.gmra.mxu0 %v147
  %v334 = vpop.f32.mrf.mxu0
  %v335 = vadd.f32 %v88, %v334
  %v336 = vpop.f32.mrf.mxu0
  %v337 = vadd.f32 %v88, %v336
  %338 = vmatmul.bf16.gmra.mxu0 %v150
  %v339 = vpop.f32.mrf.mxu0
  %v340 = vadd.f32 %v88, %v339
  %v341 = vpop.f32.mrf.mxu0
  %v342 = vadd.f32 %v88, %v341
  %343 = vmatmul.bf16.gmra.mxu0 %v153
  %v344 = vpop.f32.mrf.mxu0
  %v345 = vadd.f32 %v88, %v344
  %v346 = vpop.f32.mrf.mxu0
  %v347 = vadd.f32 %v88, %v346
  %348 = vmatmul.bf16.gmra.mxu0 %v156
  %v349 = vpop.f32.mrf.mxu0
  %v350 = vadd.f32 %v88, %v349
  %v351 = vpop.f32.mrf.mxu0
  %v352 = vadd.f32 %v88, %v351
  %353 = vdwg.mxu0
  %v354 = vmax.f32 %v168, 0.0
  %v355 = vmax.f32 %v217, 0.0
  %v356 = vmax.f32 %v266, 0.0
  %v357 = vmax.f32 %v315, 0.0
  %v358 = vmax.f32 %v170, 0.0
  %v359 = vmax.f32 %v219, 0.0
  %v360 = vmax.f32 %v268, 0.0
  %v361 = vmax.f32 %v317, 0.0
  %v362 = vmax.f32 %v173, 0.0
  %v363 = vmax.f32 %v222, 0.0
  %v364 = vmax.f32 %v271, 0.0
  %v365 = vmax.f32 %v320, 0.0
  %v366 = vmax.f32 %v175, 0.0
  %v367 = vmax.f32 %v224, 0.0
  %v368 = vmax.f32 %v273, 0.0
  %v369 = vmax.f32 %v322, 0.0
  %v370 = vmax.f32 %v178, 0.0
  %v371 = vmax.f32 %v227, 0.0
  %v372 = vmax.f32 %v276, 0.0
  %v373 = vmax.f32 %v325, 0.0
  %v374 = vmax.f32 %v180, 0.0
  %v375 = vmax.f32 %v229, 0.0
  %v376 = vmax.f32 %v278, 0.0
  %v377 = vmax.f32 %v327, 0.0
  %v378 = vmax.f32 %v183, 0.0
  %v379 = vmax.f32 %v232, 0.0
  %v380 = vmax.f32 %v281, 0.0
  %v381 = vmax.f32 %v330, 0.0
  %v382 = vmax.f32 %v185, 0.0
  %v383 = vmax.f32 %v234, 0.0
  %v384 = vmax.f32 %v283, 0.0
  %v385 = vmax.f32 %v332, 0.0
  %v386 = vmax.f32 %v188, 0.0
  %v387 = vmax.f32 %v237, 0.0
  %v388 = vmax.f32 %v286, 0.0
  %v389 = vmax.f32 %v335, 0.0
  %v390 = vmax.f32 %v190, 0.0
  %v391 = vmax.f32 %v239, 0.0
  %v392 = vmax.f32 %v288, 0.0
  %v393 = vmax.f32 %v337, 0.0
  %v394 = vmax.f32 %v193, 0.0
  %v395 = vmax.f32 %v242, 0.0
  %v396 = vmax.f32 %v291, 0.0
  %v397 = vmax.f32 %v340, 0.0
  %v398 = vmax.f32 %v195, 0.0
  %v399 = vmax.f32 %v244, 0.0
  %v400 = vmax.f32 %v293, 0.0
  %v401 = vmax.f32 %v342, 0.0
  %v402 = vmax.f32 %v198, 0.0
  %v403 = vmax.f32 %v247, 0.0
  %v404 = vmax.f32 %v296, 0.0
  %v405 = vmax.f32 %v345, 0.0
  %v406 = vmax.f32 %v200, 0.0
  %v407 = vmax.f32 %v249, 0.0
  %v408 = vmax.f32 %v298, 0.0
  %v409 = vmax.f32 %v347, 0.0
  %v410 = vmax.f32 %v203, 0.0
  %v411 = vmax.f32 %v252, 0.0
  %v412 = vmax.f32 %v301, 0.0
  %v413 = vmax.f32 %v350, 0.0
  %v414 = vmax.f32 %v205, 0.0
  %v415 = vmax.f32 %v254, 0.0
  %v416 = vmax.f32 %v303, 0.0
  %v417 = vmax.f32 %v352, 0.0
  %v418 = vpack.c.bf16 %v358, %v354
  %v419 = vpack.c.bf16 %v359, %v355
  %v420 = vpack.c.bf16 %v360, %v356
  %v421 = vpack.c.bf16 %v361, %v357
  %v422 = vpack.c.bf16 %v366, %v362
  %v423 = vpack.c.bf16 %v367, %v363
  %v424 = vpack.c.bf16 %v368, %v364
  %v425 = vpack.c.bf16 %v369, %v365
  %v426 = vpack.c.bf16 %v374, %v370
  %v427 = vpack.c.bf16 %v375, %v371
  %v428 = vpack.c.bf16 %v376, %v372
  %v429 = vpack.c.bf16 %v377, %v373
  %v430 = vpack.c.bf16 %v382, %v378
  %v431 = vpack.c.bf16 %v383, %v379
  %v432 = vpack.c.bf16 %v384, %v380
  %v433 = vpack.c.bf16 %v385, %v381
  %v434 = vpack.c.bf16 %v390, %v386
  %v435 = vpack.c.bf16 %v391, %v387
  %v436 = vpack.c.bf16 %v392, %v388
  %v437 = vpack.c.bf16 %v393, %v389
  %v438 = vpack.c.bf16 %v398, %v394
  %v439 = vpack.c.bf16 %v399, %v395
  %v440 = vpack.c.bf16 %v400, %v396
  %v441 = vpack.c.bf16 %v401, %v397
  %v442 = vpack.c.bf16 %v406, %v402
  %v443 = vpack.c.bf16 %v407, %v403
  %v444 = vpack.c.bf16 %v408, %v404
  %v445 = vpack.c.bf16 %v409, %v405
  %v446 = vpack.c.bf16 %v414, %v410
  %v447 = vpack.c.bf16 %v415, %v411
  %v448 = vpack.c.bf16 %v416, %v412
  %v449 = vpack.c.bf16 %v417, %v413
  %v450 = vld [vmem:[%s3] sm:$0xff]
  %v451 = vld [vmem:[%s3 + $0x8] sm:$0xff]
  %v452 = vld [vmem:[%s3 + $0x10] sm:$0xff]
  %v453 = vld [vmem:[%s3 + $0x18] sm:$0xf]
  %v454 = vld [vmem:[%s3 + $0x1c] sm:$0xff]
  %v455 = vld [vmem:[%s3 + $0x24] sm:$0xff]
  %v456 = vld [vmem:[%s3 + $0x2c] sm:$0xff]
  %v457 = vld [vmem:[%s3 + $0x34] sm:$0xf]
  %v458 = vld [vmem:[%s3 + $0x38] sm:$0xff]
  %v459 = vld [vmem:[%s3 + $0x40] sm:$0xff]
  %v460 = vld [vmem:[%s3 + $0x48] sm:$0xff]
  %v461 = vld [vmem:[%s3 + $0x50] sm:$0xf]
  %v462 = vld [vmem:[%s3 + $0x54] sm:$0xff]
  %v463 = vld [vmem:[%s3 + $0x5c] sm:$0xff]
  %v464 = vld [vmem:[%s3 + $0x64] sm:$0xff]
  %v465 = vld [vmem:[%s3 + $0x6c] sm:$0xf]
  %v466 = vld [vmem:[%s3 + $0x70] sm:$0xff]
  %v467 = vld [vmem:[%s3 + $0x78] sm:$0xff]
  %v468 = vld [vmem:[%s3 + $0x80] sm:$0xff]
  %v469 = vld [vmem:[%s3 + $0x88] sm:$0xf]
  %v470 = vld [vmem:[%s3 + $0x8c] sm:$0xff]
  %v471 = vld [vmem:[%s3 + $0x94] sm:$0xff]
  %v472 = vld [vmem:[%s3 + $0x9c] sm:$0xff]
  %v473 = vld [vmem:[%s3 + $0xa4] sm:$0xf]
  %v474 = vld [vmem:[%s3 + $0xa8] sm:$0xff]
  %v475 = vld [vmem:[%s3 + $0xb0] sm:$0xff]
  %v476 = vld [vmem:[%s3 + $0xb8] sm:$0xff]
  %v477 = vld [vmem:[%s3 + $0xc0] sm:$0xf]
  %v478 = vld [vmem:[%s3 + $0xc4] sm:$0xff]
  %v479 = vld [vmem:[%s3 + $0xcc] sm:$0xff]
  %v480 = vld [vmem:[%s3 + $0xd4] sm:$0xff]
  %v481 = vld [vmem:[%s3 + $0xdc] sm:$0xf]
  %v482 = vld [vmem:[%s3 + $0xe0] sm:$0xff]
  %v483 = vld [vmem:[%s3 + $0xe8] sm:$0xff]
  %v484 = vld [vmem:[%s3 + $0xf0] sm:$0xff]
  %v485 = vld [vmem:[%s3 + $0xf8] sm:$0xf]
  %v486 = vld [vmem:[%s3 + $0xfc] sm:$0xff]
  %v487 = vld [vmem:[%s3 + $0x104] sm:$0xff]
  %v488 = vld [vmem:[%s3 + $0x10c] sm:$0xff]
  %v489 = vld [vmem:[%s3 + $0x114] sm:$0xf]
  %v490 = vld [vmem:[%s3 + $0x118] sm:$0xff]
  %v491 = vld [vmem:[%s3 + $0x120] sm:$0xff]
  %v492 = vld [vmem:[%s3 + $0x128] sm:$0xff]
  %v493 = vld [vmem:[%s3 + $0x130] sm:$0xf]
  %v494 = vld [vmem:[%s3 + $0x134] sm:$0xff]
  %v495 = vld [vmem:[%s3 + $0x13c] sm:$0xff]
  %v496 = vld [vmem:[%s3 + $0x144] sm:$0xff]
  %v497 = vld [vmem:[%s3 + $0x14c] sm:$0xf]
  %v498 = vld [vmem:[%s3 + $0x150] sm:$0xff]
  %v499 = vld [vmem:[%s3 + $0x158] sm:$0xff]
  %v500 = vld [vmem:[%s3 + $0x160] sm:$0xff]
  %v501 = vld [vmem:[%s3 + $0x168] sm:$0xf]
  %v502 = vld [vmem:[%s3 + $0x16c] sm:$0xff]
  %v503 = vld [vmem:[%s3 + $0x174] sm:$0xff]
  %v504 = vld [vmem:[%s3 + $0x17c] sm:$0xff]
  %v505 = vld [vmem:[%s3 + $0x184] sm:$0xf]
  %v506 = vld [vmem:[%s3 + $0x188] sm:$0xff]
  %v507 = vld [vmem:[%s3 + $0x190] sm:$0xff]
  %v508 = vld [vmem:[%s3 + $0x198] sm:$0xff]
  %v509 = vld [vmem:[%s3 + $0x1a0] sm:$0xf]
  %v510 = vld [vmem:[%s3 + $0x1a4] sm:$0xff]
  %v511 = vld [vmem:[%s3 + $0x1ac] sm:$0xff]
  %v512 = vld [vmem:[%s3 + $0x1b4] sm:$0xff]
  %v513 = vld [vmem:[%s3 + $0x1bc] sm:$0xf]
  %v514 = vld [vmem:[%s3 + $0x1c0] sm:$0xff]
  %v515 = vld [vmem:[%s3 + $0x1c8] sm:$0xff]
  %v516 = vld [vmem:[%s3 + $0x1d0] sm:$0xff]
  %v517 = vld [vmem:[%s3 + $0x1d8] sm:$0xf]
  %v518 = vld [vmem:[%s3 + $0x1dc] sm:$0xff]
  %v519 = vld [vmem:[%s3 + $0x1e4] sm:$0xff]
  %v520 = vld [vmem:[%s3 + $0x1ec] sm:$0xff]
  %v521 = vld [vmem:[%s3 + $0x1f4] sm:$0xf]
  %v522 = vld [vmem:[%s3 + $0x1f8] sm:$0xff]
  %v523 = vld [vmem:[%s3 + $0x200] sm:$0xff]
  %v524 = vld [vmem:[%s3 + $0x208] sm:$0xff]
  %v525 = vld [vmem:[%s3 + $0x210] sm:$0xf]
  %v526 = vld [vmem:[%s3 + $0x214] sm:$0xff]
  %v527 = vld [vmem:[%s3 + $0x21c] sm:$0xff]
  %v528 = vld [vmem:[%s3 + $0x224] sm:$0xff]
  %v529 = vld [vmem:[%s3 + $0x22c] sm:$0xf]
  %v530 = vld [vmem:[%s3 + $0x230] sm:$0xff]
  %v531 = vld [vmem:[%s3 + $0x238] sm:$0xff]
  %v532 = vld [vmem:[%s3 + $0x240] sm:$0xff]
  %v533 = vld [vmem:[%s3 + $0x248] sm:$0xf]
  %v534 = vld [vmem:[%s3 + $0x24c] sm:$0xff]
  %v535 = vld [vmem:[%s3 + $0x254] sm:$0xff]
  %v536 = vld [vmem:[%s3 + $0x25c] sm:$0xff]
  %v537 = vld [vmem:[%s3 + $0x264] sm:$0xf]
  %v538 = vld [vmem:[%s3 + $0x268] sm:$0xff]
  %v539 = vld [vmem:[%s3 + $0x270] sm:$0xff]
  %v540 = vld [vmem:[%s3 + $0x278] sm:$0xff]
  %v541 = vld [vmem:[%s3 + $0x280] sm:$0xf]
  %v542 = vld [vmem:[%s3 + $0x284] sm:$0xff]
  %v543 = vld [vmem:[%s3 + $0x28c] sm:$0xff]
  %v544 = vld [vmem:[%s3 + $0x294] sm:$0xff]
  %v545 = vld [vmem:[%s3 + $0x29c] sm:$0xf]
  %v546 = vld [vmem:[%s3 + $0x2a0] sm:$0xff]
  %v547 = vld [vmem:[%s3 + $0x2a8] sm:$0xff]
  %v548 = vld [vmem:[%s3 + $0x2b0] sm:$0xff]
  %v549 = vld [vmem:[%s3 + $0x2b8] sm:$0xf]
  %v550 = vld [vmem:[%s3 + $0x2bc] sm:$0xff]
  %v551 = vld [vmem:[%s3 + $0x2c4] sm:$0xff]
  %v552 = vld [vmem:[%s3 + $0x2cc] sm:$0xff]
  %v553 = vld [vmem:[%s3 + $0x2d4] sm:$0xf]
  %v554 = vld [vmem:[%s3 + $0x2d8] sm:$0xff]
  %v555 = vld [vmem:[%s3 + $0x2e0] sm:$0xff]
  %v556 = vld [vmem:[%s3 + $0x2e8] sm:$0xff]
  %v557 = vld [vmem:[%s3 + $0x2f0] sm:$0xf]
  %v558 = vld [vmem:[%s3 + $0x2f4] sm:$0xff]
  %v559 = vld [vmem:[%s3 + $0x2fc] sm:$0xff]
  %v560 = vld [vmem:[%s3 + $0x304] sm:$0xff]
  %v561 = vld [vmem:[%s3 + $0x30c] sm:$0xf]
  %v562 = vld [vmem:[%s3 + $0x310] sm:$0xff]
  %v563 = vld [vmem:[%s3 + $0x318] sm:$0xff]
  %v564 = vld [vmem:[%s3 + $0x320] sm:$0xff]
  %v565 = vld [vmem:[%s3 + $0x328] sm:$0xf]
  %v566 = vld [vmem:[%s3 + $0x32c] sm:$0xff]
  %v567 = vld [vmem:[%s3 + $0x334] sm:$0xff]
  %v568 = vld [vmem:[%s3 + $0x33c] sm:$0xff]
  %v569 = vld [vmem:[%s3 + $0x344] sm:$0xf]
  %v570 = vld [vmem:[%s3 + $0x348] sm:$0xff]
  %v571 = vld [vmem:[%s3 + $0x350] sm:$0xff]
  %v572 = vld [vmem:[%s3 + $0x358] sm:$0xff]
  %v573 = vld [vmem:[%s3 + $0x360] sm:$0xf]
  %v574 = vld [vmem:[%s3 + $0x364] sm:$0xff]
  %v575 = vld [vmem:[%s3 + $0x36c] sm:$0xff]
  %v576 = vld [vmem:[%s3 + $0x374] sm:$0xff]
  %v577 = vld [vmem:[%s3 + $0x37c] sm:$0xf]
  %v578 = vld [vmem:[%s3 + $0x380] sm:$0xff]
  %v579 = vld [vmem:[%s3 + $0x388] sm:$0xff]
  %v580 = vld [vmem:[%s3 + $0x390] sm:$0xff]
  %v581 = vld [vmem:[%s3 + $0x398] sm:$0xf]
  %v582 = vld [vmem:[%s3 + $0x39c] sm:$0xff]
  %v583 = vld [vmem:[%s3 + $0x3a4] sm:$0xff]
  %v584 = vld [vmem:[%s3 + $0x3ac] sm:$0xff]
  %v585 = vld [vmem:[%s3 + $0x3b4] sm:$0xf]
  %v586 = vld [vmem:[%s3 + $0x3b8] sm:$0xff]
  %v587 = vld [vmem:[%s3 + $0x3c0] sm:$0xff]
  %v588 = vld [vmem:[%s3 + $0x3c8] sm:$0xff]
  %v589 = vld [vmem:[%s3 + $0x3d0] sm:$0xf]
  %v590 = vld [vmem:[%s3 + $0x3d4] sm:$0xff]
  %v591 = vld [vmem:[%s3 + $0x3dc] sm:$0xff]
  %v592 = vld [vmem:[%s3 + $0x3e4] sm:$0xff]
  %v593 = vld [vmem:[%s3 + $0x3ec] sm:$0xf]
  %v594 = vld [vmem:[%s3 + $0x3f0] sm:$0xff]
  %v595 = vld [vmem:[%s3 + $0x3f8] sm:$0xff]
  %v596 = vld [vmem:[%s3 + $0x400] sm:$0xff]
  %v597 = vld [vmem:[%s3 + $0x408] sm:$0xf]
  %v598 = vld [vmem:[%s3 + $0x40c] sm:$0xff]
  %v599 = vld [vmem:[%s3 + $0x414] sm:$0xff]
  %v600 = vld [vmem:[%s3 + $0x41c] sm:$0xff]
  %v601 = vld [vmem:[%s3 + $0x424] sm:$0xf]
  %v602 = vld [vmem:[%s3 + $0x428] sm:$0xff]
  %v603 = vld [vmem:[%s3 + $0x430] sm:$0xff]
  %v604 = vld [vmem:[%s3 + $0x438] sm:$0xff]
  %v605 = vld [vmem:[%s3 + $0x440] sm:$0xf]
  %v606 = vld [vmem:[%s3 + $0x444] sm:$0xff]
  %v607 = vld [vmem:[%s3 + $0x44c] sm:$0xff]
  %v608 = vld [vmem:[%s3 + $0x454] sm:$0xff]
  %v609 = vld [vmem:[%s3 + $0x45c] sm:$0xf]
  %v610 = vld [vmem:[%s3 + $0x460] sm:$0xff]
  %v611 = vld [vmem:[%s3 + $0x468] sm:$0xff]
  %v612 = vld [vmem:[%s3 + $0x470] sm:$0xff]
  %v613 = vld [vmem:[%s3 + $0x478] sm:$0xf]
  %v614 = vld [vmem:[%s3 + $0x47c] sm:$0xff]
  %v615 = vld [vmem:[%s3 + $0x484] sm:$0xff]
  %v616 = vld [vmem:[%s3 + $0x48c] sm:$0xff]
  %v617 = vld [vmem:[%s3 + $0x494] sm:$0xf]
  %v618 = vld [vmem:[%s3 + $0x498] sm:$0xff]
  %v619 = vld [vmem:[%s3 + $0x4a0] sm:$0xff]
  %v620 = vld [vmem:[%s3 + $0x4a8] sm:$0xff]
  %v621 = vld [vmem:[%s3 + $0x4b0] sm:$0xf]
  %v622 = vld [vmem:[%s3 + $0x4b4] sm:$0xff]
  %v623 = vld [vmem:[%s3 + $0x4bc] sm:$0xff]
  %v624 = vld [vmem:[%s3 + $0x4c4] sm:$0xff]
  %v625 = vld [vmem:[%s3 + $0x4cc] sm:$0xf]
  %v626 = vld [vmem:[%s3 + $0x4d0] sm:$0xff]
  %v627 = vld [vmem:[%s3 + $0x4d8] sm:$0xff]
  %v628 = vld [vmem:[%s3 + $0x4e0] sm:$0xff]
  %v629 = vld [vmem:[%s3 + $0x4e8] sm:$0xf]
  %v630 = vld [vmem:[%s3 + $0x4ec] sm:$0xff]
  %v631 = vld [vmem:[%s3 + $0x4f4] sm:$0xff]
  %v632 = vld [vmem:[%s3 + $0x4fc] sm:$0xff]
  %v633 = vld [vmem:[%s3 + $0x504] sm:$0xf]
  %v634 = vld [vmem:[%s3 + $0x508] sm:$0xff]
  %v635 = vld [vmem:[%s3 + $0x510] sm:$0xff]
  %v636 = vld [vmem:[%s3 + $0x518] sm:$0xff]
  %v637 = vld [vmem:[%s3 + $0x520] sm:$0xf]
  %v638 = vld [vmem:[%s3 + $0x524] sm:$0xff]
  %v639 = vld [vmem:[%s3 + $0x52c] sm:$0xff]
  %v640 = vld [vmem:[%s3 + $0x534] sm:$0xff]
  %v641 = vld [vmem:[%s3 + $0x53c] sm:$0xf]
  %v642 = vld [vmem:[%s3 + $0x540] sm:$0xff]
  %v643 = vld [vmem:[%s3 + $0x548] sm:$0xff]
  %v644 = vld [vmem:[%s3 + $0x550] sm:$0xff]
  %v645 = vld [vmem:[%s3 + $0x558] sm:$0xf]
  %v646 = vld [vmem:[%s3 + $0x55c] sm:$0xff]
  %v647 = vld [vmem:[%s3 + $0x564] sm:$0xff]
  %v648 = vld [vmem:[%s3 + $0x56c] sm:$0xff]
  %v649 = vld [vmem:[%s3 + $0x574] sm:$0xf]
  %v650 = vld [vmem:[%s4] sm:$0x7f]
  %v652 = vperm.slane %v650, 0
  %v653 = vperm.slane %v650, 1
  %v654 = vperm.slane %v650, 2
  %v655 = vperm.slane %v650, 3
  %v656 = vperm.slane %v650, 4
  %v657 = vperm.slane %v650, 5
  %v658 = vperm.slane %v650, 6
  %v866 = vunpack.c.l.b16 %v450
  %v867 = vunpack.c.h.b16 %v450
  %v868 = vunpack.c.l.b16 %v451
  %v869 = vunpack.c.h.b16 %v451
  %v870 = vunpack.c.l.b16 %v452
  %v871 = vunpack.c.h.b16 %v452
  %v872 = vunpack.c.l.b16 %v453
  %v873 = vunpack.c.l.b16 %v454
  %v874 = vunpack.c.h.b16 %v454
  %v875 = vunpack.c.l.b16 %v455
  %v876 = vunpack.c.h.b16 %v455
  %v877 = vunpack.c.l.b16 %v456
  %v878 = vunpack.c.h.b16 %v456
  %v879 = vunpack.c.l.b16 %v457
  %v880 = vunpack.c.l.b16 %v458
  %v881 = vunpack.c.h.b16 %v458
  %v882 = vunpack.c.l.b16 %v459
  %v883 = vunpack.c.h.b16 %v459
  %v884 = vunpack.c.l.b16 %v460
  %v885 = vunpack.c.h.b16 %v460
  %v886 = vunpack.c.l.b16 %v461
  %v887 = vunpack.c.l.b16 %v462
  %v888 = vunpack.c.h.b16 %v462
  %v889 = vunpack.c.l.b16 %v463
  %v890 = vunpack.c.h.b16 %v463
  %v891 = vunpack.c.l.b16 %v464
  %v892 = vunpack.c.h.b16 %v464
  %v893 = vunpack.c.l.b16 %v465
  %v894 = vunpack.c.l.b16 %v466
  %v895 = vunpack.c.h.b16 %v466
  %v896 = vunpack.c.l.b16 %v467
  %v897 = vunpack.c.h.b16 %v467
  %v898 = vunpack.c.l.b16 %v468
  %v899 = vunpack.c.h.b16 %v468
  %v900 = vunpack.c.l.b16 %v469
  %v901 = vunpack.c.l.b16 %v470
  %v902 = vunpack.c.h.b16 %v470
  %v903 = vunpack.c.l.b16 %v471
  %v904 = vunpack.c.h.b16 %v471
  %v905 = vunpack.c.l.b16 %v472
  %v906 = vunpack.c.h.b16 %v472
  %v907 = vunpack.c.l.b16 %v473
  %v908 = vunpack.c.l.b16 %v474
  %v909 = vunpack.c.h.b16 %v474
  %v910 = vunpack.c.l.b16 %v475
  %v911 = vunpack.c.h.b16 %v475
  %v912 = vunpack.c.l.b16 %v476
  %v913 = vunpack.c.h.b16 %v476
  %v914 = vunpack.c.l.b16 %v477
  %v915 = vunpack.c.l.b16 %v478
  %v916 = vunpack.c.h.b16 %v478
  %v917 = vunpack.c.l.b16 %v479
  %v918 = vunpack.c.h.b16 %v479
  %v919 = vunpack.c.l.b16 %v480
  %v920 = vunpack.c.h.b16 %v480
  %v921 = vunpack.c.l.b16 %v481
  %v922 = vunpack.c.l.b16 %v482
  %v923 = vunpack.c.h.b16 %v482
  %v924 = vunpack.c.l.b16 %v483
  %v925 = vunpack.c.h.b16 %v483
  %v926 = vunpack.c.l.b16 %v484
  %v927 = vunpack.c.h.b16 %v484
  %v928 = vunpack.c.l.b16 %v485
  %v929 = vunpack.c.l.b16 %v486
  %v930 = vunpack.c.h.b16 %v486
  %v931 = vunpack.c.l.b16 %v487
  %v932 = vunpack.c.h.b16 %v487
  %v933 = vunpack.c.l.b16 %v488
  %v934 = vunpack.c.h.b16 %v488
  %v935 = vunpack.c.l.b16 %v489
  %v936 = vunpack.c.l.b16 %v490
  %v937 = vunpack.c.h.b16 %v490
  %v938 = vunpack.c.l.b16 %v491
  %v939 = vunpack.c.h.b16 %v491
  %v940 = vunpack.c.l.b16 %v492
  %v941 = vunpack.c.h.b16 %v492
  %v942 = vunpack.c.l.b16 %v493
  %v943 = vunpack.c.l.b16 %v494
  %v944 = vunpack.c.h.b16 %v494
  %v945 = vunpack.c.l.b16 %v495
  %v946 = vunpack.c.h.b16 %v495
  %v947 = vunpack.c.l.b16 %v496
  %v948 = vunpack.c.h.b16 %v496
  %v949 = vunpack.c.l.b16 %v497
  %v950 = vunpack.c.l.b16 %v498
  %v951 = vunpack.c.h.b16 %v498
  %v952 = vunpack.c.l.b16 %v499
  %v953 = vunpack.c.h.b16 %v499
  %v954 = vunpack.c.l.b16 %v500
  %v955 = vunpack.c.h.b16 %v500
  %v956 = vunpack.c.l.b16 %v501
  %v957 = vunpack.c.l.b16 %v502
  %v958 = vunpack.c.h.b16 %v502
  %v959 = vunpack.c.l.b16 %v503
  %v960 = vunpack.c.h.b16 %v503
  %v961 = vunpack.c.l.b16 %v504
  %v962 = vunpack.c.h.b16 %v504
  %v963 = vunpack.c.l.b16 %v505
  %v964 = vunpack.c.l.b16 %v506
  %v965 = vunpack.c.h.b16 %v506
  %v966 = vunpack.c.l.b16 %v507
  %v967 = vunpack.c.h.b16 %v507
  %v968 = vunpack.c.l.b16 %v508
  %v969 = vunpack.c.h.b16 %v508
  %v970 = vunpack.c.l.b16 %v509
  %v971 = vunpack.c.l.b16 %v510
  %v972 = vunpack.c.h.b16 %v510
  %v973 = vunpack.c.l.b16 %v511
  %v974 = vunpack.c.h.b16 %v511
  %v975 = vunpack.c.l.b16 %v512
  %v976 = vunpack.c.h.b16 %v512
  %v977 = vunpack.c.l.b16 %v513
  %v978 = vunpack.c.l.b16 %v514
  %v979 = vunpack.c.h.b16 %v514
  %v980 = vunpack.c.l.b16 %v515
  %v981 = vunpack.c.h.b16 %v515
  %v982 = vunpack.c.l.b16 %v516
  %v983 = vunpack.c.h.b16 %v516
  %v984 = vunpack.c.l.b16 %v517
  %v985 = vunpack.c.l.b16 %v518
  %v986 = vunpack.c.h.b16 %v518
  %v987 = vunpack.c.l.b16 %v519
  %v988 = vunpack.c.h.b16 %v519
  %v989 = vunpack.c.l.b16 %v520
  %v990 = vunpack.c.h.b16 %v520
  %v991 = vunpack.c.l.b16 %v521
  %v992 = vunpack.c.l.b16 %v522
  %v993 = vunpack.c.h.b16 %v522
  %v994 = vunpack.c.l.b16 %v523
  %v995 = vunpack.c.h.b16 %v523
  %v996 = vunpack.c.l.b16 %v524
  %v997 = vunpack.c.h.b16 %v524
  %v998 = vunpack.c.l.b16 %v525
  %v999 = vunpack.c.l.b16 %v526
  %v1000 = vunpack.c.h.b16 %v526
  %v1001 = vunpack.c.l.b16 %v527
  %v1002 = vunpack.c.h.b16 %v527
  %v1003 = vunpack.c.l.b16 %v528
  %v1004 = vunpack.c.h.b16 %v528
  %v1005 = vunpack.c.l.b16 %v529
  %v1006 = vunpack.c.l.b16 %v530
  %v1007 = vunpack.c.h.b16 %v530
  %v1008 = vunpack.c.l.b16 %v531
  %v1009 = vunpack.c.h.b16 %v531
  %v1010 = vunpack.c.l.b16 %v532
  %v1011 = vunpack.c.h.b16 %v532
  %v1012 = vunpack.c.l.b16 %v533
  %v1013 = vunpack.c.l.b16 %v534
  %v1014 = vunpack.c.h.b16 %v534
  %v1015 = vunpack.c.l.b16 %v535
  %v1016 = vunpack.c.h.b16 %v535
  %v1017 = vunpack.c.l.b16 %v536
  %v1018 = vunpack.c.h.b16 %v536
  %v1019 = vunpack.c.l.b16 %v537
  %v1020 = vunpack.c.l.b16 %v538
  %v1021 = vunpack.c.h.b16 %v538
  %v1022 = vunpack.c.l.b16 %v539
  %v1023 = vunpack.c.h.b16 %v539
  %v1024 = vunpack.c.l.b16 %v540
  %v1025 = vunpack.c.h.b16 %v540
  %v1026 = vunpack.c.l.b16 %v541
  %v1027 = vunpack.c.l.b16 %v542
  %v1028 = vunpack.c.h.b16 %v542
  %v1029 = vunpack.c.l.b16 %v543
  %v1030 = vunpack.c.h.b16 %v543
  %v1031 = vunpack.c.l.b16 %v544
  %v1032 = vunpack.c.h.b16 %v544
  %v1033 = vunpack.c.l.b16 %v545
  %v1034 = vunpack.c.l.b16 %v546
  %v1035 = vunpack.c.h.b16 %v546
  %v1036 = vunpack.c.l.b16 %v547
  %v1037 = vunpack.c.h.b16 %v547
  %v1038 = vunpack.c.l.b16 %v548
  %v1039 = vunpack.c.h.b16 %v548
  %v1040 = vunpack.c.l.b16 %v549
  %v1041 = vunpack.c.l.b16 %v550
  %v1042 = vunpack.c.h.b16 %v550
  %v1043 = vunpack.c.l.b16 %v551
  %v1044 = vunpack.c.h.b16 %v551
  %v1045 = vunpack.c.l.b16 %v552
  %v1046 = vunpack.c.h.b16 %v552
  %v1047 = vunpack.c.l.b16 %v553
  %v1048 = vunpack.c.l.b16 %v554
  %v1049 = vunpack.c.h.b16 %v554
  %v1050 = vunpack.c.l.b16 %v555
  %v1051 = vunpack.c.h.b16 %v555
  %v1052 = vunpack.c.l.b16 %v556
  %v1053 = vunpack.c.h.b16 %v556
  %v1054 = vunpack.c.l.b16 %v557
  %v1055 = vunpack.c.l.b16 %v558
  %v1056 = vunpack.c.h.b16 %v558
  %v1057 = vunpack.c.l.b16 %v559
  %v1058 = vunpack.c.h.b16 %v559
  %v1059 = vunpack.c.l.b16 %v560
  %v1060 = vunpack.c.h.b16 %v560
  %v1061 = vunpack.c.l.b16 %v561
  %v1062 = vunpack.c.l.b16 %v562
  %v1063 = vunpack.c.h.b16 %v562
  %v1064 = vunpack.c.l.b16 %v563
  %v1065 = vunpack.c.h.b16 %v563
  %v1066 = vunpack.c.l.b16 %v564
  %v1067 = vunpack.c.h.b16 %v564
  %v1068 = vunpack.c.l.b16 %v565
  %v1069 = vunpack.c.l.b16 %v566
  %v1070 = vunpack.c.h.b16 %v566
  %v1071 = vunpack.c.l.b16 %v567
  %v1072 = vunpack.c.h.b16 %v567
  %v1073 = vunpack.c.l.b16 %v568
  %v1074 = vunpack.c.h.b16 %v568
  %v1075 = vunpack.c.l.b16 %v569
  %v1076 = vunpack.c.l.b16 %v570
  %v1077 = vunpack.c.h.b16 %v570
  %v1078 = vunpack.c.l.b16 %v571
  %v1079 = vunpack.c.h.b16 %v571
  %v1080 = vunpack.c.l.b16 %v572
  %v1081 = vunpack.c.h.b16 %v572
  %v1082 = vunpack.c.l.b16 %v573
  %v1083 = vunpack.c.l.b16 %v574
  %v1084 = vunpack.c.h.b16 %v574
  %v1085 = vunpack.c.l.b16 %v575
  %v1086 = vunpack.c.h.b16 %v575
  %v1087 = vunpack.c.l.b16 %v576
  %v1088 = vunpack.c.h.b16 %v576
  %v1089 = vunpack.c.l.b16 %v577
  %v1090 = vunpack.c.l.b16 %v578
  %v1091 = vunpack.c.h.b16 %v578
  %v1092 = vunpack.c.l.b16 %v579
  %v1093 = vunpack.c.h.b16 %v579
  %v1094 = vunpack.c.l.b16 %v580
  %v1095 = vunpack.c.h.b16 %v580
  %v1096 = vunpack.c.l.b16 %v581
  %v1097 = vunpack.c.l.b16 %v582
  %v1098 = vunpack.c.h.b16 %v582
  %v1099 = vunpack.c.l.b16 %v583
  %v1100 = vunpack.c.h.b16 %v583
  %v1101 = vunpack.c.l.b16 %v584
  %v1102 = vunpack.c.h.b16 %v584
  %v1103 = vunpack.c.l.b16 %v585
  %v1104 = vunpack.c.l.b16 %v586
  %v1105 = vunpack.c.h.b16 %v586
  %v1106 = vunpack.c.l.b16 %v587
  %v1107 = vunpack.c.h.b16 %v587
  %v1108 = vunpack.c.l.b16 %v588
  %v1109 = vunpack.c.h.b16 %v588
  %v1110 = vunpack.c.l.b16 %v589
  %v1111 = vunpack.c.l.b16 %v590
  %v1112 = vunpack.c.h.b16 %v590
  %v1113 = vunpack.c.l.b16 %v591
  %v1114 = vunpack.c.h.b16 %v591
  %v1115 = vunpack.c.l.b16 %v592
  %v1116 = vunpack.c.h.b16 %v592
  %v1117 = vunpack.c.l.b16 %v593
  %v1118 = vunpack.c.l.b16 %v594
  %v1119 = vunpack.c.h.b16 %v594
  %v1120 = vunpack.c.l.b16 %v595
  %v1121 = vunpack.c.h.b16 %v595
  %v1122 = vunpack.c.l.b16 %v596
  %v1123 = vunpack.c.h.b16 %v596
  %v1124 = vunpack.c.l.b16 %v597
  %v1125 = vunpack.c.l.b16 %v598
  %v1126 = vunpack.c.h.b16 %v598
  %v1127 = vunpack.c.l.b16 %v599
  %v1128 = vunpack.c.h.b16 %v599
  %v1129 = vunpack.c.l.b16 %v600
  %v1130 = vunpack.c.h.b16 %v600
  %v1131 = vunpack.c.l.b16 %v601
  %v1132 = vunpack.c.l.b16 %v602
  %v1133 = vunpack.c.h.b16 %v602
  %v1134 = vunpack.c.l.b16 %v603
  %v1135 = vunpack.c.h.b16 %v603
  %v1136 = vunpack.c.l.b16 %v604
  %v1137 = vunpack.c.h.b16 %v604
  %v1138 = vunpack.c.l.b16 %v605
  %v1139 = vunpack.c.l.b16 %v606
  %v1140 = vunpack.c.h.b16 %v606
  %v1141 = vunpack.c.l.b16 %v607
  %v1142 = vunpack.c.h.b16 %v607
  %v1143 = vunpack.c.l.b16 %v608
  %v1144 = vunpack.c.h.b16 %v608
  %v1145 = vunpack.c.l.b16 %v609
  %v1146 = vunpack.c.l.b16 %v610
  %v1147 = vunpack.c.h.b16 %v610
  %v1148 = vunpack.c.l.b16 %v611
  %v1149 = vunpack.c.h.b16 %v611
  %v1150 = vunpack.c.l.b16 %v612
  %v1151 = vunpack.c.h.b16 %v612
  %v1152 = vunpack.c.l.b16 %v613
  %v1153 = vunpack.c.l.b16 %v614
  %v1154 = vunpack.c.h.b16 %v614
  %v1155 = vunpack.c.l.b16 %v615
  %v1156 = vunpack.c.h.b16 %v615
  %v1157 = vunpack.c.l.b16 %v616
  %v1158 = vunpack.c.h.b16 %v616
  %v1159 = vunpack.c.l.b16 %v617
  %v1160 = vunpack.c.l.b16 %v618
  %v1161 = vunpack.c.h.b16 %v618
  %v1162 = vunpack.c.l.b16 %v619
  %v1163 = vunpack.c.h.b16 %v619
  %v1164 = vunpack.c.l.b16 %v620
  %v1165 = vunpack.c.h.b16 %v620
  %v1166 = vunpack.c.l.b16 %v621
  %v1167 = vunpack.c.l.b16 %v622
  %v1168 = vunpack.c.h.b16 %v622
  %v1169 = vunpack.c.l.b16 %v623
  %v1170 = vunpack.c.h.b16 %v623
  %v1171 = vunpack.c.l.b16 %v624
  %v1172 = vunpack.c.h.b16 %v624
  %v1173 = vunpack.c.l.b16 %v625
  %v1174 = vunpack.c.l.b16 %v626
  %v1175 = vunpack.c.h.b16 %v626
  %v1176 = vunpack.c.l.b16 %v627
  %v1177 = vunpack.c.h.b16 %v627
  %v1178 = vunpack.c.l.b16 %v628
  %v1179 = vunpack.c.h.b16 %v628
  %v1180 = vunpack.c.l.b16 %v629
  %v1181 = vunpack.c.l.b16 %v630
  %v1182 = vunpack.c.h.b16 %v630
  %v1183 = vunpack.c.l.b16 %v631
  %v1184 = vunpack.c.h.b16 %v631
  %v1185 = vunpack.c.l.b16 %v632
  %v1186 = vunpack.c.h.b16 %v632
  %v1187 = vunpack.c.l.b16 %v633
  %v1188 = vunpack.c.l.b16 %v634
  %v1189 = vunpack.c.h.b16 %v634
  %v1190 = vunpack.c.l.b16 %v635
  %v1191 = vunpack.c.h.b16 %v635
  %v1192 = vunpack.c.l.b16 %v636
  %v1193 = vunpack.c.h.b16 %v636
  %v1194 = vunpack.c.l.b16 %v637
  %v1195 = vunpack.c.l.b16 %v638
  %v1196 = vunpack.c.h.b16 %v638
  %v1197 = vunpack.c.l.b16 %v639
  %v1198 = vunpack.c.h.b16 %v639
  %v1199 = vunpack.c.l.b16 %v640
  %v1200 = vunpack.c.h.b16 %v640
  %v1201 = vunpack.c.l.b16 %v641
  %v1202 = vunpack.c.l.b16 %v642
  %v1203 = vunpack.c.h.b16 %v642
  %v1204 = vunpack.c.l.b16 %v643
  %v1205 = vunpack.c.h.b16 %v643
  %v1206 = vunpack.c.l.b16 %v644
  %v1207 = vunpack.c.h.b16 %v644
  %v1208 = vunpack.c.l.b16 %v645
  %v1209 = vunpack.c.l.b16 %v646
  %v1210 = vunpack.c.h.b16 %v646
  %v1211 = vunpack.c.l.b16 %v647
  %v1212 = vunpack.c.h.b16 %v647
  %v1213 = vunpack.c.l.b16 %v648
  %v1214 = vunpack.c.h.b16 %v648
  %v1215 = vunpack.c.l.b16 %v649
  %v1216 = vpack.c.b16 %v873, %v866
  %v1217 = vpack.c.b16 %v874, %v867
  %v1218 = vpack.c.b16 %v875, %v868
  %v1219 = vpack.c.b16 %v876, %v869
  %v1220 = vpack.c.b16 %v877, %v870
  %v1221 = vpack.c.b16 %v878, %v871
  %v1222 = vpack.c.b16 %v879, %v872
  %v1223 = vpack.c.b16 %v887, %v880
  %v1224 = vpack.c.b16 %v888, %v881
  %v1225 = vpack.c.b16 %v889, %v882
  %v1226 = vpack.c.b16 %v890, %v883
  %v1227 = vpack.c.b16 %v891, %v884
  %v1228 = vpack.c.b16 %v892, %v885
  %v1229 = vpack.c.b16 %v893, %v886
  %v1230 = vpack.c.b16 %v901, %v894
  %v1231 = vpack.c.b16 %v902, %v895
  %v1232 = vpack.c.b16 %v903, %v896
  %v1233 = vpack.c.b16 %v904, %v897
  %v1234 = vpack.c.b16 %v905, %v898
  %v1235 = vpack.c.b16 %v906, %v899
  %v1236 = vpack.c.b16 %v907, %v900
  %v1237 = vpack.c.b16 %v915, %v908
  %v1238 = vpack.c.b16 %v916, %v909
  %v1239 = vpack.c.b16 %v917, %v910
  %v1240 = vpack.c.b16 %v918, %v911
  %v1241 = vpack.c.b16 %v919, %v912
  %v1242 = vpack.c.b16 %v920, %v913
  %v1243 = vpack.c.b16 %v921, %v914
  %v1244 = vpack.c.b16 %v929, %v922
  %v1245 = vpack.c.b16 %v930, %v923
  %v1246 = vpack.c.b16 %v931, %v924
  %v1247 = vpack.c.b16 %v932, %v925
  %v1248 = vpack.c.b16 %v933, %v926
  %v1249 = vpack.c.b16 %v934, %v927
  %v1250 = vpack.c.b16 %v935, %v928
  %v1251 = vpack.c.b16 %v943, %v936
  %v1252 = vpack.c.b16 %v944, %v937
  %v1253 = vpack.c.b16 %v945, %v938
  %v1254 = vpack.c.b16 %v946, %v939
  %v1255 = vpack.c.b16 %v947, %v940
  %v1256 = vpack.c.b16 %v948, %v941
  %v1257 = vpack.c.b16 %v949, %v942
  %v1258 = vpack.c.b16 %v957, %v950
  %v1259 = vpack.c.b16 %v958, %v951
  %v1260 = vpack.c.b16 %v959, %v952
  %v1261 = vpack.c.b16 %v960, %v953
  %v1262 = vpack.c.b16 %v961, %v954
  %v1263 = vpack.c.b16 %v962, %v955
  %v1264 = vpack.c.b16 %v963, %v956
  %v1265 = vpack.c.b16 %v971, %v964
  %v1266 = vpack.c.b16 %v972, %v965
  %v1267 = vpack.c.b16 %v973, %v966
  %v1268 = vpack.c.b16 %v974, %v967
  %v1269 = vpack.c.b16 %v975, %v968
  %v1270 = vpack.c.b16 %v976, %v969
  %v1271 = vpack.c.b16 %v977, %v970
  %v1272 = vpack.c.b16 %v985, %v978
  %v1273 = vpack.c.b16 %v986, %v979
  %v1274 = vpack.c.b16 %v987, %v980
  %v1275 = vpack.c.b16 %v988, %v981
  %v1276 = vpack.c.b16 %v989, %v982
  %v1277 = vpack.c.b16 %v990, %v983
  %v1278 = vpack.c.b16 %v991, %v984
  %v1279 = vpack.c.b16 %v999, %v992
  %v1280 = vpack.c.b16 %v1000, %v993
  %v1281 = vpack.c.b16 %v1001, %v994
  %v1282 = vpack.c.b16 %v1002, %v995
  %v1283 = vpack.c.b16 %v1003, %v996
  %v1284 = vpack.c.b16 %v1004, %v997
  %v1285 = vpack.c.b16 %v1005, %v998
  %v1286 = vpack.c.b16 %v1013, %v1006
  %v1287 = vpack.c.b16 %v1014, %v1007
  %v1288 = vpack.c.b16 %v1015, %v1008
  %v1289 = vpack.c.b16 %v1016, %v1009
  %v1290 = vpack.c.b16 %v1017, %v1010
  %v1291 = vpack.c.b16 %v1018, %v1011
  %v1292 = vpack.c.b16 %v1019, %v1012
  %v1293 = vpack.c.b16 %v1027, %v1020
  %v1294 = vpack.c.b16 %v1028, %v1021
  %v1295 = vpack.c.b16 %v1029, %v1022
  %v1296 = vpack.c.b16 %v1030, %v1023
  %v1297 = vpack.c.b16 %v1031, %v1024
  %v1298 = vpack.c.b16 %v1032, %v1025
  %v1299 = vpack.c.b16 %v1033, %v1026
  %v1300 = vpack.c.b16 %v1041, %v1034
  %v1301 = vpack.c.b16 %v1042, %v1035
  %v1302 = vpack.c.b16 %v1043, %v1036
  %v1303 = vpack.c.b16 %v1044, %v1037
  %v1304 = vpack.c.b16 %v1045, %v1038
  %v1305 = vpack.c.b16 %v1046, %v1039
  %v1306 = vpack.c.b16 %v1047, %v1040
  %v1307 = vpack.c.b16 %v1055, %v1048
  %v1308 = vpack.c.b16 %v1056, %v1049
  %v1309 = vpack.c.b16 %v1057, %v1050
  %v1310 = vpack.c.b16 %v1058, %v1051
  %v1311 = vpack.c.b16 %v1059, %v1052
  %v1312 = vpack.c.b16 %v1060, %v1053
  %v1313 = vpack.c.b16 %v1061, %v1054
  %v1314 = vpack.c.b16 %v1069, %v1062
  %v1315 = vpack.c.b16 %v1070, %v1063
  %v1316 = vpack.c.b16 %v1071, %v1064
  %v1317 = vpack.c.b16 %v1072, %v1065
  %v1318 = vpack.c.b16 %v1073, %v1066
  %v1319 = vpack.c.b16 %v1074, %v1067
  %v1320 = vpack.c.b16 %v1075, %v1068
  %v1321 = vpack.c.b16 %v1083, %v1076
  %v1322 = vpack.c.b16 %v1084, %v1077
  %v1323 = vpack.c.b16 %v1085, %v1078
  %v1324 = vpack.c.b16 %v1086, %v1079
  %v1325 = vpack.c.b16 %v1087, %v1080
  %v1326 = vpack.c.b16 %v1088, %v1081
  %v1327 = vpack.c.b16 %v1089, %v1082
  %v1328 = vpack.c.b16 %v1097, %v1090
  %v1329 = vpack.c.b16 %v1098, %v1091
  %v1330 = vpack.c.b16 %v1099, %v1092
  %v1331 = vpack.c.b16 %v1100, %v1093
  %v1332 = vpack.c.b16 %v1101, %v1094
  %v1333 = vpack.c.b16 %v1102, %v1095
  %v1334 = vpack.c.b16 %v1103, %v1096
  %v1335 = vpack.c.b16 %v1111, %v1104
  %v1336 = vpack.c.b16 %v1112, %v1105
  %v1337 = vpack.c.b16 %v1113, %v1106
  %v1338 = vpack.c.b16 %v1114, %v1107
  %v1339 = vpack.c.b16 %v1115, %v1108
  %v1340 = vpack.c.b16 %v1116, %v1109
  %v1341 = vpack.c.b16 %v1117, %v1110
  %v1342 = vpack.c.b16 %v1125, %v1118
  %v1343 = vpack.c.b16 %v1126, %v1119
  %v1344 = vpack.c.b16 %v1127, %v1120
  %v1345 = vpack.c.b16 %v1128, %v1121
  %v1346 = vpack.c.b16 %v1129, %v1122
  %v1347 = vpack.c.b16 %v1130, %v1123
  %v1348 = vpack.c.b16 %v1131, %v1124
  %v1349 = vpack.c.b16 %v1139, %v1132
  %v1350 = vpack.c.b16 %v1140, %v1133
  %v1351 = vpack.c.b16 %v1141, %v1134
  %v1352 = vpack.c.b16 %v1142, %v1135
  %v1353 = vpack.c.b16 %v1143, %v1136
  %v1354 = vpack.c.b16 %v1144, %v1137
  %v1355 = vpack.c.b16 %v1145, %v1138
  %v1356 = vpack.c.b16 %v1153, %v1146
  %v1357 = vpack.c.b16 %v1154, %v1147
  %v1358 = vpack.c.b16 %v1155, %v1148
  %v1359 = vpack.c.b16 %v1156, %v1149
  %v1360 = vpack.c.b16 %v1157, %v1150
  %v1361 = vpack.c.b16 %v1158, %v1151
  %v1362 = vpack.c.b16 %v1159, %v1152
  %v1363 = vpack.c.b16 %v1167, %v1160
  %v1364 = vpack.c.b16 %v1168, %v1161
  %v1365 = vpack.c.b16 %v1169, %v1162
  %v1366 = vpack.c.b16 %v1170, %v1163
  %v1367 = vpack.c.b16 %v1171, %v1164
  %v1368 = vpack.c.b16 %v1172, %v1165
  %v1369 = vpack.c.b16 %v1173, %v1166
  %v1370 = vpack.c.b16 %v1181, %v1174
  %v1371 = vpack.c.b16 %v1182, %v1175
  %v1372 = vpack.c.b16 %v1183, %v1176
  %v1373 = vpack.c.b16 %v1184, %v1177
  %v1374 = vpack.c.b16 %v1185, %v1178
  %v1375 = vpack.c.b16 %v1186, %v1179
  %v1376 = vpack.c.b16 %v1187, %v1180
  %v1377 = vpack.c.b16 %v1195, %v1188
  %v1378 = vpack.c.b16 %v1196, %v1189
  %v1379 = vpack.c.b16 %v1197, %v1190
  %v1380 = vpack.c.b16 %v1198, %v1191
  %v1381 = vpack.c.b16 %v1199, %v1192
  %v1382 = vpack.c.b16 %v1200, %v1193
  %v1383 = vpack.c.b16 %v1201, %v1194
  %v1384 = vpack.c.b16 %v1209, %v1202
  %v1385 = vpack.c.b16 %v1210, %v1203
  %v1386 = vpack.c.b16 %v1211, %v1204
  %v1387 = vpack.c.b16 %v1212, %v1205
  %v1388 = vpack.c.b16 %v1213, %v1206
  %v1389 = vpack.c.b16 %v1214, %v1207
  %v1390 = vpack.c.b16 %v1215, %v1208
  %vm1566 = vcmask 130048
  %v1568 = vsel %vm1566, %v421, 0
  %v1571 = vsel %vm1566, %v425, 0
  %v1574 = vsel %vm1566, %v429, 0
  %v1577 = vsel %vm1566, %v433, 0
  %v1580 = vsel %vm1566, %v437, 0
  %v1583 = vsel %vm1566, %v441, 0
  %v1586 = vsel %vm1566, %v445, 0
  %v1589 = vsel %vm1566, %v449, 0
  %1591 = vmatpush.bf16.msra.mxu0 %v1265
  %1592 = vmatpush.bf16.msra.mxu0 %v1258
  %1593 = vmatpush.bf16.msra.mxu0 %v1251
  %1594 = vmatpush.bf16.msra.mxu0 %v1244
  %1595 = vmatpush.bf16.msra.mxu0 %v1237
  %1596 = vmatpush.bf16.msra.mxu0 %v1230
  %1597 = vmatpush.bf16.msra.mxu0 %v1223
  %1598 = vmatpush.bf16.msra.mxu0 %v1216
  %1599 = vmatmul.bf16.gmra.mxu0 %v418
  %v1600 = vpop.f32.mrf.mxu0
  %v1601 = vadd.f32 %v652, %v1600
  %v1602 = vpop.f32.mrf.mxu0
  %v1603 = vadd.f32 %v652, %v1602
  %1604 = vmatmul.bf16.gmra.mxu0 %v422
  %v1605 = vpop.f32.mrf.mxu0
  %v1606 = vadd.f32 %v652, %v1605
  %v1607 = vpop.f32.mrf.mxu0
  %v1608 = vadd.f32 %v652, %v1607
  %1609 = vmatmul.bf16.gmra.mxu0 %v426
  %v1610 = vpop.f32.mrf.mxu0
  %v1611 = vadd.f32 %v652, %v1610
  %v1612 = vpop.f32.mrf.mxu0
  %v1613 = vadd.f32 %v652, %v1612
  %1614 = vmatmul.bf16.gmra.mxu0 %v430
  %v1615 = vpop.f32.mrf.mxu0
  %v1616 = vadd.f32 %v652, %v1615
  %v1617 = vpop.f32.mrf.mxu0
  %v1618 = vadd.f32 %v652, %v1617
  %1619 = vmatmul.bf16.gmra.mxu0 %v434
  %v1620 = vpop.f32.mrf.mxu0
  %v1621 = vadd.f32 %v652, %v1620
  %v1622 = vpop.f32.mrf.mxu0
  %v1623 = vadd.f32 %v652, %v1622
  %1624 = vmatmul.bf16.gmra.mxu0 %v438
  %v1625 = vpop.f32.mrf.mxu0
  %v1626 = vadd.f32 %v652, %v1625
  %v1627 = vpop.f32.mrf.mxu0
  %v1628 = vadd.f32 %v652, %v1627
  %1629 = vmatmul.bf16.gmra.mxu0 %v442
  %v1630 = vpop.f32.mrf.mxu0
  %v1631 = vadd.f32 %v652, %v1630
  %v1632 = vpop.f32.mrf.mxu0
  %v1633 = vadd.f32 %v652, %v1632
  %1634 = vmatmul.bf16.gmra.mxu0 %v446
  %v1635 = vpop.f32.mrf.mxu0
  %v1636 = vadd.f32 %v652, %v1635
  %v1637 = vpop.f32.mrf.mxu0
  %v1638 = vadd.f32 %v652, %v1637
  %1639 = vdwg.mxu0
  %1640 = vmatpush.bf16.msra.mxu0 %v1321
  %1641 = vmatpush.bf16.msra.mxu0 %v1314
  %1642 = vmatpush.bf16.msra.mxu0 %v1307
  %1643 = vmatpush.bf16.msra.mxu0 %v1300
  %1644 = vmatpush.bf16.msra.mxu0 %v1293
  %1645 = vmatpush.bf16.msra.mxu0 %v1286
  %1646 = vmatpush.bf16.msra.mxu0 %v1279
  %1647 = vmatpush.bf16.msra.mxu0 %v1272
  %1648 = vmatmul.bf16.gmra.mxu0 %v419
  %v1649 = vpop.f32.mrf.mxu0
  %v1650 = vadd.f32 %v1601, %v1649
  %v1651 = vpop.f32.mrf.mxu0
  %v1652 = vadd.f32 %v1603, %v1651
  %1653 = vmatmul.bf16.gmra.mxu0 %v423
  %v1654 = vpop.f32.mrf.mxu0
  %v1655 = vadd.f32 %v1606, %v1654
  %v1656 = vpop.f32.mrf.mxu0
  %v1657 = vadd.f32 %v1608, %v1656
  %1658 = vmatmul.bf16.gmra.mxu0 %v427
  %v1659 = vpop.f32.mrf.mxu0
  %v1660 = vadd.f32 %v1611, %v1659
  %v1661 = vpop.f32.mrf.mxu0
  %v1662 = vadd.f32 %v1613, %v1661
  %1663 = vmatmul.bf16.gmra.mxu0 %v431
  %v1664 = vpop.f32.mrf.mxu0
  %v1665 = vadd.f32 %v1616, %v1664
  %v1666 = vpop.f32.mrf.mxu0
  %v1667 = vadd.f32 %v1618, %v1666
  %1668 = vmatmul.bf16.gmra.mxu0 %v435
  %v1669 = vpop.f32.mrf.mxu0
  %v1670 = vadd.f32 %v1621, %v1669
  %v1671 = vpop.f32.mrf.mxu0
  %v1672 = vadd.f32 %v1623, %v1671
  %1673 = vmatmul.bf16.gmra.mxu0 %v439
  %v1674 = vpop.f32.mrf.mxu0
  %v1675 = vadd.f32 %v1626, %v1674
  %v1676 = vpop.f32.mrf.mxu0
  %v1677 = vadd.f32 %v1628, %v1676
  %1678 = vmatmul.bf16.gmra.mxu0 %v443
  %v1679 = vpop.f32.mrf.mxu0
  %v1680 = vadd.f32 %v1631, %v1679
  %v1681 = vpop.f32.mrf.mxu0
  %v1682 = vadd.f32 %v1633, %v1681
  %1683 = vmatmul.bf16.gmra.mxu0 %v447
  %v1684 = vpop.f32.mrf.mxu0
  %v1685 = vadd.f32 %v1636, %v1684
  %v1686 = vpop.f32.mrf.mxu0
  %v1687 = vadd.f32 %v1638, %v1686
  %1688 = vdwg.mxu0
  %1689 = vmatpush.bf16.msra.mxu0 %v1377
  %1690 = vmatpush.bf16.msra.mxu0 %v1370
  %1691 = vmatpush.bf16.msra.mxu0 %v1363
  %1692 = vmatpush.bf16.msra.mxu0 %v1356
  %1693 = vmatpush.bf16.msra.mxu0 %v1349
  %1694 = vmatpush.bf16.msra.mxu0 %v1342
  %1695 = vmatpush.bf16.msra.mxu0 %v1335
  %1696 = vmatpush.bf16.msra.mxu0 %v1328
  %1697 = vmatmul.bf16.gmra.mxu0 %v420
  %v1698 = vpop.f32.mrf.mxu0
  %v1699 = vadd.f32 %v1650, %v1698
  %v1700 = vpop.f32.mrf.mxu0
  %v1701 = vadd.f32 %v1652, %v1700
  %1702 = vmatmul.bf16.gmra.mxu0 %v424
  %v1703 = vpop.f32.mrf.mxu0
  %v1704 = vadd.f32 %v1655, %v1703
  %v1705 = vpop.f32.mrf.mxu0
  %v1706 = vadd.f32 %v1657, %v1705
  %1707 = vmatmul.bf16.gmra.mxu0 %v428
  %v1708 = vpop.f32.mrf.mxu0
  %v1709 = vadd.f32 %v1660, %v1708
  %v1710 = vpop.f32.mrf.mxu0
  %v1711 = vadd.f32 %v1662, %v1710
  %1712 = vmatmul.bf16.gmra.mxu0 %v432
  %v1713 = vpop.f32.mrf.mxu0
  %v1714 = vadd.f32 %v1665, %v1713
  %v1715 = vpop.f32.mrf.mxu0
  %v1716 = vadd.f32 %v1667, %v1715
  %1717 = vmatmul.bf16.gmra.mxu0 %v436
  %v1718 = vpop.f32.mrf.mxu0
  %v1719 = vadd.f32 %v1670, %v1718
  %v1720 = vpop.f32.mrf.mxu0
  %v1721 = vadd.f32 %v1672, %v1720
  %1722 = vmatmul.bf16.gmra.mxu0 %v440
  %v1723 = vpop.f32.mrf.mxu0
  %v1724 = vadd.f32 %v1675, %v1723
  %v1725 = vpop.f32.mrf.mxu0
  %v1726 = vadd.f32 %v1677, %v1725
  %1727 = vmatmul.bf16.gmra.mxu0 %v444
  %v1728 = vpop.f32.mrf.mxu0
  %v1729 = vadd.f32 %v1680, %v1728
  %v1730 = vpop.f32.mrf.mxu0
  %v1731 = vadd.f32 %v1682, %v1730
  %1732 = vmatmul.bf16.gmra.mxu0 %v448
  %v1733 = vpop.f32.mrf.mxu0
  %v1734 = vadd.f32 %v1685, %v1733
  %v1735 = vpop.f32.mrf.mxu0
  %v1736 = vadd.f32 %v1687, %v1735
  %1737 = vdwg.mxu0
  %1738 = vmatpush.bf16.msra.mxu0 0
  %1739 = vmatpush.bf16.msra.mxu0 0
  %1740 = vmatpush.bf16.msra.mxu0 0
  %1741 = vmatpush.bf16.msra.mxu0 0
  %1742 = vmatpush.bf16.msra.mxu0 0
  %1743 = vmatpush.bf16.msra.mxu0 0
  %1744 = vmatpush.bf16.msra.mxu0 0
  %1745 = vmatpush.bf16.msra.mxu0 %v1384
  %1746 = vmatmul.bf16.gmra.mxu0 %v1568
  %v1747 = vpop.f32.mrf.mxu0
  %v1748 = vadd.f32 %v1699, %v1747
  %v1749 = vpop.f32.mrf.mxu0
  %v1750 = vadd.f32 %v1701, %v1749
  %1751 = vmatmul.bf16.gmra.mxu0 %v1571
  %v1752 = vpop.f32.mrf.mxu0
  %v1753 = vadd.f32 %v1704, %v1752
  %v1754 = vpop.f32.mrf.mxu0
  %v1755 = vadd.f32 %v1706, %v1754
  %1756 = vmatmul.bf16.gmra.mxu0 %v1574
  %v1757 = vpop.f32.mrf.mxu0
  %v1758 = vadd.f32 %v1709, %v1757
  %v1759 = vpop.f32.mrf.mxu0
  %v1760 = vadd.f32 %v1711, %v1759
  %1761 = vmatmul.bf16.gmra.mxu0 %v1577
  %v1762 = vpop.f32.mrf.mxu0
  %v1763 = vadd.f32 %v1714, %v1762
  %v1764 = vpop.f32.mrf.mxu0
  %v1765 = vadd.f32 %v1716, %v1764
  %1766 = vmatmul.bf16.gmra.mxu0 %v1580
  %v1767 = vpop.f32.mrf.mxu0
  %v1768 = vadd.f32 %v1719, %v1767
  %v1769 = vpop.f32.mrf.mxu0
  %v1770 = vadd.f32 %v1721, %v1769
  %1771 = vmatmul.bf16.gmra.mxu0 %v1583
  %v1772 = vpop.f32.mrf.mxu0
  %v1773 = vadd.f32 %v1724, %v1772
  %v1774 = vpop.f32.mrf.mxu0
  %v1775 = vadd.f32 %v1726, %v1774
  %1776 = vmatmul.bf16.gmra.mxu0 %v1586
  %v1777 = vpop.f32.mrf.mxu0
  %v1778 = vadd.f32 %v1729, %v1777
  %v1779 = vpop.f32.mrf.mxu0
  %v1780 = vadd.f32 %v1731, %v1779
  %1781 = vmatmul.bf16.gmra.mxu0 %v1589
  %v1782 = vpop.f32.mrf.mxu0
  %v1783 = vadd.f32 %v1734, %v1782
  %v1784 = vpop.f32.mrf.mxu0
  %v1785 = vadd.f32 %v1736, %v1784
  %1786 = vdwg.mxu0
  %1787 = vmatpush.bf16.msra.mxu0 %v1266
  %1788 = vmatpush.bf16.msra.mxu0 %v1259
  %1789 = vmatpush.bf16.msra.mxu0 %v1252
  %1790 = vmatpush.bf16.msra.mxu0 %v1245
  %1791 = vmatpush.bf16.msra.mxu0 %v1238
  %1792 = vmatpush.bf16.msra.mxu0 %v1231
  %1793 = vmatpush.bf16.msra.mxu0 %v1224
  %1794 = vmatpush.bf16.msra.mxu0 %v1217
  %1795 = vmatmul.bf16.gmra.mxu0 %v418
  %v1796 = vpop.f32.mrf.mxu0
  %v1797 = vadd.f32 %v653, %v1796
  %v1798 = vpop.f32.mrf.mxu0
  %v1799 = vadd.f32 %v653, %v1798
  %1800 = vmatmul.bf16.gmra.mxu0 %v422
  %v1801 = vpop.f32.mrf.mxu0
  %v1802 = vadd.f32 %v653, %v1801
  %v1803 = vpop.f32.mrf.mxu0
  %v1804 = vadd.f32 %v653, %v1803
  %1805 = vmatmul.bf16.gmra.mxu0 %v426
  %v1806 = vpop.f32.mrf.mxu0
  %v1807 = vadd.f32 %v653, %v1806
  %v1808 = vpop.f32.mrf.mxu0
  %v1809 = vadd.f32 %v653, %v1808
  %1810 = vmatmul.bf16.gmra.mxu0 %v430
  %v1811 = vpop.f32.mrf.mxu0
  %v1812 = vadd.f32 %v653, %v1811
  %v1813 = vpop.f32.mrf.mxu0
  %v1814 = vadd.f32 %v653, %v1813
  %1815 = vmatmul.bf16.gmra.mxu0 %v434
  %v1816 = vpop.f32.mrf.mxu0
  %v1817 = vadd.f32 %v653, %v1816
  %v1818 = vpop.f32.mrf.mxu0
  %v1819 = vadd.f32 %v653, %v1818
  %1820 = vmatmul.bf16.gmra.mxu0 %v438
  %v1821 = vpop.f32.mrf.mxu0
  %v1822 = vadd.f32 %v653, %v1821
  %v1823 = vpop.f32.mrf.mxu0
  %v1824 = vadd.f32 %v653, %v1823
  %1825 = vmatmul.bf16.gmra.mxu0 %v442
  %v1826 = vpop.f32.mrf.mxu0
  %v1827 = vadd.f32 %v653, %v1826
  %v1828 = vpop.f32.mrf.mxu0
  %v1829 = vadd.f32 %v653, %v1828
  %1830 = vmatmul.bf16.gmra.mxu0 %v446
  %v1831 = vpop.f32.mrf.mxu0
  %v1832 = vadd.f32 %v653, %v1831
  %v1833 = vpop.f32.mrf.mxu0
  %v1834 = vadd.f32 %v653, %v1833
  %1835 = vdwg.mxu0
  %1836 = vmatpush.bf16.msra.mxu0 %v1322
  %1837 = vmatpush.bf16.msra.mxu0 %v1315
  %1838 = vmatpush.bf16.msra.mxu0 %v1308
  %1839 = vmatpush.bf16.msra.mxu0 %v1301
  %1840 = vmatpush.bf16.msra.mxu0 %v1294
  %1841 = vmatpush.bf16.msra.mxu0 %v1287
  %1842 = vmatpush.bf16.msra.mxu0 %v1280
  %1843 = vmatpush.bf16.msra.mxu0 %v1273
  %1844 = vmatmul.bf16.gmra.mxu0 %v419
  %v1845 = vpop.f32.mrf.mxu0
  %v1846 = vadd.f32 %v1797, %v1845
  %v1847 = vpop.f32.mrf.mxu0
  %v1848 = vadd.f32 %v1799, %v1847
  %1849 = vmatmul.bf16.gmra.mxu0 %v423
  %v1850 = vpop.f32.mrf.mxu0
  %v1851 = vadd.f32 %v1802, %v1850
  %v1852 = vpop.f32.mrf.mxu0
  %v1853 = vadd.f32 %v1804, %v1852
  %1854 = vmatmul.bf16.gmra.mxu0 %v427
  %v1855 = vpop.f32.mrf.mxu0
  %v1856 = vadd.f32 %v1807, %v1855
  %v1857 = vpop.f32.mrf.mxu0
  %v1858 = vadd.f32 %v1809, %v1857
  %1859 = vmatmul.bf16.gmra.mxu0 %v431
  %v1860 = vpop.f32.mrf.mxu0
  %v1861 = vadd.f32 %v1812, %v1860
  %v1862 = vpop.f32.mrf.mxu0
  %v1863 = vadd.f32 %v1814, %v1862
  %1864 = vmatmul.bf16.gmra.mxu0 %v435
  %v1865 = vpop.f32.mrf.mxu0
  %v1866 = vadd.f32 %v1817, %v1865
  %v1867 = vpop.f32.mrf.mxu0
  %v1868 = vadd.f32 %v1819, %v1867
  %1869 = vmatmul.bf16.gmra.mxu0 %v439
  %v1870 = vpop.f32.mrf.mxu0
  %v1871 = vadd.f32 %v1822, %v1870
  %v1872 = vpop.f32.mrf.mxu0
  %v1873 = vadd.f32 %v1824, %v1872
  %1874 = vmatmul.bf16.gmra.mxu0 %v443
  %v1875 = vpop.f32.mrf.mxu0
  %v1876 = vadd.f32 %v1827, %v1875
  %v1877 = vpop.f32.mrf.mxu0
  %v1878 = vadd.f32 %v1829, %v1877
  %1879 = vmatmul.bf16.gmra.mxu0 %v447
  %v1880 = vpop.f32.mrf.mxu0
  %v1881 = vadd.f32 %v1832, %v1880
  %v1882 = vpop.f32.mrf.mxu0
  %v1883 = vadd.f32 %v1834, %v1882
  %1884 = vdwg.mxu0
  %1885 = vmatpush.bf16.msra.mxu0 %v1378
  %1886 = vmatpush.bf16.msra.mxu0 %v1371
  %1887 = vmatpush.bf16.msra.mxu0 %v1364
  %1888 = vmatpush.bf16.msra.mxu0 %v1357
  %1889 = vmatpush.bf16.msra.mxu0 %v1350
  %1890 = vmatpush.bf16.msra.mxu0 %v1343
  %1891 = vmatpush.bf16.msra.mxu0 %v1336
  %1892 = vmatpush.bf16.msra.mxu0 %v1329
  %1893 = vmatmul.bf16.gmra.mxu0 %v420
  %v1894 = vpop.f32.mrf.mxu0
  %v1895 = vadd.f32 %v1846, %v1894
  %v1896 = vpop.f32.mrf.mxu0
  %v1897 = vadd.f32 %v1848, %v1896
  %1898 = vmatmul.bf16.gmra.mxu0 %v424
  %v1899 = vpop.f32.mrf.mxu0
  %v1900 = vadd.f32 %v1851, %v1899
  %v1901 = vpop.f32.mrf.mxu0
  %v1902 = vadd.f32 %v1853, %v1901
  %1903 = vmatmul.bf16.gmra.mxu0 %v428
  %v1904 = vpop.f32.mrf.mxu0
  %v1905 = vadd.f32 %v1856, %v1904
  %v1906 = vpop.f32.mrf.mxu0
  %v1907 = vadd.f32 %v1858, %v1906
  %1908 = vmatmul.bf16.gmra.mxu0 %v432
  %v1909 = vpop.f32.mrf.mxu0
  %v1910 = vadd.f32 %v1861, %v1909
  %v1911 = vpop.f32.mrf.mxu0
  %v1912 = vadd.f32 %v1863, %v1911
  %1913 = vmatmul.bf16.gmra.mxu0 %v436
  %v1914 = vpop.f32.mrf.mxu0
  %v1915 = vadd.f32 %v1866, %v1914
  %v1916 = vpop.f32.mrf.mxu0
  %v1917 = vadd.f32 %v1868, %v1916
  %1918 = vmatmul.bf16.gmra.mxu0 %v440
  %v1919 = vpop.f32.mrf.mxu0
  %v1920 = vadd.f32 %v1871, %v1919
  %v1921 = vpop.f32.mrf.mxu0
  %v1922 = vadd.f32 %v1873, %v1921
  %1923 = vmatmul.bf16.gmra.mxu0 %v444
  %v1924 = vpop.f32.mrf.mxu0
  %v1925 = vadd.f32 %v1876, %v1924
  %v1926 = vpop.f32.mrf.mxu0
  %v1927 = vadd.f32 %v1878, %v1926
  %1928 = vmatmul.bf16.gmra.mxu0 %v448
  %v1929 = vpop.f32.mrf.mxu0
  %v1930 = vadd.f32 %v1881, %v1929
  %v1931 = vpop.f32.mrf.mxu0
  %v1932 = vadd.f32 %v1883, %v1931
  %1933 = vdwg.mxu0
  %1934 = vmatpush.bf16.msra.mxu0 0
  %1935 = vmatpush.bf16.msra.mxu0 0
  %1936 = vmatpush.bf16.msra.mxu0 0
  %1937 = vmatpush.bf16.msra.mxu0 0
  %1938 = vmatpush.bf16.msra.mxu0 0
  %1939 = vmatpush.bf16.msra.mxu0 0
  %1940 = vmatpush.bf16.msra.mxu0 0
  %1941 = vmatpush.bf16.msra.mxu0 %v1385
  %1942 = vmatmul.bf16.gmra.mxu0 %v1568
  %v1943 = vpop.f32.mrf.mxu0
  %v1944 = vadd.f32 %v1895, %v1943
  %v1945 = vpop.f32.mrf.mxu0
  %v1946 = vadd.f32 %v1897, %v1945
  %1947 = vmatmul.bf16.gmra.mxu0 %v1571
  %v1948 = vpop.f32.mrf.mxu0
  %v1949 = vadd.f32 %v1900, %v1948
  %v1950 = vpop.f32.mrf.mxu0
  %v1951 = vadd.f32 %v1902, %v1950
  %1952 = vmatmul.bf16.gmra.mxu0 %v1574
  %v1953 = vpop.f32.mrf.mxu0
  %v1954 = vadd.f32 %v1905, %v1953
  %v1955 = vpop.f32.mrf.mxu0
  %v1956 = vadd.f32 %v1907, %v1955
  %1957 = vmatmul.bf16.gmra.mxu0 %v1577
  %v1958 = vpop.f32.mrf.mxu0
  %v1959 = vadd.f32 %v1910, %v1958
  %v1960 = vpop.f32.mrf.mxu0
  %v1961 = vadd.f32 %v1912, %v1960
  %1962 = vmatmul.bf16.gmra.mxu0 %v1580
  %v1963 = vpop.f32.mrf.mxu0
  %v1964 = vadd.f32 %v1915, %v1963
  %v1965 = vpop.f32.mrf.mxu0
  %v1966 = vadd.f32 %v1917, %v1965
  %1967 = vmatmul.bf16.gmra.mxu0 %v1583
  %v1968 = vpop.f32.mrf.mxu0
  %v1969 = vadd.f32 %v1920, %v1968
  %v1970 = vpop.f32.mrf.mxu0
  %v1971 = vadd.f32 %v1922, %v1970
  %1972 = vmatmul.bf16.gmra.mxu0 %v1586
  %v1973 = vpop.f32.mrf.mxu0
  %v1974 = vadd.f32 %v1925, %v1973
  %v1975 = vpop.f32.mrf.mxu0
  %v1976 = vadd.f32 %v1927, %v1975
  %1977 = vmatmul.bf16.gmra.mxu0 %v1589
  %v1978 = vpop.f32.mrf.mxu0
  %v1979 = vadd.f32 %v1930, %v1978
  %v1980 = vpop.f32.mrf.mxu0
  %v1981 = vadd.f32 %v1932, %v1980
  %1982 = vdwg.mxu0
  %1983 = vmatpush.bf16.msra.mxu0 %v1267
  %1984 = vmatpush.bf16.msra.mxu0 %v1260
  %1985 = vmatpush.bf16.msra.mxu0 %v1253
  %1986 = vmatpush.bf16.msra.mxu0 %v1246
  %1987 = vmatpush.bf16.msra.mxu0 %v1239
  %1988 = vmatpush.bf16.msra.mxu0 %v1232
  %1989 = vmatpush.bf16.msra.mxu0 %v1225
  %1990 = vmatpush.bf16.msra.mxu0 %v1218
  %1991 = vmatmul.bf16.gmra.mxu0 %v418
  %v1992 = vpop.f32.mrf.mxu0
  %v1993 = vadd.f32 %v654, %v1992
  %v1994 = vpop.f32.mrf.mxu0
  %v1995 = vadd.f32 %v654, %v1994
  %1996 = vmatmul.bf16.gmra.mxu0 %v422
  %v1997 = vpop.f32.mrf.mxu0
  %v1998 = vadd.f32 %v654, %v1997
  %v1999 = vpop.f32.mrf.mxu0
  %v2000 = vadd.f32 %v654, %v1999
  %2001 = vmatmul.bf16.gmra.mxu0 %v426
  %v2002 = vpop.f32.mrf.mxu0
  %v2003 = vadd.f32 %v654, %v2002
  %v2004 = vpop.f32.mrf.mxu0
  %v2005 = vadd.f32 %v654, %v2004
  %2006 = vmatmul.bf16.gmra.mxu0 %v430
  %v2007 = vpop.f32.mrf.mxu0
  %v2008 = vadd.f32 %v654, %v2007
  %v2009 = vpop.f32.mrf.mxu0
  %v2010 = vadd.f32 %v654, %v2009
  %2011 = vmatmul.bf16.gmra.mxu0 %v434
  %v2012 = vpop.f32.mrf.mxu0
  %v2013 = vadd.f32 %v654, %v2012
  %v2014 = vpop.f32.mrf.mxu0
  %v2015 = vadd.f32 %v654, %v2014
  %2016 = vmatmul.bf16.gmra.mxu0 %v438
  %v2017 = vpop.f32.mrf.mxu0
  %v2018 = vadd.f32 %v654, %v2017
  %v2019 = vpop.f32.mrf.mxu0
  %v2020 = vadd.f32 %v654, %v2019
  %2021 = vmatmul.bf16.gmra.mxu0 %v442
  %v2022 = vpop.f32.mrf.mxu0
  %v2023 = vadd.f32 %v654, %v2022
  %v2024 = vpop.f32.mrf.mxu0
  %v2025 = vadd.f32 %v654, %v2024
  %2026 = vmatmul.bf16.gmra.mxu0 %v446
  %v2027 = vpop.f32.mrf.mxu0
  %v2028 = vadd.f32 %v654, %v2027
  %v2029 = vpop.f32.mrf.mxu0
  %v2030 = vadd.f32 %v654, %v2029
  %2031 = vdwg.mxu0
  %2032 = vmatpush.bf16.msra.mxu0 %v1323
  %2033 = vmatpush.bf16.msra.mxu0 %v1316
  %2034 = vmatpush.bf16.msra.mxu0 %v1309
  %2035 = vmatpush.bf16.msra.mxu0 %v1302
  %2036 = vmatpush.bf16.msra.mxu0 %v1295
  %2037 = vmatpush.bf16.msra.mxu0 %v1288
  %2038 = vmatpush.bf16.msra.mxu0 %v1281
  %2039 = vmatpush.bf16.msra.mxu0 %v1274
  %2040 = vmatmul.bf16.gmra.mxu0 %v419
  %v2041 = vpop.f32.mrf.mxu0
  %v2042 = vadd.f32 %v1993, %v2041
  %v2043 = vpop.f32.mrf.mxu0
  %v2044 = vadd.f32 %v1995, %v2043
  %2045 = vmatmul.bf16.gmra.mxu0 %v423
  %v2046 = vpop.f32.mrf.mxu0
  %v2047 = vadd.f32 %v1998, %v2046
  %v2048 = vpop.f32.mrf.mxu0
  %v2049 = vadd.f32 %v2000, %v2048
  %2050 = vmatmul.bf16.gmra.mxu0 %v427
  %v2051 = vpop.f32.mrf.mxu0
  %v2052 = vadd.f32 %v2003, %v2051
  %v2053 = vpop.f32.mrf.mxu0
  %v2054 = vadd.f32 %v2005, %v2053
  %2055 = vmatmul.bf16.gmra.mxu0 %v431
  %v2056 = vpop.f32.mrf.mxu0
  %v2057 = vadd.f32 %v2008, %v2056
  %v2058 = vpop.f32.mrf.mxu0
  %v2059 = vadd.f32 %v2010, %v2058
  %2060 = vmatmul.bf16.gmra.mxu0 %v435
  %v2061 = vpop.f32.mrf.mxu0
  %v2062 = vadd.f32 %v2013, %v2061
  %v2063 = vpop.f32.mrf.mxu0
  %v2064 = vadd.f32 %v2015, %v2063
  %2065 = vmatmul.bf16.gmra.mxu0 %v439
  %v2066 = vpop.f32.mrf.mxu0
  %v2067 = vadd.f32 %v2018, %v2066
  %v2068 = vpop.f32.mrf.mxu0
  %v2069 = vadd.f32 %v2020, %v2068
  %2070 = vmatmul.bf16.gmra.mxu0 %v443
  %v2071 = vpop.f32.mrf.mxu0
  %v2072 = vadd.f32 %v2023, %v2071
  %v2073 = vpop.f32.mrf.mxu0
  %v2074 = vadd.f32 %v2025, %v2073
  %2075 = vmatmul.bf16.gmra.mxu0 %v447
  %v2076 = vpop.f32.mrf.mxu0
  %v2077 = vadd.f32 %v2028, %v2076
  %v2078 = vpop.f32.mrf.mxu0
  %v2079 = vadd.f32 %v2030, %v2078
  %2080 = vdwg.mxu0
  %2081 = vmatpush.bf16.msra.mxu0 %v1379
  %2082 = vmatpush.bf16.msra.mxu0 %v1372
  %2083 = vmatpush.bf16.msra.mxu0 %v1365
  %2084 = vmatpush.bf16.msra.mxu0 %v1358
  %2085 = vmatpush.bf16.msra.mxu0 %v1351
  %2086 = vmatpush.bf16.msra.mxu0 %v1344
  %2087 = vmatpush.bf16.msra.mxu0 %v1337
  %2088 = vmatpush.bf16.msra.mxu0 %v1330
  %2089 = vmatmul.bf16.gmra.mxu0 %v420
  %v2090 = vpop.f32.mrf.mxu0
  %v2091 = vadd.f32 %v2042, %v2090
  %v2092 = vpop.f32.mrf.mxu0
  %v2093 = vadd.f32 %v2044, %v2092
  %2094 = vmatmul.bf16.gmra.mxu0 %v424
  %v2095 = vpop.f32.mrf.mxu0
  %v2096 = vadd.f32 %v2047, %v2095
  %v2097 = vpop.f32.mrf.mxu0
  %v2098 = vadd.f32 %v2049, %v2097
  %2099 = vmatmul.bf16.gmra.mxu0 %v428
  %v2100 = vpop.f32.mrf.mxu0
  %v2101 = vadd.f32 %v2052, %v2100
  %v2102 = vpop.f32.mrf.mxu0
  %v2103 = vadd.f32 %v2054, %v2102
  %2104 = vmatmul.bf16.gmra.mxu0 %v432
  %v2105 = vpop.f32.mrf.mxu0
  %v2106 = vadd.f32 %v2057, %v2105
  %v2107 = vpop.f32.mrf.mxu0
  %v2108 = vadd.f32 %v2059, %v2107
  %2109 = vmatmul.bf16.gmra.mxu0 %v436
  %v2110 = vpop.f32.mrf.mxu0
  %v2111 = vadd.f32 %v2062, %v2110
  %v2112 = vpop.f32.mrf.mxu0
  %v2113 = vadd.f32 %v2064, %v2112
  %2114 = vmatmul.bf16.gmra.mxu0 %v440
  %v2115 = vpop.f32.mrf.mxu0
  %v2116 = vadd.f32 %v2067, %v2115
  %v2117 = vpop.f32.mrf.mxu0
  %v2118 = vadd.f32 %v2069, %v2117
  %2119 = vmatmul.bf16.gmra.mxu0 %v444
  %v2120 = vpop.f32.mrf.mxu0
  %v2121 = vadd.f32 %v2072, %v2120
  %v2122 = vpop.f32.mrf.mxu0
  %v2123 = vadd.f32 %v2074, %v2122
  %2124 = vmatmul.bf16.gmra.mxu0 %v448
  %v2125 = vpop.f32.mrf.mxu0
  %v2126 = vadd.f32 %v2077, %v2125
  %v2127 = vpop.f32.mrf.mxu0
  %v2128 = vadd.f32 %v2079, %v2127
  %2129 = vdwg.mxu0
  %2130 = vmatpush.bf16.msra.mxu0 0
  %2131 = vmatpush.bf16.msra.mxu0 0
  %2132 = vmatpush.bf16.msra.mxu0 0
  %2133 = vmatpush.bf16.msra.mxu0 0
  %2134 = vmatpush.bf16.msra.mxu0 0
  %2135 = vmatpush.bf16.msra.mxu0 0
  %2136 = vmatpush.bf16.msra.mxu0 0
  %2137 = vmatpush.bf16.msra.mxu0 %v1386
  %2138 = vmatmul.bf16.gmra.mxu0 %v1568
  %v2139 = vpop.f32.mrf.mxu0
  %v2140 = vadd.f32 %v2091, %v2139
  %v2141 = vpop.f32.mrf.mxu0
  %v2142 = vadd.f32 %v2093, %v2141
  %2143 = vmatmul.bf16.gmra.mxu0 %v1571
  %v2144 = vpop.f32.mrf.mxu0
  %v2145 = vadd.f32 %v2096, %v2144
  %v2146 = vpop.f32.mrf.mxu0
  %v2147 = vadd.f32 %v2098, %v2146
  %2148 = vmatmul.bf16.gmra.mxu0 %v1574
  %v2149 = vpop.f32.mrf.mxu0
  %v2150 = vadd.f32 %v2101, %v2149
  %v2151 = vpop.f32.mrf.mxu0
  %v2152 = vadd.f32 %v2103, %v2151
  %2153 = vmatmul.bf16.gmra.mxu0 %v1577
  %v2154 = vpop.f32.mrf.mxu0
  %v2155 = vadd.f32 %v2106, %v2154
  %v2156 = vpop.f32.mrf.mxu0
  %v2157 = vadd.f32 %v2108, %v2156
  %2158 = vmatmul.bf16.gmra.mxu0 %v1580
  %v2159 = vpop.f32.mrf.mxu0
  %v2160 = vadd.f32 %v2111, %v2159
  %v2161 = vpop.f32.mrf.mxu0
  %v2162 = vadd.f32 %v2113, %v2161
  %2163 = vmatmul.bf16.gmra.mxu0 %v1583
  %v2164 = vpop.f32.mrf.mxu0
  %v2165 = vadd.f32 %v2116, %v2164
  %v2166 = vpop.f32.mrf.mxu0
  %v2167 = vadd.f32 %v2118, %v2166
  %2168 = vmatmul.bf16.gmra.mxu0 %v1586
  %v2169 = vpop.f32.mrf.mxu0
  %v2170 = vadd.f32 %v2121, %v2169
  %v2171 = vpop.f32.mrf.mxu0
  %v2172 = vadd.f32 %v2123, %v2171
  %2173 = vmatmul.bf16.gmra.mxu0 %v1589
  %v2174 = vpop.f32.mrf.mxu0
  %v2175 = vadd.f32 %v2126, %v2174
  %v2176 = vpop.f32.mrf.mxu0
  %v2177 = vadd.f32 %v2128, %v2176
  %2178 = vdwg.mxu0
  %2179 = vmatpush.bf16.msra.mxu0 %v1268
  %2180 = vmatpush.bf16.msra.mxu0 %v1261
  %2181 = vmatpush.bf16.msra.mxu0 %v1254
  %2182 = vmatpush.bf16.msra.mxu0 %v1247
  %2183 = vmatpush.bf16.msra.mxu0 %v1240
  %2184 = vmatpush.bf16.msra.mxu0 %v1233
  %2185 = vmatpush.bf16.msra.mxu0 %v1226
  %2186 = vmatpush.bf16.msra.mxu0 %v1219
  %2187 = vmatmul.bf16.gmra.mxu0 %v418
  %v2188 = vpop.f32.mrf.mxu0
  %v2189 = vadd.f32 %v655, %v2188
  %v2190 = vpop.f32.mrf.mxu0
  %v2191 = vadd.f32 %v655, %v2190
  %2192 = vmatmul.bf16.gmra.mxu0 %v422
  %v2193 = vpop.f32.mrf.mxu0
  %v2194 = vadd.f32 %v655, %v2193
  %v2195 = vpop.f32.mrf.mxu0
  %v2196 = vadd.f32 %v655, %v2195
  %2197 = vmatmul.bf16.gmra.mxu0 %v426
  %v2198 = vpop.f32.mrf.mxu0
  %v2199 = vadd.f32 %v655, %v2198
  %v2200 = vpop.f32.mrf.mxu0
  %v2201 = vadd.f32 %v655, %v2200
  %2202 = vmatmul.bf16.gmra.mxu0 %v430
  %v2203 = vpop.f32.mrf.mxu0
  %v2204 = vadd.f32 %v655, %v2203
  %v2205 = vpop.f32.mrf.mxu0
  %v2206 = vadd.f32 %v655, %v2205
  %2207 = vmatmul.bf16.gmra.mxu0 %v434
  %v2208 = vpop.f32.mrf.mxu0
  %v2209 = vadd.f32 %v655, %v2208
  %v2210 = vpop.f32.mrf.mxu0
  %v2211 = vadd.f32 %v655, %v2210
  %2212 = vmatmul.bf16.gmra.mxu0 %v438
  %v2213 = vpop.f32.mrf.mxu0
  %v2214 = vadd.f32 %v655, %v2213
  %v2215 = vpop.f32.mrf.mxu0
  %v2216 = vadd.f32 %v655, %v2215
  %2217 = vmatmul.bf16.gmra.mxu0 %v442
  %v2218 = vpop.f32.mrf.mxu0
  %v2219 = vadd.f32 %v655, %v2218
  %v2220 = vpop.f32.mrf.mxu0
  %v2221 = vadd.f32 %v655, %v2220
  %2222 = vmatmul.bf16.gmra.mxu0 %v446
  %v2223 = vpop.f32.mrf.mxu0
  %v2224 = vadd.f32 %v655, %v2223
  %v2225 = vpop.f32.mrf.mxu0
  %v2226 = vadd.f32 %v655, %v2225
  %2227 = vdwg.mxu0
  %2228 = vmatpush.bf16.msra.mxu0 %v1324
  %2229 = vmatpush.bf16.msra.mxu0 %v1317
  %2230 = vmatpush.bf16.msra.mxu0 %v1310
  %2231 = vmatpush.bf16.msra.mxu0 %v1303
  %2232 = vmatpush.bf16.msra.mxu0 %v1296
  %2233 = vmatpush.bf16.msra.mxu0 %v1289
  %2234 = vmatpush.bf16.msra.mxu0 %v1282
  %2235 = vmatpush.bf16.msra.mxu0 %v1275
  %2236 = vmatmul.bf16.gmra.mxu0 %v419
  %v2237 = vpop.f32.mrf.mxu0
  %v2238 = vadd.f32 %v2189, %v2237
  %v2239 = vpop.f32.mrf.mxu0
  %v2240 = vadd.f32 %v2191, %v2239
  %2241 = vmatmul.bf16.gmra.mxu0 %v423
  %v2242 = vpop.f32.mrf.mxu0
  %v2243 = vadd.f32 %v2194, %v2242
  %v2244 = vpop.f32.mrf.mxu0
  %v2245 = vadd.f32 %v2196, %v2244
  %2246 = vmatmul.bf16.gmra.mxu0 %v427
  %v2247 = vpop.f32.mrf.mxu0
  %v2248 = vadd.f32 %v2199, %v2247
  %v2249 = vpop.f32.mrf.mxu0
  %v2250 = vadd.f32 %v2201, %v2249
  %2251 = vmatmul.bf16.gmra.mxu0 %v431
  %v2252 = vpop.f32.mrf.mxu0
  %v2253 = vadd.f32 %v2204, %v2252
  %v2254 = vpop.f32.mrf.mxu0
  %v2255 = vadd.f32 %v2206, %v2254
  %2256 = vmatmul.bf16.gmra.mxu0 %v435
  %v2257 = vpop.f32.mrf.mxu0
  %v2258 = vadd.f32 %v2209, %v2257
  %v2259 = vpop.f32.mrf.mxu0
  %v2260 = vadd.f32 %v2211, %v2259
  %2261 = vmatmul.bf16.gmra.mxu0 %v439
  %v2262 = vpop.f32.mrf.mxu0
  %v2263 = vadd.f32 %v2214, %v2262
  %v2264 = vpop.f32.mrf.mxu0
  %v2265 = vadd.f32 %v2216, %v2264
  %2266 = vmatmul.bf16.gmra.mxu0 %v443
  %v2267 = vpop.f32.mrf.mxu0
  %v2268 = vadd.f32 %v2219, %v2267
  %v2269 = vpop.f32.mrf.mxu0
  %v2270 = vadd.f32 %v2221, %v2269
  %2271 = vmatmul.bf16.gmra.mxu0 %v447
  %v2272 = vpop.f32.mrf.mxu0
  %v2273 = vadd.f32 %v2224, %v2272
  %v2274 = vpop.f32.mrf.mxu0
  %v2275 = vadd.f32 %v2226, %v2274
  %2276 = vdwg.mxu0
  %2277 = vmatpush.bf16.msra.mxu0 %v1380
  %2278 = vmatpush.bf16.msra.mxu0 %v1373
  %2279 = vmatpush.bf16.msra.mxu0 %v1366
  %2280 = vmatpush.bf16.msra.mxu0 %v1359
  %2281 = vmatpush.bf16.msra.mxu0 %v1352
  %2282 = vmatpush.bf16.msra.mxu0 %v1345
  %2283 = vmatpush.bf16.msra.mxu0 %v1338
  %2284 = vmatpush.bf16.msra.mxu0 %v1331
  %2285 = vmatmul.bf16.gmra.mxu0 %v420
  %v2286 = vpop.f32.mrf.mxu0
  %v2287 = vadd.f32 %v2238, %v2286
  %v2288 = vpop.f32.mrf.mxu0
  %v2289 = vadd.f32 %v2240, %v2288
  %2290 = vmatmul.bf16.gmra.mxu0 %v424
  %v2291 = vpop.f32.mrf.mxu0
  %v2292 = vadd.f32 %v2243, %v2291
  %v2293 = vpop.f32.mrf.mxu0
  %v2294 = vadd.f32 %v2245, %v2293
  %2295 = vmatmul.bf16.gmra.mxu0 %v428
  %v2296 = vpop.f32.mrf.mxu0
  %v2297 = vadd.f32 %v2248, %v2296
  %v2298 = vpop.f32.mrf.mxu0
  %v2299 = vadd.f32 %v2250, %v2298
  %2300 = vmatmul.bf16.gmra.mxu0 %v432
  %v2301 = vpop.f32.mrf.mxu0
  %v2302 = vadd.f32 %v2253, %v2301
  %v2303 = vpop.f32.mrf.mxu0
  %v2304 = vadd.f32 %v2255, %v2303
  %2305 = vmatmul.bf16.gmra.mxu0 %v436
  %v2306 = vpop.f32.mrf.mxu0
  %v2307 = vadd.f32 %v2258, %v2306
  %v2308 = vpop.f32.mrf.mxu0
  %v2309 = vadd.f32 %v2260, %v2308
  %2310 = vmatmul.bf16.gmra.mxu0 %v440
  %v2311 = vpop.f32.mrf.mxu0
  %v2312 = vadd.f32 %v2263, %v2311
  %v2313 = vpop.f32.mrf.mxu0
  %v2314 = vadd.f32 %v2265, %v2313
  %2315 = vmatmul.bf16.gmra.mxu0 %v444
  %v2316 = vpop.f32.mrf.mxu0
  %v2317 = vadd.f32 %v2268, %v2316
  %v2318 = vpop.f32.mrf.mxu0
  %v2319 = vadd.f32 %v2270, %v2318
  %2320 = vmatmul.bf16.gmra.mxu0 %v448
  %v2321 = vpop.f32.mrf.mxu0
  %v2322 = vadd.f32 %v2273, %v2321
  %v2323 = vpop.f32.mrf.mxu0
  %v2324 = vadd.f32 %v2275, %v2323
  %2325 = vdwg.mxu0
  %2326 = vmatpush.bf16.msra.mxu0 0
  %2327 = vmatpush.bf16.msra.mxu0 0
  %2328 = vmatpush.bf16.msra.mxu0 0
  %2329 = vmatpush.bf16.msra.mxu0 0
  %2330 = vmatpush.bf16.msra.mxu0 0
  %2331 = vmatpush.bf16.msra.mxu0 0
  %2332 = vmatpush.bf16.msra.mxu0 0
  %2333 = vmatpush.bf16.msra.mxu0 %v1387
  %2334 = vmatmul.bf16.gmra.mxu0 %v1568
  %v2335 = vpop.f32.mrf.mxu0
  %v2336 = vadd.f32 %v2287, %v2335
  %v2337 = vpop.f32.mrf.mxu0
  %v2338 = vadd.f32 %v2289, %v2337
  %2339 = vmatmul.bf16.gmra.mxu0 %v1571
  %v2340 = vpop.f32.mrf.mxu0
  %v2341 = vadd.f32 %v2292, %v2340
  %v2342 = vpop.f32.mrf.mxu0
  %v2343 = vadd.f32 %v2294, %v2342
  %2344 = vmatmul.bf16.gmra.mxu0 %v1574
  %v2345 = vpop.f32.mrf.mxu0
  %v2346 = vadd.f32 %v2297, %v2345
  %v2347 = vpop.f32.mrf.mxu0
  %v2348 = vadd.f32 %v2299, %v2347
  %2349 = vmatmul.bf16.gmra.mxu0 %v1577
  %v2350 = vpop.f32.mrf.mxu0
  %v2351 = vadd.f32 %v2302, %v2350
  %v2352 = vpop.f32.mrf.mxu0
  %v2353 = vadd.f32 %v2304, %v2352
  %2354 = vmatmul.bf16.gmra.mxu0 %v1580
  %v2355 = vpop.f32.mrf.mxu0
  %v2356 = vadd.f32 %v2307, %v2355
  %v2357 = vpop.f32.mrf.mxu0
  %v2358 = vadd.f32 %v2309, %v2357
  %2359 = vmatmul.bf16.gmra.mxu0 %v1583
  %v2360 = vpop.f32.mrf.mxu0
  %v2361 = vadd.f32 %v2312, %v2360
  %v2362 = vpop.f32.mrf.mxu0
  %v2363 = vadd.f32 %v2314, %v2362
  %2364 = vmatmul.bf16.gmra.mxu0 %v1586
  %v2365 = vpop.f32.mrf.mxu0
  %v2366 = vadd.f32 %v2317, %v2365
  %v2367 = vpop.f32.mrf.mxu0
  %v2368 = vadd.f32 %v2319, %v2367
  %2369 = vmatmul.bf16.gmra.mxu0 %v1589
  %v2370 = vpop.f32.mrf.mxu0
  %v2371 = vadd.f32 %v2322, %v2370
  %v2372 = vpop.f32.mrf.mxu0
  %v2373 = vadd.f32 %v2324, %v2372
  %2374 = vdwg.mxu0
  %2375 = vmatpush.bf16.msra.mxu0 %v1269
  %2376 = vmatpush.bf16.msra.mxu0 %v1262
  %2377 = vmatpush.bf16.msra.mxu0 %v1255
  %2378 = vmatpush.bf16.msra.mxu0 %v1248
  %2379 = vmatpush.bf16.msra.mxu0 %v1241
  %2380 = vmatpush.bf16.msra.mxu0 %v1234
  %2381 = vmatpush.bf16.msra.mxu0 %v1227
  %2382 = vmatpush.bf16.msra.mxu0 %v1220
  %2383 = vmatmul.bf16.gmra.mxu0 %v418
  %v2384 = vpop.f32.mrf.mxu0
  %v2385 = vadd.f32 %v656, %v2384
  %v2386 = vpop.f32.mrf.mxu0
  %v2387 = vadd.f32 %v656, %v2386
  %2388 = vmatmul.bf16.gmra.mxu0 %v422
  %v2389 = vpop.f32.mrf.mxu0
  %v2390 = vadd.f32 %v656, %v2389
  %v2391 = vpop.f32.mrf.mxu0
  %v2392 = vadd.f32 %v656, %v2391
  %2393 = vmatmul.bf16.gmra.mxu0 %v426
  %v2394 = vpop.f32.mrf.mxu0
  %v2395 = vadd.f32 %v656, %v2394
  %v2396 = vpop.f32.mrf.mxu0
  %v2397 = vadd.f32 %v656, %v2396
  %2398 = vmatmul.bf16.gmra.mxu0 %v430
  %v2399 = vpop.f32.mrf.mxu0
  %v2400 = vadd.f32 %v656, %v2399
  %v2401 = vpop.f32.mrf.mxu0
  %v2402 = vadd.f32 %v656, %v2401
  %2403 = vmatmul.bf16.gmra.mxu0 %v434
  %v2404 = vpop.f32.mrf.mxu0
  %v2405 = vadd.f32 %v656, %v2404
  %v2406 = vpop.f32.mrf.mxu0
  %v2407 = vadd.f32 %v656, %v2406
  %2408 = vmatmul.bf16.gmra.mxu0 %v438
  %v2409 = vpop.f32.mrf.mxu0
  %v2410 = vadd.f32 %v656, %v2409
  %v2411 = vpop.f32.mrf.mxu0
  %v2412 = vadd.f32 %v656, %v2411
  %2413 = vmatmul.bf16.gmra.mxu0 %v442
  %v2414 = vpop.f32.mrf.mxu0
  %v2415 = vadd.f32 %v656, %v2414
  %v2416 = vpop.f32.mrf.mxu0
  %v2417 = vadd.f32 %v656, %v2416
  %2418 = vmatmul.bf16.gmra.mxu0 %v446
  %v2419 = vpop.f32.mrf.mxu0
  %v2420 = vadd.f32 %v656, %v2419
  %v2421 = vpop.f32.mrf.mxu0
  %v2422 = vadd.f32 %v656, %v2421
  %2423 = vdwg.mxu0
  %2424 = vmatpush.bf16.msra.mxu0 %v1325
  %2425 = vmatpush.bf16.msra.mxu0 %v1318
  %2426 = vmatpush.bf16.msra.mxu0 %v1311
  %2427 = vmatpush.bf16.msra.mxu0 %v1304
  %2428 = vmatpush.bf16.msra.mxu0 %v1297
  %2429 = vmatpush.bf16.msra.mxu0 %v1290
  %2430 = vmatpush.bf16.msra.mxu0 %v1283
  %2431 = vmatpush.bf16.msra.mxu0 %v1276
  %2432 = vmatmul.bf16.gmra.mxu0 %v419
  %v2433 = vpop.f32.mrf.mxu0
  %v2434 = vadd.f32 %v2385, %v2433
  %v2435 = vpop.f32.mrf.mxu0
  %v2436 = vadd.f32 %v2387, %v2435
  %2437 = vmatmul.bf16.gmra.mxu0 %v423
  %v2438 = vpop.f32.mrf.mxu0
  %v2439 = vadd.f32 %v2390, %v2438
  %v2440 = vpop.f32.mrf.mxu0
  %v2441 = vadd.f32 %v2392, %v2440
  %2442 = vmatmul.bf16.gmra.mxu0 %v427
  %v2443 = vpop.f32.mrf.mxu0
  %v2444 = vadd.f32 %v2395, %v2443
  %v2445 = vpop.f32.mrf.mxu0
  %v2446 = vadd.f32 %v2397, %v2445
  %2447 = vmatmul.bf16.gmra.mxu0 %v431
  %v2448 = vpop.f32.mrf.mxu0
  %v2449 = vadd.f32 %v2400, %v2448
  %v2450 = vpop.f32.mrf.mxu0
  %v2451 = vadd.f32 %v2402, %v2450
  %2452 = vmatmul.bf16.gmra.mxu0 %v435
  %v2453 = vpop.f32.mrf.mxu0
  %v2454 = vadd.f32 %v2405, %v2453
  %v2455 = vpop.f32.mrf.mxu0
  %v2456 = vadd.f32 %v2407, %v2455
  %2457 = vmatmul.bf16.gmra.mxu0 %v439
  %v2458 = vpop.f32.mrf.mxu0
  %v2459 = vadd.f32 %v2410, %v2458
  %v2460 = vpop.f32.mrf.mxu0
  %v2461 = vadd.f32 %v2412, %v2460
  %2462 = vmatmul.bf16.gmra.mxu0 %v443
  %v2463 = vpop.f32.mrf.mxu0
  %v2464 = vadd.f32 %v2415, %v2463
  %v2465 = vpop.f32.mrf.mxu0
  %v2466 = vadd.f32 %v2417, %v2465
  %2467 = vmatmul.bf16.gmra.mxu0 %v447
  %v2468 = vpop.f32.mrf.mxu0
  %v2469 = vadd.f32 %v2420, %v2468
  %v2470 = vpop.f32.mrf.mxu0
  %v2471 = vadd.f32 %v2422, %v2470
  %2472 = vdwg.mxu0
  %2473 = vmatpush.bf16.msra.mxu0 %v1381
  %2474 = vmatpush.bf16.msra.mxu0 %v1374
  %2475 = vmatpush.bf16.msra.mxu0 %v1367
  %2476 = vmatpush.bf16.msra.mxu0 %v1360
  %2477 = vmatpush.bf16.msra.mxu0 %v1353
  %2478 = vmatpush.bf16.msra.mxu0 %v1346
  %2479 = vmatpush.bf16.msra.mxu0 %v1339
  %2480 = vmatpush.bf16.msra.mxu0 %v1332
  %2481 = vmatmul.bf16.gmra.mxu0 %v420
  %v2482 = vpop.f32.mrf.mxu0
  %v2483 = vadd.f32 %v2434, %v2482
  %v2484 = vpop.f32.mrf.mxu0
  %v2485 = vadd.f32 %v2436, %v2484
  %2486 = vmatmul.bf16.gmra.mxu0 %v424
  %v2487 = vpop.f32.mrf.mxu0
  %v2488 = vadd.f32 %v2439, %v2487
  %v2489 = vpop.f32.mrf.mxu0
  %v2490 = vadd.f32 %v2441, %v2489
  %2491 = vmatmul.bf16.gmra.mxu0 %v428
  %v2492 = vpop.f32.mrf.mxu0
  %v2493 = vadd.f32 %v2444, %v2492
  %v2494 = vpop.f32.mrf.mxu0
  %v2495 = vadd.f32 %v2446, %v2494
  %2496 = vmatmul.bf16.gmra.mxu0 %v432
  %v2497 = vpop.f32.mrf.mxu0
  %v2498 = vadd.f32 %v2449, %v2497
  %v2499 = vpop.f32.mrf.mxu0
  %v2500 = vadd.f32 %v2451, %v2499
  %2501 = vmatmul.bf16.gmra.mxu0 %v436
  %v2502 = vpop.f32.mrf.mxu0
  %v2503 = vadd.f32 %v2454, %v2502
  %v2504 = vpop.f32.mrf.mxu0
  %v2505 = vadd.f32 %v2456, %v2504
  %2506 = vmatmul.bf16.gmra.mxu0 %v440
  %v2507 = vpop.f32.mrf.mxu0
  %v2508 = vadd.f32 %v2459, %v2507
  %v2509 = vpop.f32.mrf.mxu0
  %v2510 = vadd.f32 %v2461, %v2509
  %2511 = vmatmul.bf16.gmra.mxu0 %v444
  %v2512 = vpop.f32.mrf.mxu0
  %v2513 = vadd.f32 %v2464, %v2512
  %v2514 = vpop.f32.mrf.mxu0
  %v2515 = vadd.f32 %v2466, %v2514
  %2516 = vmatmul.bf16.gmra.mxu0 %v448
  %v2517 = vpop.f32.mrf.mxu0
  %v2518 = vadd.f32 %v2469, %v2517
  %v2519 = vpop.f32.mrf.mxu0
  %v2520 = vadd.f32 %v2471, %v2519
  %2521 = vdwg.mxu0
  %2522 = vmatpush.bf16.msra.mxu0 0
  %2523 = vmatpush.bf16.msra.mxu0 0
  %2524 = vmatpush.bf16.msra.mxu0 0
  %2525 = vmatpush.bf16.msra.mxu0 0
  %2526 = vmatpush.bf16.msra.mxu0 0
  %2527 = vmatpush.bf16.msra.mxu0 0
  %2528 = vmatpush.bf16.msra.mxu0 0
  %2529 = vmatpush.bf16.msra.mxu0 %v1388
  %2530 = vmatmul.bf16.gmra.mxu0 %v1568
  %v2531 = vpop.f32.mrf.mxu0
  %v2532 = vadd.f32 %v2483, %v2531
  %v2533 = vpop.f32.mrf.mxu0
  %v2534 = vadd.f32 %v2485, %v2533
  %2535 = vmatmul.bf16.gmra.mxu0 %v1571
  %v2536 = vpop.f32.mrf.mxu0
  %v2537 = vadd.f32 %v2488, %v2536
  %v2538 = vpop.f32.mrf.mxu0
  %v2539 = vadd.f32 %v2490, %v2538
  %2540 = vmatmul.bf16.gmra.mxu0 %v1574
  %v2541 = vpop.f32.mrf.mxu0
  %v2542 = vadd.f32 %v2493, %v2541
  %v2543 = vpop.f32.mrf.mxu0
  %v2544 = vadd.f32 %v2495, %v2543
  %2545 = vmatmul.bf16.gmra.mxu0 %v1577
  %v2546 = vpop.f32.mrf.mxu0
  %v2547 = vadd.f32 %v2498, %v2546
  %v2548 = vpop.f32.mrf.mxu0
  %v2549 = vadd.f32 %v2500, %v2548
  %2550 = vmatmul.bf16.gmra.mxu0 %v1580
  %v2551 = vpop.f32.mrf.mxu0
  %v2552 = vadd.f32 %v2503, %v2551
  %v2553 = vpop.f32.mrf.mxu0
  %v2554 = vadd.f32 %v2505, %v2553
  %2555 = vmatmul.bf16.gmra.mxu0 %v1583
  %v2556 = vpop.f32.mrf.mxu0
  %v2557 = vadd.f32 %v2508, %v2556
  %v2558 = vpop.f32.mrf.mxu0
  %v2559 = vadd.f32 %v2510, %v2558
  %2560 = vmatmul.bf16.gmra.mxu0 %v1586
  %v2561 = vpop.f32.mrf.mxu0
  %v2562 = vadd.f32 %v2513, %v2561
  %v2563 = vpop.f32.mrf.mxu0
  %v2564 = vadd.f32 %v2515, %v2563
  %2565 = vmatmul.bf16.gmra.mxu0 %v1589
  %v2566 = vpop.f32.mrf.mxu0
  %v2567 = vadd.f32 %v2518, %v2566
  %v2568 = vpop.f32.mrf.mxu0
  %v2569 = vadd.f32 %v2520, %v2568
  %2570 = vdwg.mxu0
  %2571 = vmatpush.bf16.msra.mxu0 %v1270
  %2572 = vmatpush.bf16.msra.mxu0 %v1263
  %2573 = vmatpush.bf16.msra.mxu0 %v1256
  %2574 = vmatpush.bf16.msra.mxu0 %v1249
  %2575 = vmatpush.bf16.msra.mxu0 %v1242
  %2576 = vmatpush.bf16.msra.mxu0 %v1235
  %2577 = vmatpush.bf16.msra.mxu0 %v1228
  %2578 = vmatpush.bf16.msra.mxu0 %v1221
  %2579 = vmatmul.bf16.gmra.mxu0 %v418
  %v2580 = vpop.f32.mrf.mxu0
  %v2581 = vadd.f32 %v657, %v2580
  %v2582 = vpop.f32.mrf.mxu0
  %v2583 = vadd.f32 %v657, %v2582
  %2584 = vmatmul.bf16.gmra.mxu0 %v422
  %v2585 = vpop.f32.mrf.mxu0
  %v2586 = vadd.f32 %v657, %v2585
  %v2587 = vpop.f32.mrf.mxu0
  %v2588 = vadd.f32 %v657, %v2587
  %2589 = vmatmul.bf16.gmra.mxu0 %v426
  %v2590 = vpop.f32.mrf.mxu0
  %v2591 = vadd.f32 %v657, %v2590
  %v2592 = vpop.f32.mrf.mxu0
  %v2593 = vadd.f32 %v657, %v2592
  %2594 = vmatmul.bf16.gmra.mxu0 %v430
  %v2595 = vpop.f32.mrf.mxu0
  %v2596 = vadd.f32 %v657, %v2595
  %v2597 = vpop.f32.mrf.mxu0
  %v2598 = vadd.f32 %v657, %v2597
  %2599 = vmatmul.bf16.gmra.mxu0 %v434
  %v2600 = vpop.f32.mrf.mxu0
  %v2601 = vadd.f32 %v657, %v2600
  %v2602 = vpop.f32.mrf.mxu0
  %v2603 = vadd.f32 %v657, %v2602
  %2604 = vmatmul.bf16.gmra.mxu0 %v438
  %v2605 = vpop.f32.mrf.mxu0
  %v2606 = vadd.f32 %v657, %v2605
  %v2607 = vpop.f32.mrf.mxu0
  %v2608 = vadd.f32 %v657, %v2607
  %2609 = vmatmul.bf16.gmra.mxu0 %v442
  %v2610 = vpop.f32.mrf.mxu0
  %v2611 = vadd.f32 %v657, %v2610
  %v2612 = vpop.f32.mrf.mxu0
  %v2613 = vadd.f32 %v657, %v2612
  %2614 = vmatmul.bf16.gmra.mxu0 %v446
  %v2615 = vpop.f32.mrf.mxu0
  %v2616 = vadd.f32 %v657, %v2615
  %v2617 = vpop.f32.mrf.mxu0
  %v2618 = vadd.f32 %v657, %v2617
  %2619 = vdwg.mxu0
  %2620 = vmatpush.bf16.msra.mxu0 %v1326
  %2621 = vmatpush.bf16.msra.mxu0 %v1319
  %2622 = vmatpush.bf16.msra.mxu0 %v1312
  %2623 = vmatpush.bf16.msra.mxu0 %v1305
  %2624 = vmatpush.bf16.msra.mxu0 %v1298
  %2625 = vmatpush.bf16.msra.mxu0 %v1291
  %2626 = vmatpush.bf16.msra.mxu0 %v1284
  %2627 = vmatpush.bf16.msra.mxu0 %v1277
  %2628 = vmatmul.bf16.gmra.mxu0 %v419
  %v2629 = vpop.f32.mrf.mxu0
  %v2630 = vadd.f32 %v2581, %v2629
  %v2631 = vpop.f32.mrf.mxu0
  %v2632 = vadd.f32 %v2583, %v2631
  %2633 = vmatmul.bf16.gmra.mxu0 %v423
  %v2634 = vpop.f32.mrf.mxu0
  %v2635 = vadd.f32 %v2586, %v2634
  %v2636 = vpop.f32.mrf.mxu0
  %v2637 = vadd.f32 %v2588, %v2636
  %2638 = vmatmul.bf16.gmra.mxu0 %v427
  %v2639 = vpop.f32.mrf.mxu0
  %v2640 = vadd.f32 %v2591, %v2639
  %v2641 = vpop.f32.mrf.mxu0
  %v2642 = vadd.f32 %v2593, %v2641
  %2643 = vmatmul.bf16.gmra.mxu0 %v431
  %v2644 = vpop.f32.mrf.mxu0
  %v2645 = vadd.f32 %v2596, %v2644
  %v2646 = vpop.f32.mrf.mxu0
  %v2647 = vadd.f32 %v2598, %v2646
  %2648 = vmatmul.bf16.gmra.mxu0 %v435
  %v2649 = vpop.f32.mrf.mxu0
  %v2650 = vadd.f32 %v2601, %v2649
  %v2651 = vpop.f32.mrf.mxu0
  %v2652 = vadd.f32 %v2603, %v2651
  %2653 = vmatmul.bf16.gmra.mxu0 %v439
  %v2654 = vpop.f32.mrf.mxu0
  %v2655 = vadd.f32 %v2606, %v2654
  %v2656 = vpop.f32.mrf.mxu0
  %v2657 = vadd.f32 %v2608, %v2656
  %2658 = vmatmul.bf16.gmra.mxu0 %v443
  %v2659 = vpop.f32.mrf.mxu0
  %v2660 = vadd.f32 %v2611, %v2659
  %v2661 = vpop.f32.mrf.mxu0
  %v2662 = vadd.f32 %v2613, %v2661
  %2663 = vmatmul.bf16.gmra.mxu0 %v447
  %v2664 = vpop.f32.mrf.mxu0
  %v2665 = vadd.f32 %v2616, %v2664
  %v2666 = vpop.f32.mrf.mxu0
  %v2667 = vadd.f32 %v2618, %v2666
  %2668 = vdwg.mxu0
  %2669 = vmatpush.bf16.msra.mxu0 %v1382
  %2670 = vmatpush.bf16.msra.mxu0 %v1375
  %2671 = vmatpush.bf16.msra.mxu0 %v1368
  %2672 = vmatpush.bf16.msra.mxu0 %v1361
  %2673 = vmatpush.bf16.msra.mxu0 %v1354
  %2674 = vmatpush.bf16.msra.mxu0 %v1347
  %2675 = vmatpush.bf16.msra.mxu0 %v1340
  %2676 = vmatpush.bf16.msra.mxu0 %v1333
  %2677 = vmatmul.bf16.gmra.mxu0 %v420
  %v2678 = vpop.f32.mrf.mxu0
  %v2679 = vadd.f32 %v2630, %v2678
  %v2680 = vpop.f32.mrf.mxu0
  %v2681 = vadd.f32 %v2632, %v2680
  %2682 = vmatmul.bf16.gmra.mxu0 %v424
  %v2683 = vpop.f32.mrf.mxu0
  %v2684 = vadd.f32 %v2635, %v2683
  %v2685 = vpop.f32.mrf.mxu0
  %v2686 = vadd.f32 %v2637, %v2685
  %2687 = vmatmul.bf16.gmra.mxu0 %v428
  %v2688 = vpop.f32.mrf.mxu0
  %v2689 = vadd.f32 %v2640, %v2688
  %v2690 = vpop.f32.mrf.mxu0
  %v2691 = vadd.f32 %v2642, %v2690
  %2692 = vmatmul.bf16.gmra.mxu0 %v432
  %v2693 = vpop.f32.mrf.mxu0
  %v2694 = vadd.f32 %v2645, %v2693
  %v2695 = vpop.f32.mrf.mxu0
  %v2696 = vadd.f32 %v2647, %v2695
  %2697 = vmatmul.bf16.gmra.mxu0 %v436
  %v2698 = vpop.f32.mrf.mxu0
  %v2699 = vadd.f32 %v2650, %v2698
  %v2700 = vpop.f32.mrf.mxu0
  %v2701 = vadd.f32 %v2652, %v2700
  %2702 = vmatmul.bf16.gmra.mxu0 %v440
  %v2703 = vpop.f32.mrf.mxu0
  %v2704 = vadd.f32 %v2655, %v2703
  %v2705 = vpop.f32.mrf.mxu0
  %v2706 = vadd.f32 %v2657, %v2705
  %2707 = vmatmul.bf16.gmra.mxu0 %v444
  %v2708 = vpop.f32.mrf.mxu0
  %v2709 = vadd.f32 %v2660, %v2708
  %v2710 = vpop.f32.mrf.mxu0
  %v2711 = vadd.f32 %v2662, %v2710
  %2712 = vmatmul.bf16.gmra.mxu0 %v448
  %v2713 = vpop.f32.mrf.mxu0
  %v2714 = vadd.f32 %v2665, %v2713
  %v2715 = vpop.f32.mrf.mxu0
  %v2716 = vadd.f32 %v2667, %v2715
  %2717 = vdwg.mxu0
  %2718 = vmatpush.bf16.msra.mxu0 0
  %2719 = vmatpush.bf16.msra.mxu0 0
  %2720 = vmatpush.bf16.msra.mxu0 0
  %2721 = vmatpush.bf16.msra.mxu0 0
  %2722 = vmatpush.bf16.msra.mxu0 0
  %2723 = vmatpush.bf16.msra.mxu0 0
  %2724 = vmatpush.bf16.msra.mxu0 0
  %2725 = vmatpush.bf16.msra.mxu0 %v1389
  %2726 = vmatmul.bf16.gmra.mxu0 %v1568
  %v2727 = vpop.f32.mrf.mxu0
  %v2728 = vadd.f32 %v2679, %v2727
  %v2729 = vpop.f32.mrf.mxu0
  %v2730 = vadd.f32 %v2681, %v2729
  %2731 = vmatmul.bf16.gmra.mxu0 %v1571
  %v2732 = vpop.f32.mrf.mxu0
  %v2733 = vadd.f32 %v2684, %v2732
  %v2734 = vpop.f32.mrf.mxu0
  %v2735 = vadd.f32 %v2686, %v2734
  %2736 = vmatmul.bf16.gmra.mxu0 %v1574
  %v2737 = vpop.f32.mrf.mxu0
  %v2738 = vadd.f32 %v2689, %v2737
  %v2739 = vpop.f32.mrf.mxu0
  %v2740 = vadd.f32 %v2691, %v2739
  %2741 = vmatmul.bf16.gmra.mxu0 %v1577
  %v2742 = vpop.f32.mrf.mxu0
  %v2743 = vadd.f32 %v2694, %v2742
  %v2744 = vpop.f32.mrf.mxu0
  %v2745 = vadd.f32 %v2696, %v2744
  %2746 = vmatmul.bf16.gmra.mxu0 %v1580
  %v2747 = vpop.f32.mrf.mxu0
  %v2748 = vadd.f32 %v2699, %v2747
  %v2749 = vpop.f32.mrf.mxu0
  %v2750 = vadd.f32 %v2701, %v2749
  %2751 = vmatmul.bf16.gmra.mxu0 %v1583
  %v2752 = vpop.f32.mrf.mxu0
  %v2753 = vadd.f32 %v2704, %v2752
  %v2754 = vpop.f32.mrf.mxu0
  %v2755 = vadd.f32 %v2706, %v2754
  %2756 = vmatmul.bf16.gmra.mxu0 %v1586
  %v2757 = vpop.f32.mrf.mxu0
  %v2758 = vadd.f32 %v2709, %v2757
  %v2759 = vpop.f32.mrf.mxu0
  %v2760 = vadd.f32 %v2711, %v2759
  %2761 = vmatmul.bf16.gmra.mxu0 %v1589
  %v2762 = vpop.f32.mrf.mxu0
  %v2763 = vadd.f32 %v2714, %v2762
  %v2764 = vpop.f32.mrf.mxu0
  %v2765 = vadd.f32 %v2716, %v2764
  %2766 = vdwg.mxu0
  %2767 = vmatpush.bf16.msra.mxu0 %v1271
  %2768 = vmatpush.bf16.msra.mxu0 %v1264
  %2769 = vmatpush.bf16.msra.mxu0 %v1257
  %2770 = vmatpush.bf16.msra.mxu0 %v1250
  %2771 = vmatpush.bf16.msra.mxu0 %v1243
  %2772 = vmatpush.bf16.msra.mxu0 %v1236
  %2773 = vmatpush.bf16.msra.mxu0 %v1229
  %2774 = vmatpush.bf16.msra.mxu0 %v1222
  %2775 = vmatmul.bf16.gmra.mxu0 %v418
  %v2776 = vpop.f32.mrf.mxu0
  %v2777 = vadd.f32 %v658, %v2776
  %v2778 = vpop.f32.mrf.mxu0
  %v2779 = vadd.f32 %v658, %v2778
  %2780 = vmatmul.bf16.gmra.mxu0 %v422
  %v2781 = vpop.f32.mrf.mxu0
  %v2782 = vadd.f32 %v658, %v2781
  %v2783 = vpop.f32.mrf.mxu0
  %v2784 = vadd.f32 %v658, %v2783
  %2785 = vmatmul.bf16.gmra.mxu0 %v426
  %v2786 = vpop.f32.mrf.mxu0
  %v2787 = vadd.f32 %v658, %v2786
  %v2788 = vpop.f32.mrf.mxu0
  %v2789 = vadd.f32 %v658, %v2788
  %2790 = vmatmul.bf16.gmra.mxu0 %v430
  %v2791 = vpop.f32.mrf.mxu0
  %v2792 = vadd.f32 %v658, %v2791
  %v2793 = vpop.f32.mrf.mxu0
  %v2794 = vadd.f32 %v658, %v2793
  %2795 = vmatmul.bf16.gmra.mxu0 %v434
  %v2796 = vpop.f32.mrf.mxu0
  %v2797 = vadd.f32 %v658, %v2796
  %v2798 = vpop.f32.mrf.mxu0
  %v2799 = vadd.f32 %v658, %v2798
  %2800 = vmatmul.bf16.gmra.mxu0 %v438
  %v2801 = vpop.f32.mrf.mxu0
  %v2802 = vadd.f32 %v658, %v2801
  %v2803 = vpop.f32.mrf.mxu0
  %v2804 = vadd.f32 %v658, %v2803
  %2805 = vmatmul.bf16.gmra.mxu0 %v442
  %v2806 = vpop.f32.mrf.mxu0
  %v2807 = vadd.f32 %v658, %v2806
  %v2808 = vpop.f32.mrf.mxu0
  %v2809 = vadd.f32 %v658, %v2808
  %2810 = vmatmul.bf16.gmra.mxu0 %v446
  %v2811 = vpop.f32.mrf.mxu0
  %v2812 = vadd.f32 %v658, %v2811
  %v2813 = vpop.f32.mrf.mxu0
  %v2814 = vadd.f32 %v658, %v2813
  %2815 = vdwg.mxu0
  %2816 = vmatpush.bf16.msra.mxu0 %v1327
  %2817 = vmatpush.bf16.msra.mxu0 %v1320
  %2818 = vmatpush.bf16.msra.mxu0 %v1313
  %2819 = vmatpush.bf16.msra.mxu0 %v1306
  %2820 = vmatpush.bf16.msra.mxu0 %v1299
  %2821 = vmatpush.bf16.msra.mxu0 %v1292
  %2822 = vmatpush.bf16.msra.mxu0 %v1285
  %2823 = vmatpush.bf16.msra.mxu0 %v1278
  %2824 = vmatmul.bf16.gmra.mxu0 %v419
  %v2825 = vpop.f32.mrf.mxu0
  %v2826 = vadd.f32 %v2777, %v2825
  %v2827 = vpop.f32.mrf.mxu0
  %v2828 = vadd.f32 %v2779, %v2827
  %2829 = vmatmul.bf16.gmra.mxu0 %v423
  %v2830 = vpop.f32.mrf.mxu0
  %v2831 = vadd.f32 %v2782, %v2830
  %v2832 = vpop.f32.mrf.mxu0
  %v2833 = vadd.f32 %v2784, %v2832
  %2834 = vmatmul.bf16.gmra.mxu0 %v427
  %v2835 = vpop.f32.mrf.mxu0
  %v2836 = vadd.f32 %v2787, %v2835
  %v2837 = vpop.f32.mrf.mxu0
  %v2838 = vadd.f32 %v2789, %v2837
  %2839 = vmatmul.bf16.gmra.mxu0 %v431
  %v2840 = vpop.f32.mrf.mxu0
  %v2841 = vadd.f32 %v2792, %v2840
  %v2842 = vpop.f32.mrf.mxu0
  %v2843 = vadd.f32 %v2794, %v2842
  %2844 = vmatmul.bf16.gmra.mxu0 %v435
  %v2845 = vpop.f32.mrf.mxu0
  %v2846 = vadd.f32 %v2797, %v2845
  %v2847 = vpop.f32.mrf.mxu0
  %v2848 = vadd.f32 %v2799, %v2847
  %2849 = vmatmul.bf16.gmra.mxu0 %v439
  %v2850 = vpop.f32.mrf.mxu0
  %v2851 = vadd.f32 %v2802, %v2850
  %v2852 = vpop.f32.mrf.mxu0
  %v2853 = vadd.f32 %v2804, %v2852
  %2854 = vmatmul.bf16.gmra.mxu0 %v443
  %v2855 = vpop.f32.mrf.mxu0
  %v2856 = vadd.f32 %v2807, %v2855
  %v2857 = vpop.f32.mrf.mxu0
  %v2858 = vadd.f32 %v2809, %v2857
  %2859 = vmatmul.bf16.gmra.mxu0 %v447
  %v2860 = vpop.f32.mrf.mxu0
  %v2861 = vadd.f32 %v2812, %v2860
  %v2862 = vpop.f32.mrf.mxu0
  %v2863 = vadd.f32 %v2814, %v2862
  %2864 = vdwg.mxu0
  %2865 = vmatpush.bf16.msra.mxu0 %v1383
  %2866 = vmatpush.bf16.msra.mxu0 %v1376
  %2867 = vmatpush.bf16.msra.mxu0 %v1369
  %2868 = vmatpush.bf16.msra.mxu0 %v1362
  %2869 = vmatpush.bf16.msra.mxu0 %v1355
  %2870 = vmatpush.bf16.msra.mxu0 %v1348
  %2871 = vmatpush.bf16.msra.mxu0 %v1341
  %2872 = vmatpush.bf16.msra.mxu0 %v1334
  %2873 = vmatmul.bf16.gmra.mxu0 %v420
  %v2874 = vpop.f32.mrf.mxu0
  %v2875 = vadd.f32 %v2826, %v2874
  %v2876 = vpop.f32.mrf.mxu0
  %v2877 = vadd.f32 %v2828, %v2876
  %2878 = vmatmul.bf16.gmra.mxu0 %v424
  %v2879 = vpop.f32.mrf.mxu0
  %v2880 = vadd.f32 %v2831, %v2879
  %v2881 = vpop.f32.mrf.mxu0
  %v2882 = vadd.f32 %v2833, %v2881
  %2883 = vmatmul.bf16.gmra.mxu0 %v428
  %v2884 = vpop.f32.mrf.mxu0
  %v2885 = vadd.f32 %v2836, %v2884
  %v2886 = vpop.f32.mrf.mxu0
  %v2887 = vadd.f32 %v2838, %v2886
  %2888 = vmatmul.bf16.gmra.mxu0 %v432
  %v2889 = vpop.f32.mrf.mxu0
  %v2890 = vadd.f32 %v2841, %v2889
  %v2891 = vpop.f32.mrf.mxu0
  %v2892 = vadd.f32 %v2843, %v2891
  %2893 = vmatmul.bf16.gmra.mxu0 %v436
  %v2894 = vpop.f32.mrf.mxu0
  %v2895 = vadd.f32 %v2846, %v2894
  %v2896 = vpop.f32.mrf.mxu0
  %v2897 = vadd.f32 %v2848, %v2896
  %2898 = vmatmul.bf16.gmra.mxu0 %v440
  %v2899 = vpop.f32.mrf.mxu0
  %v2900 = vadd.f32 %v2851, %v2899
  %v2901 = vpop.f32.mrf.mxu0
  %v2902 = vadd.f32 %v2853, %v2901
  %2903 = vmatmul.bf16.gmra.mxu0 %v444
  %v2904 = vpop.f32.mrf.mxu0
  %v2905 = vadd.f32 %v2856, %v2904
  %v2906 = vpop.f32.mrf.mxu0
  %v2907 = vadd.f32 %v2858, %v2906
  %2908 = vmatmul.bf16.gmra.mxu0 %v448
  %v2909 = vpop.f32.mrf.mxu0
  %v2910 = vadd.f32 %v2861, %v2909
  %v2911 = vpop.f32.mrf.mxu0
  %v2912 = vadd.f32 %v2863, %v2911
  %2913 = vdwg.mxu0
  %2914 = vmatpush.bf16.msra.mxu0 0
  %2915 = vmatpush.bf16.msra.mxu0 0
  %2916 = vmatpush.bf16.msra.mxu0 0
  %2917 = vmatpush.bf16.msra.mxu0 0
  %2918 = vmatpush.bf16.msra.mxu0 0
  %2919 = vmatpush.bf16.msra.mxu0 0
  %2920 = vmatpush.bf16.msra.mxu0 0
  %2921 = vmatpush.bf16.msra.mxu0 %v1390
  %2922 = vmatmul.bf16.gmra.mxu0 %v1568
  %v2923 = vpop.f32.mrf.mxu0
  %v2924 = vadd.f32 %v2875, %v2923
  %v2925 = vpop.f32.mrf.mxu0
  %v2926 = vadd.f32 %v2877, %v2925
  %2927 = vmatmul.bf16.gmra.mxu0 %v1571
  %v2928 = vpop.f32.mrf.mxu0
  %v2929 = vadd.f32 %v2880, %v2928
  %v2930 = vpop.f32.mrf.mxu0
  %v2931 = vadd.f32 %v2882, %v2930
  %2932 = vmatmul.bf16.gmra.mxu0 %v1574
  %v2933 = vpop.f32.mrf.mxu0
  %v2934 = vadd.f32 %v2885, %v2933
  %v2935 = vpop.f32.mrf.mxu0
  %v2936 = vadd.f32 %v2887, %v2935
  %2937 = vmatmul.bf16.gmra.mxu0 %v1577
  %v2938 = vpop.f32.mrf.mxu0
  %v2939 = vadd.f32 %v2890, %v2938
  %v2940 = vpop.f32.mrf.mxu0
  %v2941 = vadd.f32 %v2892, %v2940
  %2942 = vmatmul.bf16.gmra.mxu0 %v1580
  %v2943 = vpop.f32.mrf.mxu0
  %v2944 = vadd.f32 %v2895, %v2943
  %v2945 = vpop.f32.mrf.mxu0
  %v2946 = vadd.f32 %v2897, %v2945
  %2947 = vmatmul.bf16.gmra.mxu0 %v1583
  %v2948 = vpop.f32.mrf.mxu0
  %v2949 = vadd.f32 %v2900, %v2948
  %v2950 = vpop.f32.mrf.mxu0
  %v2951 = vadd.f32 %v2902, %v2950
  %2952 = vmatmul.bf16.gmra.mxu0 %v1586
  %v2953 = vpop.f32.mrf.mxu0
  %v2954 = vadd.f32 %v2905, %v2953
  %v2955 = vpop.f32.mrf.mxu0
  %v2956 = vadd.f32 %v2907, %v2955
  %2957 = vmatmul.bf16.gmra.mxu0 %v1589
  %v2958 = vpop.f32.mrf.mxu0
  %v2959 = vadd.f32 %v2910, %v2958
  %v2960 = vpop.f32.mrf.mxu0
  %v2961 = vadd.f32 %v2912, %v2960
  %2962 = vdwg.mxu0
  %v2963 = vmax.f32 %v1748, 0.0
  %v2964 = vmax.f32 %v1944, 0.0
  %v2965 = vmax.f32 %v2140, 0.0
  %v2966 = vmax.f32 %v2336, 0.0
  %v2967 = vmax.f32 %v2532, 0.0
  %v2968 = vmax.f32 %v2728, 0.0
  %v2969 = vmax.f32 %v2924, 0.0
  %v2970 = vmax.f32 %v1750, 0.0
  %v2971 = vmax.f32 %v1946, 0.0
  %v2972 = vmax.f32 %v2142, 0.0
  %v2973 = vmax.f32 %v2338, 0.0
  %v2974 = vmax.f32 %v2534, 0.0
  %v2975 = vmax.f32 %v2730, 0.0
  %v2976 = vmax.f32 %v2926, 0.0
  %v2977 = vmax.f32 %v1753, 0.0
  %v2978 = vmax.f32 %v1949, 0.0
  %v2979 = vmax.f32 %v2145, 0.0
  %v2980 = vmax.f32 %v2341, 0.0
  %v2981 = vmax.f32 %v2537, 0.0
  %v2982 = vmax.f32 %v2733, 0.0
  %v2983 = vmax.f32 %v2929, 0.0
  %v2984 = vmax.f32 %v1755, 0.0
  %v2985 = vmax.f32 %v1951, 0.0
  %v2986 = vmax.f32 %v2147, 0.0
  %v2987 = vmax.f32 %v2343, 0.0
  %v2988 = vmax.f32 %v2539, 0.0
  %v2989 = vmax.f32 %v2735, 0.0
  %v2990 = vmax.f32 %v2931, 0.0
  %v2991 = vmax.f32 %v1758, 0.0
  %v2992 = vmax.f32 %v1954, 0.0
  %v2993 = vmax.f32 %v2150, 0.0
  %v2994 = vmax.f32 %v2346, 0.0
  %v2995 = vmax.f32 %v2542, 0.0
  %v2996 = vmax.f32 %v2738, 0.0
  %v2997 = vmax.f32 %v2934, 0.0
  %v2998 = vmax.f32 %v1760, 0.0
  %v2999 = vmax.f32 %v1956, 0.0
  %v3000 = vmax.f32 %v2152, 0.0
  %v3001 = vmax.f32 %v2348, 0.0
  %v3002 = vmax.f32 %v2544, 0.0
  %v3003 = vmax.f32 %v2740, 0.0
  %v3004 = vmax.f32 %v2936, 0.0
  %v3005 = vmax.f32 %v1763, 0.0
  %v3006 = vmax.f32 %v1959, 0.0
  %v3007 = vmax.f32 %v2155, 0.0
  %v3008 = vmax.f32 %v2351, 0.0
  %v3009 = vmax.f32 %v2547, 0.0
  %v3010 = vmax.f32 %v2743, 0.0
  %v3011 = vmax.f32 %v2939, 0.0
  %v3012 = vmax.f32 %v1765, 0.0
  %v3013 = vmax.f32 %v1961, 0.0
  %v3014 = vmax.f32 %v2157, 0.0
  %v3015 = vmax.f32 %v2353, 0.0
  %v3016 = vmax.f32 %v2549, 0.0
  %v3017 = vmax.f32 %v2745, 0.0
  %v3018 = vmax.f32 %v2941, 0.0
  %v3019 = vmax.f32 %v1768, 0.0
  %v3020 = vmax.f32 %v1964, 0.0
  %v3021 = vmax.f32 %v2160, 0.0
  %v3022 = vmax.f32 %v2356, 0.0
  %v3023 = vmax.f32 %v2552, 0.0
  %v3024 = vmax.f32 %v2748, 0.0
  %v3025 = vmax.f32 %v2944, 0.0
  %v3026 = vmax.f32 %v1770, 0.0
  %v3027 = vmax.f32 %v1966, 0.0
  %v3028 = vmax.f32 %v2162, 0.0
  %v3029 = vmax.f32 %v2358, 0.0
  %v3030 = vmax.f32 %v2554, 0.0
  %v3031 = vmax.f32 %v2750, 0.0
  %v3032 = vmax.f32 %v2946, 0.0
  %v3033 = vmax.f32 %v1773, 0.0
  %v3034 = vmax.f32 %v1969, 0.0
  %v3035 = vmax.f32 %v2165, 0.0
  %v3036 = vmax.f32 %v2361, 0.0
  %v3037 = vmax.f32 %v2557, 0.0
  %v3038 = vmax.f32 %v2753, 0.0
  %v3039 = vmax.f32 %v2949, 0.0
  %v3040 = vmax.f32 %v1775, 0.0
  %v3041 = vmax.f32 %v1971, 0.0
  %v3042 = vmax.f32 %v2167, 0.0
  %v3043 = vmax.f32 %v2363, 0.0
  %v3044 = vmax.f32 %v2559, 0.0
  %v3045 = vmax.f32 %v2755, 0.0
  %v3046 = vmax.f32 %v2951, 0.0
  %v3047 = vmax.f32 %v1778, 0.0
  %v3048 = vmax.f32 %v1974, 0.0
  %v3049 = vmax.f32 %v2170, 0.0
  %v3050 = vmax.f32 %v2366, 0.0
  %v3051 = vmax.f32 %v2562, 0.0
  %v3052 = vmax.f32 %v2758, 0.0
  %v3053 = vmax.f32 %v2954, 0.0
  %v3054 = vmax.f32 %v1780, 0.0
  %v3055 = vmax.f32 %v1976, 0.0
  %v3056 = vmax.f32 %v2172, 0.0
  %v3057 = vmax.f32 %v2368, 0.0
  %v3058 = vmax.f32 %v2564, 0.0
  %v3059 = vmax.f32 %v2760, 0.0
  %v3060 = vmax.f32 %v2956, 0.0
  %v3061 = vmax.f32 %v1783, 0.0
  %v3062 = vmax.f32 %v1979, 0.0
  %v3063 = vmax.f32 %v2175, 0.0
  %v3064 = vmax.f32 %v2371, 0.0
  %v3065 = vmax.f32 %v2567, 0.0
  %v3066 = vmax.f32 %v2763, 0.0
  %v3067 = vmax.f32 %v2959, 0.0
  %v3068 = vmax.f32 %v1785, 0.0
  %v3069 = vmax.f32 %v1981, 0.0
  %v3070 = vmax.f32 %v2177, 0.0
  %v3071 = vmax.f32 %v2373, 0.0
  %v3072 = vmax.f32 %v2569, 0.0
  %v3073 = vmax.f32 %v2765, 0.0
  %v3074 = vmax.f32 %v2961, 0.0
  %v3075 = vpack.c.bf16 %v2970, %v2963
  %v3076 = vpack.c.bf16 %v2971, %v2964
  %v3077 = vpack.c.bf16 %v2972, %v2965
  %v3078 = vpack.c.bf16 %v2973, %v2966
  %v3079 = vpack.c.bf16 %v2974, %v2967
  %v3080 = vpack.c.bf16 %v2975, %v2968
  %v3081 = vpack.c.bf16 %v2976, %v2969
  %v3082 = vpack.c.bf16 %v2984, %v2977
  %v3083 = vpack.c.bf16 %v2985, %v2978
  %v3084 = vpack.c.bf16 %v2986, %v2979
  %v3085 = vpack.c.bf16 %v2987, %v2980
  %v3086 = vpack.c.bf16 %v2988, %v2981
  %v3087 = vpack.c.bf16 %v2989, %v2982
  %v3088 = vpack.c.bf16 %v2990, %v2983
  %v3089 = vpack.c.bf16 %v2998, %v2991
  %v3090 = vpack.c.bf16 %v2999, %v2992
  %v3091 = vpack.c.bf16 %v3000, %v2993
  %v3092 = vpack.c.bf16 %v3001, %v2994
  %v3093 = vpack.c.bf16 %v3002, %v2995
  %v3094 = vpack.c.bf16 %v3003, %v2996
  %v3095 = vpack.c.bf16 %v3004, %v2997
  %v3096 = vpack.c.bf16 %v3012, %v3005
  %v3097 = vpack.c.bf16 %v3013, %v3006
  %v3098 = vpack.c.bf16 %v3014, %v3007
  %v3099 = vpack.c.bf16 %v3015, %v3008
  %v3100 = vpack.c.bf16 %v3016, %v3009
  %v3101 = vpack.c.bf16 %v3017, %v3010
  %v3102 = vpack.c.bf16 %v3018, %v3011
  %v3103 = vpack.c.bf16 %v3026, %v3019
  %v3104 = vpack.c.bf16 %v3027, %v3020
  %v3105 = vpack.c.bf16 %v3028, %v3021
  %v3106 = vpack.c.bf16 %v3029, %v3022
  %v3107 = vpack.c.bf16 %v3030, %v3023
  %v3108 = vpack.c.bf16 %v3031, %v3024
  %v3109 = vpack.c.bf16 %v3032, %v3025
  %v3110 = vpack.c.bf16 %v3040, %v3033
  %v3111 = vpack.c.bf16 %v3041, %v3034
  %v3112 = vpack.c.bf16 %v3042, %v3035
  %v3113 = vpack.c.bf16 %v3043, %v3036
  %v3114 = vpack.c.bf16 %v3044, %v3037
  %v3115 = vpack.c.bf16 %v3045, %v3038
  %v3116 = vpack.c.bf16 %v3046, %v3039
  %v3117 = vpack.c.bf16 %v3054, %v3047
  %v3118 = vpack.c.bf16 %v3055, %v3048
  %v3119 = vpack.c.bf16 %v3056, %v3049
  %v3120 = vpack.c.bf16 %v3057, %v3050
  %v3121 = vpack.c.bf16 %v3058, %v3051
  %v3122 = vpack.c.bf16 %v3059, %v3052
  %v3123 = vpack.c.bf16 %v3060, %v3053
  %v3124 = vpack.c.bf16 %v3068, %v3061
  %v3125 = vpack.c.bf16 %v3069, %v3062
  %v3126 = vpack.c.bf16 %v3070, %v3063
  %v3127 = vpack.c.bf16 %v3071, %v3064
  %v3128 = vpack.c.bf16 %v3072, %v3065
  %v3129 = vpack.c.bf16 %v3073, %v3066
  %v3130 = vpack.c.bf16 %v3074, %v3067
  %v3131 = vld [vmem:[%s5] sm:$0xf]
  %v3132 = vld [vmem:[%s5 + $0x4] sm:$0xf]
  %v3133 = vld [vmem:[%s5 + $0x8] sm:$0xf]
  %v3134 = vld [vmem:[%s5 + $0xc] sm:$0xf]
  %v3135 = vld [vmem:[%s5 + $0x10] sm:$0xf]
  %v3136 = vld [vmem:[%s5 + $0x14] sm:$0xf]
  %v3137 = vld [vmem:[%s5 + $0x18] sm:$0xf]
  %v3138 = vld [vmem:[%s5 + $0x1c] sm:$0xf]
  %v3139 = vld [vmem:[%s5 + $0x20] sm:$0xf]
  %v3140 = vld [vmem:[%s5 + $0x24] sm:$0xf]
  %v3141 = vld [vmem:[%s5 + $0x28] sm:$0xf]
  %v3142 = vld [vmem:[%s5 + $0x2c] sm:$0xf]
  %v3143 = vld [vmem:[%s5 + $0x30] sm:$0xf]
  %v3144 = vld [vmem:[%s5 + $0x34] sm:$0xf]
  %v3145 = vld [vmem:[%s5 + $0x38] sm:$0xf]
  %v3146 = vld [vmem:[%s5 + $0x3c] sm:$0xf]
  %v3147 = vld [vmem:[%s5 + $0x40] sm:$0xf]
  %v3148 = vld [vmem:[%s5 + $0x44] sm:$0xf]
  %v3149 = vld [vmem:[%s5 + $0x48] sm:$0xf]
  %v3150 = vld [vmem:[%s5 + $0x4c] sm:$0xf]
  %v3151 = vld [vmem:[%s5 + $0x50] sm:$0xf]
  %v3152 = vld [vmem:[%s5 + $0x54] sm:$0xf]
  %v3153 = vld [vmem:[%s5 + $0x58] sm:$0xf]
  %v3154 = vld [vmem:[%s5 + $0x5c] sm:$0xf]
  %v3155 = vld [vmem:[%s5 + $0x60] sm:$0xf]
  %v3156 = vld [vmem:[%s5 + $0x64] sm:$0xf]
  %v3157 = vld [vmem:[%s5 + $0x68] sm:$0xf]
  %v3158 = vld [vmem:[%s5 + $0x6c] sm:$0xf]
  %v3159 = vld [vmem:[%s5 + $0x70] sm:$0xf]
  %v3160 = vld [vmem:[%s5 + $0x74] sm:$0xf]
  %v3161 = vld [vmem:[%s5 + $0x78] sm:$0xf]
  %v3162 = vld [vmem:[%s5 + $0x7c] sm:$0xf]
  %v3163 = vld [vmem:[%s5 + $0x80] sm:$0xf]
  %v3164 = vld [vmem:[%s5 + $0x84] sm:$0xf]
  %v3165 = vld [vmem:[%s5 + $0x88] sm:$0xf]
  %v3166 = vld [vmem:[%s5 + $0x8c] sm:$0xf]
  %v3167 = vld [vmem:[%s5 + $0x90] sm:$0xf]
  %v3168 = vld [vmem:[%s5 + $0x94] sm:$0xf]
  %v3169 = vld [vmem:[%s5 + $0x98] sm:$0xf]
  %v3170 = vld [vmem:[%s5 + $0x9c] sm:$0xf]
  %v3171 = vld [vmem:[%s5 + $0xa0] sm:$0xf]
  %v3172 = vld [vmem:[%s5 + $0xa4] sm:$0xf]
  %v3173 = vld [vmem:[%s5 + $0xa8] sm:$0xf]
  %v3174 = vld [vmem:[%s5 + $0xac] sm:$0xf]
  %v3175 = vld [vmem:[%s5 + $0xb0] sm:$0xf]
  %v3176 = vld [vmem:[%s5 + $0xb4] sm:$0xf]
  %v3177 = vld [vmem:[%s5 + $0xb8] sm:$0xf]
  %v3178 = vld [vmem:[%s5 + $0xbc] sm:$0xf]
  %v3179 = vld [vmem:[%s5 + $0xc0] sm:$0xf]
  %v3180 = vld [vmem:[%s5 + $0xc4] sm:$0xf]
  %v3181 = vld [vmem:[%s5 + $0xc8] sm:$0xf]
  %v3182 = vld [vmem:[%s5 + $0xcc] sm:$0xf]
  %v3183 = vld [vmem:[%s5 + $0xd0] sm:$0xf]
  %v3184 = vld [vmem:[%s5 + $0xd4] sm:$0xf]
  %v3185 = vld [vmem:[%s5 + $0xd8] sm:$0xf]
  %v3186 = vld [vmem:[%s5 + $0xdc] sm:$0xf]
  %v3187 = vld [vmem:[%s5 + $0xe0] sm:$0xf]
  %v3188 = vld [vmem:[%s5 + $0xe4] sm:$0xf]
  %v3189 = vld [vmem:[%s5 + $0xe8] sm:$0xf]
  %v3190 = vld [vmem:[%s5 + $0xec] sm:$0xf]
  %v3191 = vld [vmem:[%s5 + $0xf0] sm:$0xf]
  %v3192 = vld [vmem:[%s5 + $0xf4] sm:$0xf]
  %v3193 = vld [vmem:[%s5 + $0xf8] sm:$0xf]
  %v3194 = vld [vmem:[%s5 + $0xfc] sm:$0xf]
  %v3195 = vld [vmem:[%s5 + $0x100] sm:$0xf]
  %v3196 = vld [vmem:[%s5 + $0x104] sm:$0xf]
  %v3197 = vld [vmem:[%s5 + $0x108] sm:$0xf]
  %v3198 = vld [vmem:[%s5 + $0x10c] sm:$0xf]
  %v3199 = vld [vmem:[%s5 + $0x110] sm:$0xf]
  %v3200 = vld [vmem:[%s5 + $0x114] sm:$0xf]
  %v3201 = vld [vmem:[%s5 + $0x118] sm:$0xf]
  %v3202 = vld [vmem:[%s5 + $0x11c] sm:$0xf]
  %v3203 = vld [vmem:[%s5 + $0x120] sm:$0xf]
  %v3204 = vld [vmem:[%s5 + $0x124] sm:$0xf]
  %v3205 = vld [vmem:[%s5 + $0x128] sm:$0xf]
  %v3206 = vld [vmem:[%s5 + $0x12c] sm:$0xf]
  %v3207 = vld [vmem:[%s5 + $0x130] sm:$0xf]
  %v3208 = vld [vmem:[%s5 + $0x134] sm:$0xf]
  %v3209 = vld [vmem:[%s5 + $0x138] sm:$0xf]
  %v3210 = vld [vmem:[%s5 + $0x13c] sm:$0xf]
  %v3211 = vld [vmem:[%s5 + $0x140] sm:$0xf]
  %v3212 = vld [vmem:[%s5 + $0x144] sm:$0xf]
  %v3213 = vld [vmem:[%s5 + $0x148] sm:$0xf]
  %v3214 = vld [vmem:[%s5 + $0x14c] sm:$0xf]
  %v3215 = vld [vmem:[%s5 + $0x150] sm:$0xf]
  %v3216 = vld [vmem:[%s5 + $0x154] sm:$0xf]
  %v3217 = vld [vmem:[%s5 + $0x158] sm:$0xf]
  %v3218 = vld [vmem:[%s5 + $0x15c] sm:$0xf]
  %v3219 = vld [vmem:[%s5 + $0x160] sm:$0xf]
  %v3220 = vld [vmem:[%s5 + $0x164] sm:$0xf]
  %v3221 = vld [vmem:[%s5 + $0x168] sm:$0xf]
  %v3222 = vld [vmem:[%s5 + $0x16c] sm:$0xf]
  %v3223 = vld [vmem:[%s5 + $0x170] sm:$0xf]
  %v3224 = vld [vmem:[%s5 + $0x174] sm:$0xf]
  %v3225 = vld [vmem:[%s5 + $0x178] sm:$0xf]
  %v3226 = vld [vmem:[%s5 + $0x17c] sm:$0xf]
  %v3227 = vld [vmem:[%s5 + $0x180] sm:$0xf]
  %v3228 = vld [vmem:[%s5 + $0x184] sm:$0xf]
  %v3229 = vld [vmem:[%s6] sm:$0x1]
  %v3231 = vperm.slane %v3229, 0
  %v3331 = vunpack.c.l.b16 %v3131
  %v3332 = vunpack.c.l.b16 %v3132
  %v3333 = vunpack.c.l.b16 %v3133
  %v3334 = vunpack.c.l.b16 %v3134
  %v3335 = vunpack.c.l.b16 %v3135
  %v3336 = vunpack.c.l.b16 %v3136
  %v3337 = vunpack.c.l.b16 %v3137
  %v3338 = vunpack.c.l.b16 %v3138
  %v3339 = vunpack.c.l.b16 %v3139
  %v3340 = vunpack.c.l.b16 %v3140
  %v3341 = vunpack.c.l.b16 %v3141
  %v3342 = vunpack.c.l.b16 %v3142
  %v3343 = vunpack.c.l.b16 %v3143
  %v3344 = vunpack.c.l.b16 %v3144
  %v3345 = vunpack.c.l.b16 %v3145
  %v3346 = vunpack.c.l.b16 %v3146
  %v3347 = vunpack.c.l.b16 %v3147
  %v3348 = vunpack.c.l.b16 %v3148
  %v3349 = vunpack.c.l.b16 %v3149
  %v3350 = vunpack.c.l.b16 %v3150
  %v3351 = vunpack.c.l.b16 %v3151
  %v3352 = vunpack.c.l.b16 %v3152
  %v3353 = vunpack.c.l.b16 %v3153
  %v3354 = vunpack.c.l.b16 %v3154
  %v3355 = vunpack.c.l.b16 %v3155
  %v3356 = vunpack.c.l.b16 %v3156
  %v3357 = vunpack.c.l.b16 %v3157
  %v3358 = vunpack.c.l.b16 %v3158
  %v3359 = vunpack.c.l.b16 %v3159
  %v3360 = vunpack.c.l.b16 %v3160
  %v3361 = vunpack.c.l.b16 %v3161
  %v3362 = vunpack.c.l.b16 %v3162
  %v3363 = vunpack.c.l.b16 %v3163
  %v3364 = vunpack.c.l.b16 %v3164
  %v3365 = vunpack.c.l.b16 %v3165
  %v3366 = vunpack.c.l.b16 %v3166
  %v3367 = vunpack.c.l.b16 %v3167
  %v3368 = vunpack.c.l.b16 %v3168
  %v3369 = vunpack.c.l.b16 %v3169
  %v3370 = vunpack.c.l.b16 %v3170
  %v3371 = vunpack.c.l.b16 %v3171
  %v3372 = vunpack.c.l.b16 %v3172
  %v3373 = vunpack.c.l.b16 %v3173
  %v3374 = vunpack.c.l.b16 %v3174
  %v3375 = vunpack.c.l.b16 %v3175
  %v3376 = vunpack.c.l.b16 %v3176
  %v3377 = vunpack.c.l.b16 %v3177
  %v3378 = vunpack.c.l.b16 %v3178
  %v3379 = vunpack.c.l.b16 %v3179
  %v3380 = vunpack.c.l.b16 %v3180
  %v3381 = vunpack.c.l.b16 %v3181
  %v3382 = vunpack.c.l.b16 %v3182
  %v3383 = vunpack.c.l.b16 %v3183
  %v3384 = vunpack.c.l.b16 %v3184
  %v3385 = vunpack.c.l.b16 %v3185
  %v3386 = vunpack.c.l.b16 %v3186
  %v3387 = vunpack.c.l.b16 %v3187
  %v3388 = vunpack.c.l.b16 %v3188
  %v3389 = vunpack.c.l.b16 %v3189
  %v3390 = vunpack.c.l.b16 %v3190
  %v3391 = vunpack.c.l.b16 %v3191
  %v3392 = vunpack.c.l.b16 %v3192
  %v3393 = vunpack.c.l.b16 %v3193
  %v3394 = vunpack.c.l.b16 %v3194
  %v3395 = vunpack.c.l.b16 %v3195
  %v3396 = vunpack.c.l.b16 %v3196
  %v3397 = vunpack.c.l.b16 %v3197
  %v3398 = vunpack.c.l.b16 %v3198
  %v3399 = vunpack.c.l.b16 %v3199
  %v3400 = vunpack.c.l.b16 %v3200
  %v3401 = vunpack.c.l.b16 %v3201
  %v3402 = vunpack.c.l.b16 %v3202
  %v3403 = vunpack.c.l.b16 %v3203
  %v3404 = vunpack.c.l.b16 %v3204
  %v3405 = vunpack.c.l.b16 %v3205
  %v3406 = vunpack.c.l.b16 %v3206
  %v3407 = vunpack.c.l.b16 %v3207
  %v3408 = vunpack.c.l.b16 %v3208
  %v3409 = vunpack.c.l.b16 %v3209
  %v3410 = vunpack.c.l.b16 %v3210
  %v3411 = vunpack.c.l.b16 %v3211
  %v3412 = vunpack.c.l.b16 %v3212
  %v3413 = vunpack.c.l.b16 %v3213
  %v3414 = vunpack.c.l.b16 %v3214
  %v3415 = vunpack.c.l.b16 %v3215
  %v3416 = vunpack.c.l.b16 %v3216
  %v3417 = vunpack.c.l.b16 %v3217
  %v3418 = vunpack.c.l.b16 %v3218
  %v3419 = vunpack.c.l.b16 %v3219
  %v3420 = vunpack.c.l.b16 %v3220
  %v3421 = vunpack.c.l.b16 %v3221
  %v3422 = vunpack.c.l.b16 %v3222
  %v3423 = vunpack.c.l.b16 %v3223
  %v3424 = vunpack.c.l.b16 %v3224
  %v3425 = vunpack.c.l.b16 %v3225
  %v3426 = vunpack.c.l.b16 %v3226
  %v3427 = vunpack.c.l.b16 %v3227
  %v3428 = vunpack.c.l.b16 %v3228
  %v3429 = vpack.c.b16 %v3332, %v3331
  %v3430 = vpack.c.b16 %v3334, %v3333
  %v3431 = vpack.c.b16 %v3336, %v3335
  %v3432 = vpack.c.b16 %v3338, %v3337
  %v3433 = vpack.c.b16 %v3340, %v3339
  %v3434 = vpack.c.b16 %v3342, %v3341
  %v3435 = vpack.c.b16 %v3344, %v3343
  %v3436 = vpack.c.b16 %v3346, %v3345
  %v3437 = vpack.c.b16 %v3348, %v3347
  %v3438 = vpack.c.b16 %v3350, %v3349
  %v3439 = vpack.c.b16 %v3352, %v3351
  %v3440 = vpack.c.b16 %v3354, %v3353
  %v3441 = vpack.c.b16 %v3356, %v3355
  %v3442 = vpack.c.b16 %v3358, %v3357
  %v3443 = vpack.c.b16 %v3360, %v3359
  %v3444 = vpack.c.b16 %v3362, %v3361
  %v3445 = vpack.c.b16 %v3364, %v3363
  %v3446 = vpack.c.b16 %v3366, %v3365
  %v3447 = vpack.c.b16 %v3368, %v3367
  %v3448 = vpack.c.b16 %v3370, %v3369
  %v3449 = vpack.c.b16 %v3372, %v3371
  %v3450 = vpack.c.b16 %v3374, %v3373
  %v3451 = vpack.c.b16 %v3376, %v3375
  %v3452 = vpack.c.b16 %v3378, %v3377
  %v3453 = vpack.c.b16 %v3380, %v3379
  %v3454 = vpack.c.b16 %v3382, %v3381
  %v3455 = vpack.c.b16 %v3384, %v3383
  %v3456 = vpack.c.b16 %v3386, %v3385
  %v3457 = vpack.c.b16 %v3388, %v3387
  %v3458 = vpack.c.b16 %v3390, %v3389
  %v3459 = vpack.c.b16 %v3392, %v3391
  %v3460 = vpack.c.b16 %v3394, %v3393
  %v3461 = vpack.c.b16 %v3396, %v3395
  %v3462 = vpack.c.b16 %v3398, %v3397
  %v3463 = vpack.c.b16 %v3400, %v3399
  %v3464 = vpack.c.b16 %v3402, %v3401
  %v3465 = vpack.c.b16 %v3404, %v3403
  %v3466 = vpack.c.b16 %v3406, %v3405
  %v3467 = vpack.c.b16 %v3408, %v3407
  %v3468 = vpack.c.b16 %v3410, %v3409
  %v3469 = vpack.c.b16 %v3412, %v3411
  %v3470 = vpack.c.b16 %v3414, %v3413
  %v3471 = vpack.c.b16 %v3416, %v3415
  %v3472 = vpack.c.b16 %v3418, %v3417
  %v3473 = vpack.c.b16 %v3420, %v3419
  %v3474 = vpack.c.b16 %v3422, %v3421
  %v3475 = vpack.c.b16 %v3424, %v3423
  %v3476 = vpack.c.b16 %v3426, %v3425
  %v3477 = vpack.c.b16 %v3428, %v3427
  %v3528 = vsel %vm1566, %v3081, 0
  %v3531 = vsel %vm1566, %v3088, 0
  %v3534 = vsel %vm1566, %v3095, 0
  %v3537 = vsel %vm1566, %v3102, 0
  %v3540 = vsel %vm1566, %v3109, 0
  %v3543 = vsel %vm1566, %v3116, 0
  %v3546 = vsel %vm1566, %v3123, 0
  %v3549 = vsel %vm1566, %v3130, 0
  %3551 = vmatpush.bf16.msra.mxu0 %v3436
  %3552 = vmatpush.bf16.msra.mxu0 %v3435
  %3553 = vmatpush.bf16.msra.mxu0 %v3434
  %3554 = vmatpush.bf16.msra.mxu0 %v3433
  %3555 = vmatpush.bf16.msra.mxu0 %v3432
  %3556 = vmatpush.bf16.msra.mxu0 %v3431
  %3557 = vmatpush.bf16.msra.mxu0 %v3430
  %3558 = vmatpush.bf16.msra.mxu0 %v3429
  %3559 = vmatmul.bf16.gmra.mxu0 %v3075
  %v3560 = vpop.f32.mrf.mxu0
  %v3561 = vadd.f32 %v3231, %v3560
  %v3562 = vpop.f32.mrf.mxu0
  %v3563 = vadd.f32 %v3231, %v3562
  %3564 = vmatmul.bf16.gmra.mxu0 %v3082
  %v3565 = vpop.f32.mrf.mxu0
  %v3566 = vadd.f32 %v3231, %v3565
  %v3567 = vpop.f32.mrf.mxu0
  %v3568 = vadd.f32 %v3231, %v3567
  %3569 = vmatmul.bf16.gmra.mxu0 %v3089
  %v3570 = vpop.f32.mrf.mxu0
  %v3571 = vadd.f32 %v3231, %v3570
  %v3572 = vpop.f32.mrf.mxu0
  %v3573 = vadd.f32 %v3231, %v3572
  %3574 = vmatmul.bf16.gmra.mxu0 %v3096
  %v3575 = vpop.f32.mrf.mxu0
  %v3576 = vadd.f32 %v3231, %v3575
  %v3577 = vpop.f32.mrf.mxu0
  %v3578 = vadd.f32 %v3231, %v3577
  %3579 = vmatmul.bf16.gmra.mxu0 %v3103
  %v3580 = vpop.f32.mrf.mxu0
  %v3581 = vadd.f32 %v3231, %v3580
  %v3582 = vpop.f32.mrf.mxu0
  %v3583 = vadd.f32 %v3231, %v3582
  %3584 = vmatmul.bf16.gmra.mxu0 %v3110
  %v3585 = vpop.f32.mrf.mxu0
  %v3586 = vadd.f32 %v3231, %v3585
  %v3587 = vpop.f32.mrf.mxu0
  %v3588 = vadd.f32 %v3231, %v3587
  %3589 = vmatmul.bf16.gmra.mxu0 %v3117
  %v3590 = vpop.f32.mrf.mxu0
  %v3591 = vadd.f32 %v3231, %v3590
  %v3592 = vpop.f32.mrf.mxu0
  %v3593 = vadd.f32 %v3231, %v3592
  %3594 = vmatmul.bf16.gmra.mxu0 %v3124
  %v3595 = vpop.f32.mrf.mxu0
  %v3596 = vadd.f32 %v3231, %v3595
  %v3597 = vpop.f32.mrf.mxu0
  %v3598 = vadd.f32 %v3231, %v3597
  %3599 = vdwg.mxu0
  %3600 = vmatpush.bf16.msra.mxu0 %v3444
  %3601 = vmatpush.bf16.msra.mxu0 %v3443
  %3602 = vmatpush.bf16.msra.mxu0 %v3442
  %3603 = vmatpush.bf16.msra.mxu0 %v3441
  %3604 = vmatpush.bf16.msra.mxu0 %v3440
  %3605 = vmatpush.bf16.msra.mxu0 %v3439
  %3606 = vmatpush.bf16.msra.mxu0 %v3438
  %3607 = vmatpush.bf16.msra.mxu0 %v3437
  %3608 = vmatmul.bf16.gmra.mxu0 %v3076
  %v3609 = vpop.f32.mrf.mxu0
  %v3610 = vadd.f32 %v3561, %v3609
  %v3611 = vpop.f32.mrf.mxu0
  %v3612 = vadd.f32 %v3563, %v3611
  %3613 = vmatmul.bf16.gmra.mxu0 %v3083
  %v3614 = vpop.f32.mrf.mxu0
  %v3615 = vadd.f32 %v3566, %v3614
  %v3616 = vpop.f32.mrf.mxu0
  %v3617 = vadd.f32 %v3568, %v3616
  %3618 = vmatmul.bf16.gmra.mxu0 %v3090
  %v3619 = vpop.f32.mrf.mxu0
  %v3620 = vadd.f32 %v3571, %v3619
  %v3621 = vpop.f32.mrf.mxu0
  %v3622 = vadd.f32 %v3573, %v3621
  %3623 = vmatmul.bf16.gmra.mxu0 %v3097
  %v3624 = vpop.f32.mrf.mxu0
  %v3625 = vadd.f32 %v3576, %v3624
  %v3626 = vpop.f32.mrf.mxu0
  %v3627 = vadd.f32 %v3578, %v3626
  %3628 = vmatmul.bf16.gmra.mxu0 %v3104
  %v3629 = vpop.f32.mrf.mxu0
  %v3630 = vadd.f32 %v3581, %v3629
  %v3631 = vpop.f32.mrf.mxu0
  %v3632 = vadd.f32 %v3583, %v3631
  %3633 = vmatmul.bf16.gmra.mxu0 %v3111
  %v3634 = vpop.f32.mrf.mxu0
  %v3635 = vadd.f32 %v3586, %v3634
  %v3636 = vpop.f32.mrf.mxu0
  %v3637 = vadd.f32 %v3588, %v3636
  %3638 = vmatmul.bf16.gmra.mxu0 %v3118
  %v3639 = vpop.f32.mrf.mxu0
  %v3640 = vadd.f32 %v3591, %v3639
  %v3641 = vpop.f32.mrf.mxu0
  %v3642 = vadd.f32 %v3593, %v3641
  %3643 = vmatmul.bf16.gmra.mxu0 %v3125
  %v3644 = vpop.f32.mrf.mxu0
  %v3645 = vadd.f32 %v3596, %v3644
  %v3646 = vpop.f32.mrf.mxu0
  %v3647 = vadd.f32 %v3598, %v3646
  %3648 = vdwg.mxu0
  %3649 = vmatpush.bf16.msra.mxu0 %v3452
  %3650 = vmatpush.bf16.msra.mxu0 %v3451
  %3651 = vmatpush.bf16.msra.mxu0 %v3450
  %3652 = vmatpush.bf16.msra.mxu0 %v3449
  %3653 = vmatpush.bf16.msra.mxu0 %v3448
  %3654 = vmatpush.bf16.msra.mxu0 %v3447
  %3655 = vmatpush.bf16.msra.mxu0 %v3446
  %3656 = vmatpush.bf16.msra.mxu0 %v3445
  %3657 = vmatmul.bf16.gmra.mxu0 %v3077
  %v3658 = vpop.f32.mrf.mxu0
  %v3659 = vadd.f32 %v3610, %v3658
  %v3660 = vpop.f32.mrf.mxu0
  %v3661 = vadd.f32 %v3612, %v3660
  %3662 = vmatmul.bf16.gmra.mxu0 %v3084
  %v3663 = vpop.f32.mrf.mxu0
  %v3664 = vadd.f32 %v3615, %v3663
  %v3665 = vpop.f32.mrf.mxu0
  %v3666 = vadd.f32 %v3617, %v3665
  %3667 = vmatmul.bf16.gmra.mxu0 %v3091
  %v3668 = vpop.f32.mrf.mxu0
  %v3669 = vadd.f32 %v3620, %v3668
  %v3670 = vpop.f32.mrf.mxu0
  %v3671 = vadd.f32 %v3622, %v3670
  %3672 = vmatmul.bf16.gmra.mxu0 %v3098
  %v3673 = vpop.f32.mrf.mxu0
  %v3674 = vadd.f32 %v3625, %v3673
  %v3675 = vpop.f32.mrf.mxu0
  %v3676 = vadd.f32 %v3627, %v3675
  %3677 = vmatmul.bf16.gmra.mxu0 %v3105
  %v3678 = vpop.f32.mrf.mxu0
  %v3679 = vadd.f32 %v3630, %v3678
  %v3680 = vpop.f32.mrf.mxu0
  %v3681 = vadd.f32 %v3632, %v3680
  %3682 = vmatmul.bf16.gmra.mxu0 %v3112
  %v3683 = vpop.f32.mrf.mxu0
  %v3684 = vadd.f32 %v3635, %v3683
  %v3685 = vpop.f32.mrf.mxu0
  %v3686 = vadd.f32 %v3637, %v3685
  %3687 = vmatmul.bf16.gmra.mxu0 %v3119
  %v3688 = vpop.f32.mrf.mxu0
  %v3689 = vadd.f32 %v3640, %v3688
  %v3690 = vpop.f32.mrf.mxu0
  %v3691 = vadd.f32 %v3642, %v3690
  %3692 = vmatmul.bf16.gmra.mxu0 %v3126
  %v3693 = vpop.f32.mrf.mxu0
  %v3694 = vadd.f32 %v3645, %v3693
  %v3695 = vpop.f32.mrf.mxu0
  %v3696 = vadd.f32 %v3647, %v3695
  %3697 = vdwg.mxu0
  %3698 = vmatpush.bf16.msra.mxu0 %v3460
  %3699 = vmatpush.bf16.msra.mxu0 %v3459
  %3700 = vmatpush.bf16.msra.mxu0 %v3458
  %3701 = vmatpush.bf16.msra.mxu0 %v3457
  %3702 = vmatpush.bf16.msra.mxu0 %v3456
  %3703 = vmatpush.bf16.msra.mxu0 %v3455
  %3704 = vmatpush.bf16.msra.mxu0 %v3454
  %3705 = vmatpush.bf16.msra.mxu0 %v3453
  %3706 = vmatmul.bf16.gmra.mxu0 %v3078
  %v3707 = vpop.f32.mrf.mxu0
  %v3708 = vadd.f32 %v3659, %v3707
  %v3709 = vpop.f32.mrf.mxu0
  %v3710 = vadd.f32 %v3661, %v3709
  %3711 = vmatmul.bf16.gmra.mxu0 %v3085
  %v3712 = vpop.f32.mrf.mxu0
  %v3713 = vadd.f32 %v3664, %v3712
  %v3714 = vpop.f32.mrf.mxu0
  %v3715 = vadd.f32 %v3666, %v3714
  %3716 = vmatmul.bf16.gmra.mxu0 %v3092
  %v3717 = vpop.f32.mrf.mxu0
  %v3718 = vadd.f32 %v3669, %v3717
  %v3719 = vpop.f32.mrf.mxu0
  %v3720 = vadd.f32 %v3671, %v3719
  %3721 = vmatmul.bf16.gmra.mxu0 %v3099
  %v3722 = vpop.f32.mrf.mxu0
  %v3723 = vadd.f32 %v3674, %v3722
  %v3724 = vpop.f32.mrf.mxu0
  %v3725 = vadd.f32 %v3676, %v3724
  %3726 = vmatmul.bf16.gmra.mxu0 %v3106
  %v3727 = vpop.f32.mrf.mxu0
  %v3728 = vadd.f32 %v3679, %v3727
  %v3729 = vpop.f32.mrf.mxu0
  %v3730 = vadd.f32 %v3681, %v3729
  %3731 = vmatmul.bf16.gmra.mxu0 %v3113
  %v3732 = vpop.f32.mrf.mxu0
  %v3733 = vadd.f32 %v3684, %v3732
  %v3734 = vpop.f32.mrf.mxu0
  %v3735 = vadd.f32 %v3686, %v3734
  %3736 = vmatmul.bf16.gmra.mxu0 %v3120
  %v3737 = vpop.f32.mrf.mxu0
  %v3738 = vadd.f32 %v3689, %v3737
  %v3739 = vpop.f32.mrf.mxu0
  %v3740 = vadd.f32 %v3691, %v3739
  %3741 = vmatmul.bf16.gmra.mxu0 %v3127
  %v3742 = vpop.f32.mrf.mxu0
  %v3743 = vadd.f32 %v3694, %v3742
  %v3744 = vpop.f32.mrf.mxu0
  %v3745 = vadd.f32 %v3696, %v3744
  %3746 = vdwg.mxu0
  %3747 = vmatpush.bf16.msra.mxu0 %v3468
  %3748 = vmatpush.bf16.msra.mxu0 %v3467
  %3749 = vmatpush.bf16.msra.mxu0 %v3466
  %3750 = vmatpush.bf16.msra.mxu0 %v3465
  %3751 = vmatpush.bf16.msra.mxu0 %v3464
  %3752 = vmatpush.bf16.msra.mxu0 %v3463
  %3753 = vmatpush.bf16.msra.mxu0 %v3462
  %3754 = vmatpush.bf16.msra.mxu0 %v3461
  %3755 = vmatmul.bf16.gmra.mxu0 %v3079
  %v3756 = vpop.f32.mrf.mxu0
  %v3757 = vadd.f32 %v3708, %v3756
  %v3758 = vpop.f32.mrf.mxu0
  %v3759 = vadd.f32 %v3710, %v3758
  %3760 = vmatmul.bf16.gmra.mxu0 %v3086
  %v3761 = vpop.f32.mrf.mxu0
  %v3762 = vadd.f32 %v3713, %v3761
  %v3763 = vpop.f32.mrf.mxu0
  %v3764 = vadd.f32 %v3715, %v3763
  %3765 = vmatmul.bf16.gmra.mxu0 %v3093
  %v3766 = vpop.f32.mrf.mxu0
  %v3767 = vadd.f32 %v3718, %v3766
  %v3768 = vpop.f32.mrf.mxu0
  %v3769 = vadd.f32 %v3720, %v3768
  %3770 = vmatmul.bf16.gmra.mxu0 %v3100
  %v3771 = vpop.f32.mrf.mxu0
  %v3772 = vadd.f32 %v3723, %v3771
  %v3773 = vpop.f32.mrf.mxu0
  %v3774 = vadd.f32 %v3725, %v3773
  %3775 = vmatmul.bf16.gmra.mxu0 %v3107
  %v3776 = vpop.f32.mrf.mxu0
  %v3777 = vadd.f32 %v3728, %v3776
  %v3778 = vpop.f32.mrf.mxu0
  %v3779 = vadd.f32 %v3730, %v3778
  %3780 = vmatmul.bf16.gmra.mxu0 %v3114
  %v3781 = vpop.f32.mrf.mxu0
  %v3782 = vadd.f32 %v3733, %v3781
  %v3783 = vpop.f32.mrf.mxu0
  %v3784 = vadd.f32 %v3735, %v3783
  %3785 = vmatmul.bf16.gmra.mxu0 %v3121
  %v3786 = vpop.f32.mrf.mxu0
  %v3787 = vadd.f32 %v3738, %v3786
  %v3788 = vpop.f32.mrf.mxu0
  %v3789 = vadd.f32 %v3740, %v3788
  %3790 = vmatmul.bf16.gmra.mxu0 %v3128
  %v3791 = vpop.f32.mrf.mxu0
  %v3792 = vadd.f32 %v3743, %v3791
  %v3793 = vpop.f32.mrf.mxu0
  %v3794 = vadd.f32 %v3745, %v3793
  %3795 = vdwg.mxu0
  %3796 = vmatpush.bf16.msra.mxu0 %v3476
  %3797 = vmatpush.bf16.msra.mxu0 %v3475
  %3798 = vmatpush.bf16.msra.mxu0 %v3474
  %3799 = vmatpush.bf16.msra.mxu0 %v3473
  %3800 = vmatpush.bf16.msra.mxu0 %v3472
  %3801 = vmatpush.bf16.msra.mxu0 %v3471
  %3802 = vmatpush.bf16.msra.mxu0 %v3470
  %3803 = vmatpush.bf16.msra.mxu0 %v3469
  %3804 = vmatmul.bf16.gmra.mxu0 %v3080
  %v3805 = vpop.f32.mrf.mxu0
  %v3806 = vadd.f32 %v3757, %v3805
  %v3807 = vpop.f32.mrf.mxu0
  %v3808 = vadd.f32 %v3759, %v3807
  %3809 = vmatmul.bf16.gmra.mxu0 %v3087
  %v3810 = vpop.f32.mrf.mxu0
  %v3811 = vadd.f32 %v3762, %v3810
  %v3812 = vpop.f32.mrf.mxu0
  %v3813 = vadd.f32 %v3764, %v3812
  %3814 = vmatmul.bf16.gmra.mxu0 %v3094
  %v3815 = vpop.f32.mrf.mxu0
  %v3816 = vadd.f32 %v3767, %v3815
  %v3817 = vpop.f32.mrf.mxu0
  %v3818 = vadd.f32 %v3769, %v3817
  %3819 = vmatmul.bf16.gmra.mxu0 %v3101
  %v3820 = vpop.f32.mrf.mxu0
  %v3821 = vadd.f32 %v3772, %v3820
  %v3822 = vpop.f32.mrf.mxu0
  %v3823 = vadd.f32 %v3774, %v3822
  %3824 = vmatmul.bf16.gmra.mxu0 %v3108
  %v3825 = vpop.f32.mrf.mxu0
  %v3826 = vadd.f32 %v3777, %v3825
  %v3827 = vpop.f32.mrf.mxu0
  %v3828 = vadd.f32 %v3779, %v3827
  %3829 = vmatmul.bf16.gmra.mxu0 %v3115
  %v3830 = vpop.f32.mrf.mxu0
  %v3831 = vadd.f32 %v3782, %v3830
  %v3832 = vpop.f32.mrf.mxu0
  %v3833 = vadd.f32 %v3784, %v3832
  %3834 = vmatmul.bf16.gmra.mxu0 %v3122
  %v3835 = vpop.f32.mrf.mxu0
  %v3836 = vadd.f32 %v3787, %v3835
  %v3837 = vpop.f32.mrf.mxu0
  %v3838 = vadd.f32 %v3789, %v3837
  %3839 = vmatmul.bf16.gmra.mxu0 %v3129
  %v3840 = vpop.f32.mrf.mxu0
  %v3841 = vadd.f32 %v3792, %v3840
  %v3842 = vpop.f32.mrf.mxu0
  %v3843 = vadd.f32 %v3794, %v3842
  %3844 = vdwg.mxu0
  %3845 = vmatpush.bf16.msra.mxu0 0
  %3846 = vmatpush.bf16.msra.mxu0 0
  %3847 = vmatpush.bf16.msra.mxu0 0
  %3848 = vmatpush.bf16.msra.mxu0 0
  %3849 = vmatpush.bf16.msra.mxu0 0
  %3850 = vmatpush.bf16.msra.mxu0 0
  %3851 = vmatpush.bf16.msra.mxu0 0
  %3852 = vmatpush.bf16.msra.mxu0 %v3477
  %3853 = vmatmul.bf16.gmra.mxu0 %v3528
  %v3854 = vpop.f32.mrf.mxu0
  %v3855 = vadd.f32 %v3806, %v3854
  %v3856 = vpop.f32.mrf.mxu0
  %v3857 = vadd.f32 %v3808, %v3856
  %3858 = vmatmul.bf16.gmra.mxu0 %v3531
  %v3859 = vpop.f32.mrf.mxu0
  %v3860 = vadd.f32 %v3811, %v3859
  %v3861 = vpop.f32.mrf.mxu0
  %v3862 = vadd.f32 %v3813, %v3861
  %3863 = vmatmul.bf16.gmra.mxu0 %v3534
  %v3864 = vpop.f32.mrf.mxu0
  %v3865 = vadd.f32 %v3816, %v3864
  %v3866 = vpop.f32.mrf.mxu0
  %v3867 = vadd.f32 %v3818, %v3866
  %3868 = vmatmul.bf16.gmra.mxu0 %v3537
  %v3869 = vpop.f32.mrf.mxu0
  %v3870 = vadd.f32 %v3821, %v3869
  %v3871 = vpop.f32.mrf.mxu0
  %v3872 = vadd.f32 %v3823, %v3871
  %3873 = vmatmul.bf16.gmra.mxu0 %v3540
  %v3874 = vpop.f32.mrf.mxu0
  %v3875 = vadd.f32 %v3826, %v3874
  %v3876 = vpop.f32.mrf.mxu0
  %v3877 = vadd.f32 %v3828, %v3876
  %3878 = vmatmul.bf16.gmra.mxu0 %v3543
  %v3879 = vpop.f32.mrf.mxu0
  %v3880 = vadd.f32 %v3831, %v3879
  %v3881 = vpop.f32.mrf.mxu0
  %v3882 = vadd.f32 %v3833, %v3881
  %3883 = vmatmul.bf16.gmra.mxu0 %v3546
  %v3884 = vpop.f32.mrf.mxu0
  %v3885 = vadd.f32 %v3836, %v3884
  %v3886 = vpop.f32.mrf.mxu0
  %v3887 = vadd.f32 %v3838, %v3886
  %3888 = vmatmul.bf16.gmra.mxu0 %v3549
  %v3889 = vpop.f32.mrf.mxu0
  %v3890 = vadd.f32 %v3841, %v3889
  %v3891 = vpop.f32.mrf.mxu0
  %v3892 = vadd.f32 %v3843, %v3891
  %3893 = vdwg.mxu0
  %v3894 = vmax.f32 %v3855, 0.0
  %v3895 = vmax.f32 %v3857, 0.0
  %v3896 = vmax.f32 %v3860, 0.0
  %v3897 = vmax.f32 %v3862, 0.0
  %v3898 = vmax.f32 %v3865, 0.0
  %v3899 = vmax.f32 %v3867, 0.0
  %v3900 = vmax.f32 %v3870, 0.0
  %v3901 = vmax.f32 %v3872, 0.0
  %v3902 = vmax.f32 %v3875, 0.0
  %v3903 = vmax.f32 %v3877, 0.0
  %v3904 = vmax.f32 %v3880, 0.0
  %v3905 = vmax.f32 %v3882, 0.0
  %v3906 = vmax.f32 %v3885, 0.0
  %v3907 = vmax.f32 %v3887, 0.0
  %v3908 = vmax.f32 %v3890, 0.0
  %v3909 = vmax.f32 %v3892, 0.0
  %3910 = vxpose.xlu0.b32.start [1/16] %v3894, 128
  %3911 = vxpose.xlu0.b32.cont [2/16] %v3895, 128
  %3912 = vxpose.xlu0.b32.cont [3/16] %v3896, 128
  %3913 = vxpose.xlu0.b32.cont [4/16] %v3897, 128
  %3914 = vxpose.xlu0.b32.cont [5/16] %v3898, 128
  %3915 = vxpose.xlu0.b32.cont [6/16] %v3899, 128
  %3916 = vxpose.xlu0.b32.cont [7/16] %v3900, 128
  %3917 = vxpose.xlu0.b32.cont [8/16] %v3901, 128
  %3918 = vxpose.xlu0.b32.cont [9/16] 0.0, 128
  %3919 = vxpose.xlu0.b32.cont [10/16] 0.0, 128
  %3920 = vxpose.xlu0.b32.cont [11/16] 0.0, 128
  %3921 = vxpose.xlu0.b32.cont [12/16] 0.0, 128
  %3922 = vxpose.xlu0.b32.cont [13/16] 0.0, 128
  %3923 = vxpose.xlu0.b32.cont [14/16] 0.0, 128
  %3924 = vxpose.xlu0.b32.cont [15/16] 0.0, 128
  %3925 = vxpose.xlu0.b32.end [16/16] 0.0, 128
  %v3926 = vpop.trf.xlu0
  %v3927 = vpop.trf.xlu0
  %v3928 = vpop.trf.xlu0
  %v3929 = vpop.trf.xlu0
  %v3930 = vpop.trf.xlu0
  %v3931 = vpop.trf.xlu0
  %v3932 = vpop.trf.xlu0
  %v3933 = vpop.trf.xlu0
  %v3934 = vpop.trf.xlu0
  %v3935 = vpop.trf.xlu0
  %v3936 = vpop.trf.xlu0
  %v3937 = vpop.trf.xlu0
  %v3938 = vpop.trf.xlu0
  %v3939 = vpop.trf.xlu0
  %v3940 = vpop.trf.xlu0
  %v3941 = vpop.trf.xlu0
  %3942 = vxpose.xlu0.b32.start [1/16] %v3902, 128
  %3943 = vxpose.xlu0.b32.cont [2/16] %v3903, 128
  %3944 = vxpose.xlu0.b32.cont [3/16] %v3904, 128
  %3945 = vxpose.xlu0.b32.cont [4/16] %v3905, 128
  %3946 = vxpose.xlu0.b32.cont [5/16] %v3906, 128
  %3947 = vxpose.xlu0.b32.cont [6/16] %v3907, 128
  %3948 = vxpose.xlu0.b32.cont [7/16] %v3908, 128
  %3949 = vxpose.xlu0.b32.cont [8/16] %v3909, 128
  %3950 = vxpose.xlu0.b32.cont [9/16] 0.0, 128
  %3951 = vxpose.xlu0.b32.cont [10/16] 0.0, 128
  %3952 = vxpose.xlu0.b32.cont [11/16] 0.0, 128
  %3953 = vxpose.xlu0.b32.cont [12/16] 0.0, 128
  %3954 = vxpose.xlu0.b32.cont [13/16] 0.0, 128
  %3955 = vxpose.xlu0.b32.cont [14/16] 0.0, 128
  %3956 = vxpose.xlu0.b32.cont [15/16] 0.0, 128
  %3957 = vxpose.xlu0.b32.end [16/16] 0.0, 128
  %v3958 = vpop.trf.xlu0
  %v3959 = vpop.trf.xlu0
  %v3960 = vpop.trf.xlu0
  %v3961 = vpop.trf.xlu0
  %v3962 = vpop.trf.xlu0
  %v3963 = vpop.trf.xlu0
  %v3964 = vpop.trf.xlu0
  %v3965 = vpop.trf.xlu0
  %v3966 = vpop.trf.xlu0
  %v3967 = vpop.trf.xlu0
  %v3968 = vpop.trf.xlu0
  %v3969 = vpop.trf.xlu0
  %v3970 = vpop.trf.xlu0
  %v3971 = vpop.trf.xlu0
  %v3972 = vpop.trf.xlu0
  %v3973 = vpop.trf.xlu0
  %v3974 = vlaneseq
  %v3975 = vshrl.u32 %v3974, 7
  %v3976 = vadd.s32 %v3975, 8
  %v3977 = vadd.s32 %v3975, 16
  %v3978 = vadd.s32 %v3975, 24
  %v3979 = vadd.s32 %v3975, 32
  %v3980 = vadd.s32 %v3975, 40
  %v3981 = vadd.s32 %v3975, 48
  %v3982 = vadd.s32 %v3975, 56
  %v3983 = vadd.s32 %v3975, 64
  %v3984 = vadd.s32 %v3975, 72
  %v3985 = vadd.s32 %v3975, 80
  %v3986 = vadd.s32 %v3975, 88
  %v3987 = vadd.s32 %v3975, 96
  %v3988 = vadd.s32 %v3975, 104
  %v3989 = vadd.s32 %v3975, 112
  %v3990 = vadd.s32 %v3975, 120
  %vm3991 = vcmp.lt.s32.totalorder %v3975, 0
  %v3992 = vsub.s32 0, %v3975
  %v3993 = vsel %vm3991, %v3992, %v3975
  %v3994 = vshrl.u32 %v3993, 6
  %v3995 = vand.u32 %v3993, 63
  %v3996 = vsub.s32 0, %v3995
  %v3997 = vsel %vm3991, %v3996, %v3995
  %vm3998 = vcmp.lt.s32.totalorder %v3976, 0
  %v3999 = vsub.s32 0, %v3976
  %v4000 = vsel %vm3998, %v3999, %v3976
  %v4001 = vshrl.u32 %v4000, 6
  %v4002 = vand.u32 %v4000, 63
  %v4003 = vsub.s32 0, %v4002
  %v4004 = vsel %vm3998, %v4003, %v4002
  %vm4005 = vcmp.lt.s32.totalorder %v3977, 0
  %v4006 = vsub.s32 0, %v3977
  %v4007 = vsel %vm4005, %v4006, %v3977
  %v4008 = vshrl.u32 %v4007, 6
  %v4009 = vand.u32 %v4007, 63
  %v4010 = vsub.s32 0, %v4009
  %v4011 = vsel %vm4005, %v4010, %v4009
  %vm4012 = vcmp.lt.s32.totalorder %v3978, 0
  %v4013 = vsub.s32 0, %v3978
  %v4014 = vsel %vm4012, %v4013, %v3978
  %v4015 = vshrl.u32 %v4014, 6
  %v4016 = vand.u32 %v4014, 63
  %v4017 = vsub.s32 0, %v4016
  %v4018 = vsel %vm4012, %v4017, %v4016
  %vm4019 = vcmp.lt.s32.totalorder %v3979, 0
  %v4020 = vsub.s32 0, %v3979
  %v4021 = vsel %vm4019, %v4020, %v3979
  %v4022 = vshrl.u32 %v4021, 6
  %v4023 = vand.u32 %v4021, 63
  %v4024 = vsub.s32 0, %v4023
  %v4025 = vsel %vm4019, %v4024, %v4023
  %vm4026 = vcmp.lt.s32.totalorder %v3980, 0
  %v4027 = vsub.s32 0, %v3980
  %v4028 = vsel %vm4026, %v4027, %v3980
  %v4029 = vshrl.u32 %v4028, 6
  %v4030 = vand.u32 %v4028, 63
  %v4031 = vsub.s32 0, %v4030
  %v4032 = vsel %vm4026, %v4031, %v4030
  %vm4033 = vcmp.lt.s32.totalorder %v3981, 0
  %v4034 = vsub.s32 0, %v3981
  %v4035 = vsel %vm4033, %v4034, %v3981
  %v4036 = vshrl.u32 %v4035, 6
  %v4037 = vand.u32 %v4035, 63
  %v4038 = vsub.s32 0, %v4037
  %v4039 = vsel %vm4033, %v4038, %v4037
  %vm4040 = vcmp.lt.s32.totalorder %v3982, 0
  %v4041 = vsub.s32 0, %v3982
  %v4042 = vsel %vm4040, %v4041, %v3982
  %v4043 = vshrl.u32 %v4042, 6
  %v4044 = vand.u32 %v4042, 63
  %v4045 = vsub.s32 0, %v4044
  %v4046 = vsel %vm4040, %v4045, %v4044
  %vm4047 = vcmp.lt.s32.totalorder %v3983, 0
  %v4048 = vsub.s32 0, %v3983
  %v4049 = vsel %vm4047, %v4048, %v3983
  %v4050 = vshrl.u32 %v4049, 6
  %v4051 = vand.u32 %v4049, 63
  %v4052 = vsub.s32 0, %v4051
  %v4053 = vsel %vm4047, %v4052, %v4051
  %vm4054 = vcmp.lt.s32.totalorder %v3984, 0
  %v4055 = vsub.s32 0, %v3984
  %v4056 = vsel %vm4054, %v4055, %v3984
  %v4057 = vshrl.u32 %v4056, 6
  %v4058 = vand.u32 %v4056, 63
  %v4059 = vsub.s32 0, %v4058
  %v4060 = vsel %vm4054, %v4059, %v4058
  %vm4061 = vcmp.lt.s32.totalorder %v3985, 0
  %v4062 = vsub.s32 0, %v3985
  %v4063 = vsel %vm4061, %v4062, %v3985
  %v4064 = vshrl.u32 %v4063, 6
  %v4065 = vand.u32 %v4063, 63
  %v4066 = vsub.s32 0, %v4065
  %v4067 = vsel %vm4061, %v4066, %v4065
  %vm4068 = vcmp.lt.s32.totalorder %v3986, 0
  %v4069 = vsub.s32 0, %v3986
  %v4070 = vsel %vm4068, %v4069, %v3986
  %v4071 = vshrl.u32 %v4070, 6
  %v4072 = vand.u32 %v4070, 63
  %v4073 = vsub.s32 0, %v4072
  %v4074 = vsel %vm4068, %v4073, %v4072
  %vm4075 = vcmp.lt.s32.totalorder %v3987, 0
  %v4076 = vsub.s32 0, %v3987
  %v4077 = vsel %vm4075, %v4076, %v3987
  %v4078 = vshrl.u32 %v4077, 6
  %v4079 = vand.u32 %v4077, 63
  %v4080 = vsub.s32 0, %v4079
  %v4081 = vsel %vm4075, %v4080, %v4079
  %vm4082 = vcmp.lt.s32.totalorder %v3988, 0
  %v4083 = vsub.s32 0, %v3988
  %v4084 = vsel %vm4082, %v4083, %v3988
  %v4085 = vshrl.u32 %v4084, 6
  %v4086 = vand.u32 %v4084, 63
  %v4087 = vsub.s32 0, %v4086
  %v4088 = vsel %vm4082, %v4087, %v4086
  %vm4089 = vcmp.lt.s32.totalorder %v3989, 0
  %v4090 = vsub.s32 0, %v3989
  %v4091 = vsel %vm4089, %v4090, %v3989
  %v4092 = vshrl.u32 %v4091, 6
  %v4093 = vand.u32 %v4091, 63
  %v4094 = vsub.s32 0, %v4093
  %v4095 = vsel %vm4089, %v4094, %v4093
  %vm4096 = vcmp.lt.s32.totalorder %v3990, 0
  %v4097 = vsub.s32 0, %v3990
  %v4098 = vsel %vm4096, %v4097, %v3990
  %v4099 = vshrl.u32 %v4098, 6
  %v4100 = vand.u32 %v4098, 63
  %v4101 = vsub.s32 0, %v4100
  %v4102 = vsel %vm4096, %v4101, %v4100
  %vm4103 = vcmp.ne.s32.totalorder %v3997, 0
  %vm4104 = vcmp.ne.s32.totalorder %v4004, 0
  %vm4105 = vcmp.ne.s32.totalorder %v4011, 0
  %vm4106 = vcmp.ne.s32.totalorder %v4018, 0
  %vm4107 = vcmp.ne.s32.totalorder %v4025, 0
  %vm4108 = vcmp.ne.s32.totalorder %v4032, 0
  %vm4109 = vcmp.ne.s32.totalorder %v4039, 0
  %vm4110 = vcmp.ne.s32.totalorder %v4046, 0
  %vm4111 = vcmp.ne.s32.totalorder %v4053, 0
  %vm4112 = vcmp.ne.s32.totalorder %v4060, 0
  %vm4113 = vcmp.ne.s32.totalorder %v4067, 0
  %vm4114 = vcmp.ne.s32.totalorder %v4074, 0
  %vm4115 = vcmp.ne.s32.totalorder %v4081, 0
  %vm4116 = vcmp.ne.s32.totalorder %v4088, 0
  %vm4117 = vcmp.ne.s32.totalorder %v4095, 0
  %vm4118 = vcmp.ne.s32.totalorder %v4102, 0
  %vm4119 = vcmp.lt.s32.totalorder %v3997, 0
  %vm4120 = vcmp.lt.s32.totalorder %v4004, 0
  %vm4121 = vcmp.lt.s32.totalorder %v4011, 0
  %vm4122 = vcmp.lt.s32.totalorder %v4018, 0
  %vm4123 = vcmp.lt.s32.totalorder %v4025, 0
  %vm4124 = vcmp.lt.s32.totalorder %v4032, 0
  %vm4125 = vcmp.lt.s32.totalorder %v4039, 0
  %vm4126 = vcmp.lt.s32.totalorder %v4046, 0
  %vm4127 = vcmp.lt.s32.totalorder %v4053, 0
  %vm4128 = vcmp.lt.s32.totalorder %v4060, 0
  %vm4129 = vcmp.lt.s32.totalorder %v4067, 0
  %vm4130 = vcmp.lt.s32.totalorder %v4074, 0
  %vm4131 = vcmp.lt.s32.totalorder %v4081, 0
  %vm4132 = vcmp.lt.s32.totalorder %v4088, 0
  %vm4133 = vcmp.lt.s32.totalorder %v4095, 0
  %vm4134 = vcmp.lt.s32.totalorder %v4102, 0
  %vm4135 = vmand %vm4119, %vm4103
  %vm4136 = vmand %vm4120, %vm4104
  %vm4137 = vmand %vm4121, %vm4105
  %vm4138 = vmand %vm4122, %vm4106
  %vm4139 = vmand %vm4123, %vm4107
  %vm4140 = vmand %vm4124, %vm4108
  %vm4141 = vmand %vm4125, %vm4109
  %vm4142 = vmand %vm4126, %vm4110
  %vm4143 = vmand %vm4127, %vm4111
  %vm4144 = vmand %vm4128, %vm4112
  %vm4145 = vmand %vm4129, %vm4113
  %vm4146 = vmand %vm4130, %vm4114
  %vm4147 = vmand %vm4131, %vm4115
  %vm4148 = vmand %vm4132, %vm4116
  %vm4149 = vmand %vm4133, %vm4117
  %vm4150 = vmand %vm4134, %vm4118
  %v4151 = vadd.s32 %v3997, 64
  %v4152 = vadd.s32 %v4004, 64
  %v4153 = vadd.s32 %v4011, 64
  %v4154 = vadd.s32 %v4018, 64
  %v4155 = vadd.s32 %v4025, 64
  %v4156 = vadd.s32 %v4032, 64
  %v4157 = vadd.s32 %v4039, 64
  %v4158 = vadd.s32 %v4046, 64
  %v4159 = vadd.s32 %v4053, 64
  %v4160 = vadd.s32 %v4060, 64
  %v4161 = vadd.s32 %v4067, 64
  %v4162 = vadd.s32 %v4074, 64
  %v4163 = vadd.s32 %v4081, 64
  %v4164 = vadd.s32 %v4088, 64
  %v4165 = vadd.s32 %v4095, 64
  %v4166 = vadd.s32 %v4102, 64
  %v4167 = vsel %vm4135, %v4151, %v3997
  %v4168 = vsel %vm4136, %v4152, %v4004
  %v4169 = vsel %vm4137, %v4153, %v4011
  %v4170 = vsel %vm4138, %v4154, %v4018
  %v4171 = vsel %vm4139, %v4155, %v4025
  %v4172 = vsel %vm4140, %v4156, %v4032
  %v4173 = vsel %vm4141, %v4157, %v4039
  %v4174 = vsel %vm4142, %v4158, %v4046
  %v4175 = vsel %vm4143, %v4159, %v4053
  %v4176 = vsel %vm4144, %v4160, %v4060
  %v4177 = vsel %vm4145, %v4161, %v4067
  %v4178 = vsel %vm4146, %v4162, %v4074
  %v4179 = vsel %vm4147, %v4163, %v4081
  %v4180 = vsel %vm4148, %v4164, %v4088
  %v4181 = vsel %vm4149, %v4165, %v4095
  %v4182 = vsel %vm4150, %v4166, %v4102
  %vm4183 = vcmp.ne.s32.totalorder %v4167, 0
  %vm4184 = vcmp.ne.s32.totalorder %v4168, 0
  %vm4185 = vcmp.ne.s32.totalorder %v4169, 0
  %vm4186 = vcmp.ne.s32.totalorder %v4170, 0
  %vm4187 = vcmp.ne.s32.totalorder %v4171, 0
  %vm4188 = vcmp.ne.s32.totalorder %v4172, 0
  %vm4189 = vcmp.ne.s32.totalorder %v4173, 0
  %vm4190 = vcmp.ne.s32.totalorder %v4174, 0
  %vm4191 = vcmp.ne.s32.totalorder %v4175, 0
  %vm4192 = vcmp.ne.s32.totalorder %v4176, 0
  %vm4193 = vcmp.ne.s32.totalorder %v4177, 0
  %vm4194 = vcmp.ne.s32.totalorder %v4178, 0
  %vm4195 = vcmp.ne.s32.totalorder %v4179, 0
  %vm4196 = vcmp.ne.s32.totalorder %v4180, 0
  %vm4197 = vcmp.ne.s32.totalorder %v4181, 0
  %vm4198 = vcmp.ne.s32.totalorder %v4182, 0
  %v4199 = vsel %vm4183, 1, 0
  %v4200 = vsel %vm4184, 1, 0
  %v4201 = vsel %vm4185, 1, 0
  %v4202 = vsel %vm4186, 1, 0
  %v4203 = vsel %vm4187, 1, 0
  %v4204 = vsel %vm4188, 1, 0
  %v4205 = vsel %vm4189, 1, 0
  %v4206 = vsel %vm4190, 1, 0
  %v4207 = vsel %vm4191, 1, 0
  %v4208 = vsel %vm4192, 1, 0
  %v4209 = vsel %vm4193, 1, 0
  %v4210 = vsel %vm4194, 1, 0
  %v4211 = vsel %vm4195, 1, 0
  %v4212 = vsel %vm4196, 1, 0
  %v4213 = vsel %vm4197, 1, 0
  %v4214 = vsel %vm4198, 1, 0
  %v4215 = vcvt.s32.f32 %v4199
  %v4216 = vcvt.s32.f32 %v4200
  %v4217 = vcvt.s32.f32 %v4201
  %v4218 = vcvt.s32.f32 %v4202
  %v4219 = vcvt.s32.f32 %v4203
  %v4220 = vcvt.s32.f32 %v4204
  %v4221 = vcvt.s32.f32 %v4205
  %v4222 = vcvt.s32.f32 %v4206
  %v4223 = vcvt.s32.f32 %v4207
  %v4224 = vcvt.s32.f32 %v4208
  %v4225 = vcvt.s32.f32 %v4209
  %v4226 = vcvt.s32.f32 %v4210
  %v4227 = vcvt.s32.f32 %v4211
  %v4228 = vcvt.s32.f32 %v4212
  %v4229 = vcvt.s32.f32 %v4213
  %v4230 = vcvt.s32.f32 %v4214
  %vm4231 = vcmp.ne.s32.totalorder %v4167, 63
  %vm4232 = vcmp.ne.s32.totalorder %v4168, 63
  %vm4233 = vcmp.ne.s32.totalorder %v4169, 63
  %vm4234 = vcmp.ne.s32.totalorder %v4170, 63
  %vm4235 = vcmp.ne.s32.totalorder %v4171, 63
  %vm4236 = vcmp.ne.s32.totalorder %v4172, 63
  %vm4237 = vcmp.ne.s32.totalorder %v4173, 63
  %vm4238 = vcmp.ne.s32.totalorder %v4174, 63
  %vm4239 = vcmp.ne.s32.totalorder %v4175, 63
  %vm4240 = vcmp.ne.s32.totalorder %v4176, 63
  %vm4241 = vcmp.ne.s32.totalorder %v4177, 63
  %vm4242 = vcmp.ne.s32.totalorder %v4178, 63
  %vm4243 = vcmp.ne.s32.totalorder %v4179, 63
  %vm4244 = vcmp.ne.s32.totalorder %v4180, 63
  %vm4245 = vcmp.ne.s32.totalorder %v4181, 63
  %vm4246 = vcmp.ne.s32.totalorder %v4182, 63
  %v4247 = vsel %vm4231, 1, 0
  %v4248 = vsel %vm4232, 1, 0
  %v4249 = vsel %vm4233, 1, 0
  %v4250 = vsel %vm4234, 1, 0
  %v4251 = vsel %vm4235, 1, 0
  %v4252 = vsel %vm4236, 1, 0
  %v4253 = vsel %vm4237, 1, 0
  %v4254 = vsel %vm4238, 1, 0
  %v4255 = vsel %vm4239, 1, 0
  %v4256 = vsel %vm4240, 1, 0
  %v4257 = vsel %vm4241, 1, 0
  %v4258 = vsel %vm4242, 1, 0
  %v4259 = vsel %vm4243, 1, 0
  %v4260 = vsel %vm4244, 1, 0
  %v4261 = vsel %vm4245, 1, 0
  %v4262 = vsel %vm4246, 1, 0
  %v4263 = vcvt.s32.f32 %v4247
  %v4264 = vcvt.s32.f32 %v4248
  %v4265 = vcvt.s32.f32 %v4249
  %v4266 = vcvt.s32.f32 %v4250
  %v4267 = vcvt.s32.f32 %v4251
  %v4268 = vcvt.s32.f32 %v4252
  %v4269 = vcvt.s32.f32 %v4253
  %v4270 = vcvt.s32.f32 %v4254
  %v4271 = vcvt.s32.f32 %v4255
  %v4272 = vcvt.s32.f32 %v4256
  %v4273 = vcvt.s32.f32 %v4257
  %v4274 = vcvt.s32.f32 %v4258
  %v4275 = vcvt.s32.f32 %v4259
  %v4276 = vcvt.s32.f32 %v4260
  %v4277 = vcvt.s32.f32 %v4261
  %v4278 = vcvt.s32.f32 %v4262
  %v4279 = vrot.slane %v3926, 7
  %v4280 = vrot.slane %v3927, 7
  %v4281 = vrot.slane %v3928, 7
  %v4282 = vrot.slane %v3929, 7
  %v4283 = vrot.slane %v3930, 7
  %v4284 = vrot.slane %v3931, 7
  %v4285 = vrot.slane %v3932, 7
  %v4286 = vrot.slane %v3933, 7
  %v4287 = vrot.slane %v3958, 7
  %v4288 = vrot.slane %v3959, 7
  %v4289 = vrot.slane %v3960, 7
  %v4290 = vrot.slane %v3961, 7
  %v4291 = vrot.slane %v3962, 7
  %v4292 = vrot.slane %v3963, 7
  %v4293 = vrot.slane %v3964, 7
  %v4294 = vrot.slane %v3965, 7
  %vm4295 = vcmp.lt.s32.totalorder %v3975, 1
  %v4296 = vsel %vm4295, %v4293, %v4294
  %v4297 = vsel %vm4295, %v4292, %v4293
  %v4298 = vsel %vm4295, %v4291, %v4292
  %v4299 = vsel %vm4295, %v4290, %v4291
  %v4300 = vsel %vm4295, %v4289, %v4290
  %v4301 = vsel %vm4295, %v4288, %v4289
  %v4302 = vsel %vm4295, %v4287, %v4288
  %v4303 = vsel %vm4295, %v4286, %v4287
  %v4304 = vsel %vm4295, %v4285, %v4286
  %v4305 = vsel %vm4295, %v4284, %v4285
  %v4306 = vsel %vm4295, %v4283, %v4284
  %v4307 = vsel %vm4295, %v4282, %v4283
  %v4308 = vsel %vm4295, %v4281, %v4282
  %v4309 = vsel %vm4295, %v4280, %v4281
  %v4310 = vsel %vm4295, %v4279, %v4280
  %v4311 = vsel %vm4295, %v4294, %v4279
  %v4312 = vmul.f32 %v4311, %v4215
  %v4313 = vmul.f32 %v4310, %v4216
  %v4314 = vmul.f32 %v4309, %v4217
  %v4315 = vmul.f32 %v4308, %v4218
  %v4316 = vmul.f32 %v4307, %v4219
  %v4317 = vmul.f32 %v4306, %v4220
  %v4318 = vmul.f32 %v4305, %v4221
  %v4319 = vmul.f32 %v4304, %v4222
  %v4320 = vmul.f32 %v4303, %v4223
  %v4321 = vmul.f32 %v4302, %v4224
  %v4322 = vmul.f32 %v4301, %v4225
  %v4323 = vmul.f32 %v4300, %v4226
  %v4324 = vmul.f32 %v4299, %v4227
  %v4325 = vmul.f32 %v4298, %v4228
  %v4326 = vmul.f32 %v4297, %v4229
  %v4327 = vmul.f32 %v4296, %v4230
  %v4328 = vrot.slane %v3926, 1
  %v4329 = vrot.slane %v3927, 1
  %v4330 = vrot.slane %v3928, 1
  %v4331 = vrot.slane %v3929, 1
  %v4332 = vrot.slane %v3930, 1
  %v4333 = vrot.slane %v3931, 1
  %v4334 = vrot.slane %v3932, 1
  %v4335 = vrot.slane %v3933, 1
  %v4336 = vrot.slane %v3958, 1
  %v4337 = vrot.slane %v3959, 1
  %v4338 = vrot.slane %v3960, 1
  %v4339 = vrot.slane %v3961, 1
  %v4340 = vrot.slane %v3962, 1
  %v4341 = vrot.slane %v3963, 1
  %v4342 = vrot.slane %v3964, 1
  %v4343 = vrot.slane %v3965, 1
  %vm4344 = vcmp.lt.s32.totalorder %v3975, 7
  %v4345 = vsel %vm4344, %v4342, %v4343
  %v4346 = vsel %vm4344, %v4341, %v4342
  %v4347 = vsel %vm4344, %v4340, %v4341
  %v4348 = vsel %vm4344, %v4339, %v4340
  %v4349 = vsel %vm4344, %v4338, %v4339
  %v4350 = vsel %vm4344, %v4337, %v4338
  %v4351 = vsel %vm4344, %v4336, %v4337
  %v4352 = vsel %vm4344, %v4335, %v4336
  %v4353 = vsel %vm4344, %v4334, %v4335
  %v4354 = vsel %vm4344, %v4333, %v4334
  %v4355 = vsel %vm4344, %v4332, %v4333
  %v4356 = vsel %vm4344, %v4331, %v4332
  %v4357 = vsel %vm4344, %v4330, %v4331
  %v4358 = vsel %vm4344, %v4329, %v4330
  %v4359 = vsel %vm4344, %v4328, %v4329
  %v4360 = vsel %vm4344, %v4343, %v4328
  %v4361 = vmul.f32 %v4359, %v4263
  %v4362 = vmul.f32 %v4358, %v4264
  %v4363 = vmul.f32 %v4357, %v4265
  %v4364 = vmul.f32 %v4356, %v4266
  %v4365 = vmul.f32 %v4355, %v4267
  %v4366 = vmul.f32 %v4354, %v4268
  %v4367 = vmul.f32 %v4353, %v4269
  %v4368 = vmul.f32 %v4352, %v4270
  %v4369 = vmul.f32 %v4351, %v4271
  %v4370 = vmul.f32 %v4350, %v4272
  %v4371 = vmul.f32 %v4349, %v4273
  %v4372 = vmul.f32 %v4348, %v4274
  %v4373 = vmul.f32 %v4347, %v4275
  %v4374 = vmul.f32 %v4346, %v4276
  %v4375 = vmul.f32 %v4345, %v4277
  %v4376 = vmul.f32 %v4360, %v4278
  %v4377 = vpack.c.bf16 %v4362, %v4361
  %v4378 = vpack.c.bf16 %v4364, %v4363
  %v4379 = vpack.c.bf16 %v4366, %v4365
  %v4380 = vpack.c.bf16 %v4368, %v4367
  %v4381 = vpack.c.bf16 %v4370, %v4369
  %v4382 = vpack.c.bf16 %v4372, %v4371
  %v4383 = vpack.c.bf16 %v4374, %v4373
  %v4384 = vpack.c.bf16 %v4376, %v4375
  %v4385 = vld [vmem:[%s7] sm:$0xf]
  %v4386 = vld [vmem:[%s7 + $0x4] sm:$0xf]
  %v4387 = vld [vmem:[%s7 + $0x8] sm:$0xf]
  %v4388 = vld [vmem:[%s7 + $0xc] sm:$0xf]
  %v4389 = vld [vmem:[%s7 + $0x10] sm:$0xf]
  %v4390 = vld [vmem:[%s7 + $0x14] sm:$0xf]
  %v4391 = vld [vmem:[%s7 + $0x18] sm:$0xf]
  %v4392 = vld [vmem:[%s7 + $0x1c] sm:$0xf]
  %v4393 = vpack.c.bf16 %v3927, %v3926
  %v4394 = vpack.c.bf16 %v3929, %v3928
  %v4395 = vpack.c.bf16 %v3931, %v3930
  %v4396 = vpack.c.bf16 %v3933, %v3932
  %v4397 = vpack.c.bf16 %v3959, %v3958
  %v4398 = vpack.c.bf16 %v3961, %v3960
  %v4399 = vpack.c.bf16 %v3963, %v3962
  %v4400 = vpack.c.bf16 %v3965, %v3964
  %s4401 = scalar_lea.vmem %s7, 32
  %v4402 = vld [vmem:[%s4401] sm:$0xf]
  %v4403 = vld [vmem:[%s4401 + $0x4] sm:$0xf]
  %v4404 = vld [vmem:[%s4401 + $0x8] sm:$0xf]
  %v4405 = vld [vmem:[%s4401 + $0xc] sm:$0xf]
  %v4406 = vld [vmem:[%s4401 + $0x10] sm:$0xf]
  %v4407 = vld [vmem:[%s4401 + $0x14] sm:$0xf]
  %v4408 = vld [vmem:[%s4401 + $0x18] sm:$0xf]
  %v4409 = vld [vmem:[%s4401 + $0x1c] sm:$0xf]
  %v4418 = vunpack.c.l.b16 %v4402
  %v4419 = vunpack.c.l.b16 %v4403
  %v4420 = vunpack.c.l.b16 %v4404
  %v4421 = vunpack.c.l.b16 %v4405
  %v4422 = vunpack.c.l.b16 %v4406
  %v4423 = vunpack.c.l.b16 %v4407
  %v4424 = vunpack.c.l.b16 %v4408
  %v4425 = vunpack.c.l.b16 %v4409
  %v4426 = vpack.c.b16 %v4419, %v4418
  %v4427 = vpack.c.b16 %v4421, %v4420
  %v4428 = vpack.c.b16 %v4423, %v4422
  %v4429 = vpack.c.b16 %v4425, %v4424
  %vm4434 = vcmask 523264
  %v4436 = vsel %vm4434, %v4393, 0
  %v4439 = vsel %vm4434, %v4394, 0
  %v4442 = vsel %vm4434, %v4395, 0
  %v4445 = vsel %vm4434, %v4396, 0
  %v4448 = vsel %vm4434, %v4397, 0
  %v4451 = vsel %vm4434, %v4398, 0
  %v4454 = vsel %vm4434, %v4399, 0
  %v4457 = vsel %vm4434, %v4400, 0
  %4459 = vmatpush.bf16.msra.mxu0 0
  %4460 = vmatpush.bf16.msra.mxu0 0
  %4461 = vmatpush.bf16.msra.mxu0 0
  %4462 = vmatpush.bf16.msra.mxu0 0
  %4463 = vmatpush.bf16.msra.mxu0 %v4429
  %4464 = vmatpush.bf16.msra.mxu0 %v4428
  %4465 = vmatpush.bf16.msra.mxu0 %v4427
  %4466 = vmatpush.bf16.msra.mxu0 %v4426
  %4467 = vmatmul.bf16.gmra.mxu0 %v4436
  %v4468 = vpop.f32.mrf.mxu0
  %v4469 = vadd.f32 0.0, %v4468
  %v4470 = vpop.f32.mrf.mxu0
  %v4471 = vadd.f32 0.0, %v4470
  %4472 = vmatmul.bf16.gmra.mxu0 %v4439
  %v4473 = vpop.f32.mrf.mxu0
  %v4474 = vadd.f32 0.0, %v4473
  %v4475 = vpop.f32.mrf.mxu0
  %v4476 = vadd.f32 0.0, %v4475
  %4477 = vmatmul.bf16.gmra.mxu0 %v4442
  %v4478 = vpop.f32.mrf.mxu0
  %v4479 = vadd.f32 0.0, %v4478
  %v4480 = vpop.f32.mrf.mxu0
  %v4481 = vadd.f32 0.0, %v4480
  %4482 = vmatmul.bf16.gmra.mxu0 %v4445
  %v4483 = vpop.f32.mrf.mxu0
  %v4484 = vadd.f32 0.0, %v4483
  %v4485 = vpop.f32.mrf.mxu0
  %v4486 = vadd.f32 0.0, %v4485
  %4487 = vmatmul.bf16.gmra.mxu0 %v4448
  %v4488 = vpop.f32.mrf.mxu0
  %v4489 = vadd.f32 0.0, %v4488
  %v4490 = vpop.f32.mrf.mxu0
  %v4491 = vadd.f32 0.0, %v4490
  %4492 = vmatmul.bf16.gmra.mxu0 %v4451
  %v4493 = vpop.f32.mrf.mxu0
  %v4494 = vadd.f32 0.0, %v4493
  %v4495 = vpop.f32.mrf.mxu0
  %v4496 = vadd.f32 0.0, %v4495
  %4497 = vmatmul.bf16.gmra.mxu0 %v4454
  %v4498 = vpop.f32.mrf.mxu0
  %v4499 = vadd.f32 0.0, %v4498
  %v4500 = vpop.f32.mrf.mxu0
  %v4501 = vadd.f32 0.0, %v4500
  %4502 = vmatmul.bf16.gmra.mxu0 %v4457
  %v4503 = vpop.f32.mrf.mxu0
  %v4504 = vadd.f32 0.0, %v4503
  %v4505 = vpop.f32.mrf.mxu0
  %v4506 = vadd.f32 0.0, %v4505
  %4507 = vdwg.mxu0
  %v4516 = vunpack.c.l.b16 %v4385
  %v4517 = vunpack.c.l.b16 %v4386
  %v4518 = vunpack.c.l.b16 %v4387
  %v4519 = vunpack.c.l.b16 %v4388
  %v4520 = vunpack.c.l.b16 %v4389
  %v4521 = vunpack.c.l.b16 %v4390
  %v4522 = vunpack.c.l.b16 %v4391
  %v4523 = vunpack.c.l.b16 %v4392
  %v4524 = vpack.c.b16 %v4517, %v4516
  %v4525 = vpack.c.b16 %v4519, %v4518
  %v4526 = vpack.c.b16 %v4521, %v4520
  %v4527 = vpack.c.b16 %v4523, %v4522
  %v4533 = vsel %vm4434, %v4377, 0
  %v4536 = vsel %vm4434, %v4378, 0
  %v4539 = vsel %vm4434, %v4379, 0
  %v4542 = vsel %vm4434, %v4380, 0
  %v4545 = vsel %vm4434, %v4381, 0
  %v4548 = vsel %vm4434, %v4382, 0
  %v4551 = vsel %vm4434, %v4383, 0
  %v4554 = vsel %vm4434, %v4384, 0
  %4556 = vmatpush.bf16.msra.mxu0 0
  %4557 = vmatpush.bf16.msra.mxu0 0
  %4558 = vmatpush.bf16.msra.mxu0 0
  %4559 = vmatpush.bf16.msra.mxu0 0
  %4560 = vmatpush.bf16.msra.mxu0 %v4527
  %4561 = vmatpush.bf16.msra.mxu0 %v4526
  %4562 = vmatpush.bf16.msra.mxu0 %v4525
  %4563 = vmatpush.bf16.msra.mxu0 %v4524
  %4564 = vmatmul.bf16.gmra.mxu0 %v4533
  %v4565 = vpop.f32.mrf.mxu0
  %v4566 = vadd.f32 %v4469, %v4565
  %v4567 = vpop.f32.mrf.mxu0
  %v4568 = vadd.f32 %v4471, %v4567
  %4569 = vmatmul.bf16.gmra.mxu0 %v4536
  %v4570 = vpop.f32.mrf.mxu0
  %v4571 = vadd.f32 %v4474, %v4570
  %v4572 = vpop.f32.mrf.mxu0
  %v4573 = vadd.f32 %v4476, %v4572
  %4574 = vmatmul.bf16.gmra.mxu0 %v4539
  %v4575 = vpop.f32.mrf.mxu0
  %v4576 = vadd.f32 %v4479, %v4575
  %v4577 = vpop.f32.mrf.mxu0
  %v4578 = vadd.f32 %v4481, %v4577
  %4579 = vmatmul.bf16.gmra.mxu0 %v4542
  %v4580 = vpop.f32.mrf.mxu0
  %v4581 = vadd.f32 %v4484, %v4580
  %v4582 = vpop.f32.mrf.mxu0
  %v4583 = vadd.f32 %v4486, %v4582
  %4584 = vmatmul.bf16.gmra.mxu0 %v4545
  %v4585 = vpop.f32.mrf.mxu0
  %v4586 = vadd.f32 %v4489, %v4585
  %v4587 = vpop.f32.mrf.mxu0
  %v4588 = vadd.f32 %v4491, %v4587
  %4589 = vmatmul.bf16.gmra.mxu0 %v4548
  %v4590 = vpop.f32.mrf.mxu0
  %v4591 = vadd.f32 %v4494, %v4590
  %v4592 = vpop.f32.mrf.mxu0
  %v4593 = vadd.f32 %v4496, %v4592
  %4594 = vmatmul.bf16.gmra.mxu0 %v4551
  %v4595 = vpop.f32.mrf.mxu0
  %v4596 = vadd.f32 %v4499, %v4595
  %v4597 = vpop.f32.mrf.mxu0
  %v4598 = vadd.f32 %v4501, %v4597
  %4599 = vmatmul.bf16.gmra.mxu0 %v4554
  %v4600 = vpop.f32.mrf.mxu0
  %v4601 = vadd.f32 %v4504, %v4600
  %v4602 = vpop.f32.mrf.mxu0
  %v4603 = vadd.f32 %v4506, %v4602
  %4604 = vdwg.mxu0
  %v4605 = vpack.c.bf16 %v4313, %v4312
  %v4606 = vpack.c.bf16 %v4315, %v4314
  %v4607 = vpack.c.bf16 %v4317, %v4316
  %v4608 = vpack.c.bf16 %v4319, %v4318
  %v4609 = vpack.c.bf16 %v4321, %v4320
  %v4610 = vpack.c.bf16 %v4323, %v4322
  %v4611 = vpack.c.bf16 %v4325, %v4324
  %v4612 = vpack.c.bf16 %v4327, %v4326
  %s4613 = scalar_lea.vmem %s7, 64
  %v4614 = vld [vmem:[%s4613] sm:$0xf]
  %v4615 = vld [vmem:[%s4613 + $0x4] sm:$0xf]
  %v4616 = vld [vmem:[%s4613 + $0x8] sm:$0xf]
  %v4617 = vld [vmem:[%s4613 + $0xc] sm:$0xf]
  %v4618 = vld [vmem:[%s4613 + $0x10] sm:$0xf]
  %v4619 = vld [vmem:[%s4613 + $0x14] sm:$0xf]
  %v4620 = vld [vmem:[%s4613 + $0x18] sm:$0xf]
  %v4621 = vld [vmem:[%s4613 + $0x1c] sm:$0xf]
  %v4630 = vunpack.c.l.b16 %v4614
  %v4631 = vunpack.c.l.b16 %v4615
  %v4632 = vunpack.c.l.b16 %v4616
  %v4633 = vunpack.c.l.b16 %v4617
  %v4634 = vunpack.c.l.b16 %v4618
  %v4635 = vunpack.c.l.b16 %v4619
  %v4636 = vunpack.c.l.b16 %v4620
  %v4637 = vunpack.c.l.b16 %v4621
  %v4638 = vpack.c.b16 %v4631, %v4630
  %v4639 = vpack.c.b16 %v4633, %v4632
  %v4640 = vpack.c.b16 %v4635, %v4634
  %v4641 = vpack.c.b16 %v4637, %v4636
  %v4647 = vsel %vm4434, %v4605, 0
  %v4650 = vsel %vm4434, %v4606, 0
  %v4653 = vsel %vm4434, %v4607, 0
  %v4656 = vsel %vm4434, %v4608, 0
  %v4659 = vsel %vm4434, %v4609, 0
  %v4662 = vsel %vm4434, %v4610, 0
  %v4665 = vsel %vm4434, %v4611, 0
  %v4668 = vsel %vm4434, %v4612, 0
  %4670 = vmatpush.bf16.msra.mxu0 0
  %4671 = vmatpush.bf16.msra.mxu0 0
  %4672 = vmatpush.bf16.msra.mxu0 0
  %4673 = vmatpush.bf16.msra.mxu0 0
  %4674 = vmatpush.bf16.msra.mxu0 %v4641
  %4675 = vmatpush.bf16.msra.mxu0 %v4640
  %4676 = vmatpush.bf16.msra.mxu0 %v4639
  %4677 = vmatpush.bf16.msra.mxu0 %v4638
  %4678 = vmatmul.bf16.gmra.mxu0 %v4647
  %v4679 = vpop.f32.mrf.mxu0
  %v4680 = vadd.f32 0.0, %v4679
  %v4681 = vpop.f32.mrf.mxu0
  %v4682 = vadd.f32 0.0, %v4681
  %4683 = vmatmul.bf16.gmra.mxu0 %v4650
  %v4684 = vpop.f32.mrf.mxu0
  %v4685 = vadd.f32 0.0, %v4684
  %v4686 = vpop.f32.mrf.mxu0
  %v4687 = vadd.f32 0.0, %v4686
  %4688 = vmatmul.bf16.gmra.mxu0 %v4653
  %v4689 = vpop.f32.mrf.mxu0
  %v4690 = vadd.f32 0.0, %v4689
  %v4691 = vpop.f32.mrf.mxu0
  %v4692 = vadd.f32 0.0, %v4691
  %4693 = vmatmul.bf16.gmra.mxu0 %v4656
  %v4694 = vpop.f32.mrf.mxu0
  %v4695 = vadd.f32 0.0, %v4694
  %v4696 = vpop.f32.mrf.mxu0
  %v4697 = vadd.f32 0.0, %v4696
  %4698 = vmatmul.bf16.gmra.mxu0 %v4659
  %v4699 = vpop.f32.mrf.mxu0
  %v4700 = vadd.f32 0.0, %v4699
  %v4701 = vpop.f32.mrf.mxu0
  %v4702 = vadd.f32 0.0, %v4701
  %4703 = vmatmul.bf16.gmra.mxu0 %v4662
  %v4704 = vpop.f32.mrf.mxu0
  %v4705 = vadd.f32 0.0, %v4704
  %v4706 = vpop.f32.mrf.mxu0
  %v4707 = vadd.f32 0.0, %v4706
  %4708 = vmatmul.bf16.gmra.mxu0 %v4665
  %v4709 = vpop.f32.mrf.mxu0
  %v4710 = vadd.f32 0.0, %v4709
  %v4711 = vpop.f32.mrf.mxu0
  %v4712 = vadd.f32 0.0, %v4711
  %4713 = vmatmul.bf16.gmra.mxu0 %v4668
  %v4714 = vpop.f32.mrf.mxu0
  %v4715 = vadd.f32 0.0, %v4714
  %v4716 = vpop.f32.mrf.mxu0
  %v4717 = vadd.f32 0.0, %v4716
  %4718 = vdwg.mxu0
  %v4719 = vadd.f32 %v4566, %v4680
  %v4720 = vadd.f32 %v4568, %v4682
  %v4721 = vadd.f32 %v4571, %v4685
  %v4722 = vadd.f32 %v4573, %v4687
  %v4723 = vadd.f32 %v4576, %v4690
  %v4724 = vadd.f32 %v4578, %v4692
  %v4725 = vadd.f32 %v4581, %v4695
  %v4726 = vadd.f32 %v4583, %v4697
  %v4727 = vadd.f32 %v4586, %v4700
  %v4728 = vadd.f32 %v4588, %v4702
  %v4729 = vadd.f32 %v4591, %v4705
  %v4730 = vadd.f32 %v4593, %v4707
  %v4731 = vadd.f32 %v4596, %v4710
  %v4732 = vadd.f32 %v4598, %v4712
  %v4733 = vadd.f32 %v4601, %v4715
  %v4734 = vadd.f32 %v4603, %v4717
  %v4735 = vadd.f32 %v4719, %v4720
  %v4736 = vadd.f32 %v4735, %v4721
  %v4737 = vadd.f32 %v4736, %v4722
  %v4738 = vadd.f32 %v4737, %v4723
  %v4739 = vadd.f32 %v4738, %v4724
  %v4740 = vadd.f32 %v4739, %v4725
  %v4741 = vadd.f32 %v4740, %v4726
  %v4742 = vadd.f32 %v4741, %v4727
  %v4743 = vadd.f32 %v4742, %v4728
  %v4744 = vadd.f32 %v4743, %v4729
  %v4745 = vadd.f32 %v4744, %v4730
  %v4746 = vadd.f32 %v4745, %v4731
  %v4747 = vadd.f32 %v4746, %v4732
  %v4748 = vadd.f32 %v4747, %v4733
  %v4749 = vadd.f32 %v4748, %v4734
  %v4750 = vrot.slane %v4749, 4
  %v4751 = vadd.f32 %v4749, %v4750
  %v4752 = vrot.slane %v4751, 2
  %v4753 = vadd.f32 %v4751, %v4752
  %v4754 = vrot.slane %v4753, 1
  %v4755 = vadd.f32 %v4753, %v4754
  %v4756 = vrcp.pop 128.0
  %v4757 = vmul.f32 128.0, %v4756
  %v4758 = vsub.f32 1.0, %v4757
  %v4759 = vmul.f32 %v4756, %v4758
  %v4760 = vadd.f32 %v4756, %v4759
  %vm4761 = vweird.f32 %v4756
  %v4762 = vsel %vm4761, %v4756, %v4760
  %v4763 = vmul.f32 %v4755, %v4762
  %v4764 = vsub.f32 %v4719, %v4763
  %v4765 = vsub.f32 %v4720, %v4763
  %v4766 = vsub.f32 %v4721, %v4763
  %v4767 = vsub.f32 %v4722, %v4763
  %v4768 = vsub.f32 %v4723, %v4763
  %v4769 = vsub.f32 %v4724, %v4763
  %v4770 = vsub.f32 %v4725, %v4763
  %v4771 = vsub.f32 %v4726, %v4763
  %v4772 = vsub.f32 %v4727, %v4763
  %v4773 = vsub.f32 %v4728, %v4763
  %v4774 = vsub.f32 %v4729, %v4763
  %v4775 = vsub.f32 %v4730, %v4763
  %v4776 = vsub.f32 %v4731, %v4763
  %v4777 = vsub.f32 %v4732, %v4763
  %v4778 = vsub.f32 %v4733, %v4763
  %v4779 = vsub.f32 %v4734, %v4763
  %v4780 = vmul.f32 %v4764, %v4764
  %v4781 = vmul.f32 %v4765, %v4765
  %v4782 = vmul.f32 %v4766, %v4766
  %v4783 = vmul.f32 %v4767, %v4767
  %v4784 = vmul.f32 %v4768, %v4768
  %v4785 = vmul.f32 %v4769, %v4769
  %v4786 = vmul.f32 %v4770, %v4770
  %v4787 = vmul.f32 %v4771, %v4771
  %v4788 = vmul.f32 %v4772, %v4772
  %v4789 = vmul.f32 %v4773, %v4773
  %v4790 = vmul.f32 %v4774, %v4774
  %v4791 = vmul.f32 %v4775, %v4775
  %v4792 = vmul.f32 %v4776, %v4776
  %v4793 = vmul.f32 %v4777, %v4777
  %v4794 = vmul.f32 %v4778, %v4778
  %v4795 = vmul.f32 %v4779, %v4779
  %v4796 = vadd.f32 %v4780, %v4781
  %v4797 = vadd.f32 %v4796, %v4782
  %v4798 = vadd.f32 %v4797, %v4783
  %v4799 = vadd.f32 %v4798, %v4784
  %v4800 = vadd.f32 %v4799, %v4785
  %v4801 = vadd.f32 %v4800, %v4786
  %v4802 = vadd.f32 %v4801, %v4787
  %v4803 = vadd.f32 %v4802, %v4788
  %v4804 = vadd.f32 %v4803, %v4789
  %v4805 = vadd.f32 %v4804, %v4790
  %v4806 = vadd.f32 %v4805, %v4791
  %v4807 = vadd.f32 %v4806, %v4792
  %v4808 = vadd.f32 %v4807, %v4793
  %v4809 = vadd.f32 %v4808, %v4794
  %v4810 = vadd.f32 %v4809, %v4795
  %v4811 = vrot.slane %v4810, 4
  %v4812 = vadd.f32 %v4810, %v4811
  %v4813 = vrot.slane %v4812, 2
  %v4814 = vadd.f32 %v4812, %v4813
  %v4815 = vrot.slane %v4814, 1
  %v4816 = vadd.f32 %v4814, %v4815
  %v4817 = vmul.f32 %v4816, %v4762
  %v4818 = vld [vmem:[%s8] sm:$0x1]
  %v4819 = vadd.f32 %v4817, 1e-05
  %v4820 = vrsqrt.pop %v4819
  %v4821 = vmul.f32 %v4820, %v4819
  %v4822 = vmul.f32 %v4821, %v4820
  %v4823 = vmul.f32 0.5, %v4822
  %v4824 = vsub.f32 1.5, %v4823
  %v4825 = vmul.f32 %v4820, %v4824
  %vm4826 = vweird.f32 %v4819
  %vm4827 = vweird.f32 %v4820
  %vm4828 = vmor %vm4826, %vm4827
  %v4829 = vsel %vm4828, %v4820, %v4825
  %v4830 = vmul.f32 %v4818, %v4829
  %v4832 = vperm.slane %v4830, 0
  %v4834 = vmul.f32 %v4764, %v4832
  %v4835 = vmul.f32 %v4765, %v4832
  %v4836 = vmul.f32 %v4766, %v4832
  %v4837 = vmul.f32 %v4767, %v4832
  %v4838 = vmul.f32 %v4768, %v4832
  %v4839 = vmul.f32 %v4769, %v4832
  %v4840 = vmul.f32 %v4770, %v4832
  %v4841 = vmul.f32 %v4771, %v4832
  %v4842 = vmul.f32 %v4772, %v4832
  %v4843 = vmul.f32 %v4773, %v4832
  %v4844 = vmul.f32 %v4774, %v4832
  %v4845 = vmul.f32 %v4775, %v4832
  %v4846 = vmul.f32 %v4776, %v4832
  %v4847 = vmul.f32 %v4777, %v4832
  %v4848 = vmul.f32 %v4778, %v4832
  %v4849 = vmul.f32 %v4779, %v4832
  %v4850 = vld [vmem:[%s9] sm:$0x1]
  %v4852 = vperm.slane %v4850, 0
  %v4854 = vadd.f32 %v4834, %v4852
  %v4855 = vadd.f32 %v4835, %v4852
  %v4856 = vadd.f32 %v4836, %v4852
  %v4857 = vadd.f32 %v4837, %v4852
  %v4858 = vadd.f32 %v4838, %v4852
  %v4859 = vadd.f32 %v4839, %v4852
  %v4860 = vadd.f32 %v4840, %v4852
  %v4861 = vadd.f32 %v4841, %v4852
  %v4862 = vadd.f32 %v4842, %v4852
  %v4863 = vadd.f32 %v4843, %v4852
  %v4864 = vadd.f32 %v4844, %v4852
  %v4865 = vadd.f32 %v4845, %v4852
  %v4866 = vadd.f32 %v4846, %v4852
  %v4867 = vadd.f32 %v4847, %v4852
  %v4868 = vadd.f32 %v4848, %v4852
  %v4869 = vadd.f32 %v4849, %v4852
  %v4870 = vmax.f32 %v4854, 0.0
  %v4871 = vmax.f32 %v4855, 0.0
  %v4872 = vmax.f32 %v4856, 0.0
  %v4873 = vmax.f32 %v4857, 0.0
  %v4874 = vmax.f32 %v4858, 0.0
  %v4875 = vmax.f32 %v4859, 0.0
  %v4876 = vmax.f32 %v4860, 0.0
  %v4877 = vmax.f32 %v4861, 0.0
  %v4878 = vmax.f32 %v4862, 0.0
  %v4879 = vmax.f32 %v4863, 0.0
  %v4880 = vmax.f32 %v4864, 0.0
  %v4881 = vmax.f32 %v4865, 0.0
  %v4882 = vmax.f32 %v4866, 0.0
  %v4883 = vmax.f32 %v4867, 0.0
  %v4884 = vmax.f32 %v4868, 0.0
  %v4885 = vmax.f32 %v4869, 0.0
  %v4886 = vrot.slane %v4870, 7
  %v4887 = vrot.slane %v4871, 7
  %v4888 = vrot.slane %v4872, 7
  %v4889 = vrot.slane %v4873, 7
  %v4890 = vrot.slane %v4874, 7
  %v4891 = vrot.slane %v4875, 7
  %v4892 = vrot.slane %v4876, 7
  %v4893 = vrot.slane %v4877, 7
  %v4894 = vrot.slane %v4878, 7
  %v4895 = vrot.slane %v4879, 7
  %v4896 = vrot.slane %v4880, 7
  %v4897 = vrot.slane %v4881, 7
  %v4898 = vrot.slane %v4882, 7
  %v4899 = vrot.slane %v4883, 7
  %v4900 = vrot.slane %v4884, 7
  %v4901 = vrot.slane %v4885, 7
  %v4902 = vsel %vm4295, %v4900, %v4901
  %v4903 = vsel %vm4295, %v4899, %v4900
  %v4904 = vsel %vm4295, %v4898, %v4899
  %v4905 = vsel %vm4295, %v4897, %v4898
  %v4906 = vsel %vm4295, %v4896, %v4897
  %v4907 = vsel %vm4295, %v4895, %v4896
  %v4908 = vsel %vm4295, %v4894, %v4895
  %v4909 = vsel %vm4295, %v4893, %v4894
  %v4910 = vsel %vm4295, %v4892, %v4893
  %v4911 = vsel %vm4295, %v4891, %v4892
  %v4912 = vsel %vm4295, %v4890, %v4891
  %v4913 = vsel %vm4295, %v4889, %v4890
  %v4914 = vsel %vm4295, %v4888, %v4889
  %v4915 = vsel %vm4295, %v4887, %v4888
  %v4916 = vsel %vm4295, %v4886, %v4887
  %v4917 = vsel %vm4295, %v4901, %v4886
  %v4918 = vmul.f32 %v4917, %v4215
  %v4919 = vmul.f32 %v4916, %v4216
  %v4920 = vmul.f32 %v4915, %v4217
  %v4921 = vmul.f32 %v4914, %v4218
  %v4922 = vmul.f32 %v4913, %v4219
  %v4923 = vmul.f32 %v4912, %v4220
  %v4924 = vmul.f32 %v4911, %v4221
  %v4925 = vmul.f32 %v4910, %v4222
  %v4926 = vmul.f32 %v4909, %v4223
  %v4927 = vmul.f32 %v4908, %v4224
  %v4928 = vmul.f32 %v4907, %v4225
  %v4929 = vmul.f32 %v4906, %v4226
  %v4930 = vmul.f32 %v4905, %v4227
  %v4931 = vmul.f32 %v4904, %v4228
  %v4932 = vmul.f32 %v4903, %v4229
  %v4933 = vmul.f32 %v4902, %v4230
  %v4934 = vrot.slane %v4870, 1
  %v4935 = vrot.slane %v4871, 1
  %v4936 = vrot.slane %v4872, 1
  %v4937 = vrot.slane %v4873, 1
  %v4938 = vrot.slane %v4874, 1
  %v4939 = vrot.slane %v4875, 1
  %v4940 = vrot.slane %v4876, 1
  %v4941 = vrot.slane %v4877, 1
  %v4942 = vrot.slane %v4878, 1
  %v4943 = vrot.slane %v4879, 1
  %v4944 = vrot.slane %v4880, 1
  %v4945 = vrot.slane %v4881, 1
  %v4946 = vrot.slane %v4882, 1
  %v4947 = vrot.slane %v4883, 1
  %v4948 = vrot.slane %v4884, 1
  %v4949 = vrot.slane %v4885, 1
  %v4950 = vsel %vm4344, %v4948, %v4949
  %v4951 = vsel %vm4344, %v4947, %v4948
  %v4952 = vsel %vm4344, %v4946, %v4947
  %v4953 = vsel %vm4344, %v4945, %v4946
  %v4954 = vsel %vm4344, %v4944, %v4945
  %v4955 = vsel %vm4344, %v4943, %v4944
  %v4956 = vsel %vm4344, %v4942, %v4943
  %v4957 = vsel %vm4344, %v4941, %v4942
  %v4958 = vsel %vm4344, %v4940, %v4941
  %v4959 = vsel %vm4344, %v4939, %v4940
  %v4960 = vsel %vm4344, %v4938, %v4939
  %v4961 = vsel %vm4344, %v4937, %v4938
  %v4962 = vsel %vm4344, %v4936, %v4937
  %v4963 = vsel %vm4344, %v4935, %v4936
  %v4964 = vsel %vm4344, %v4934, %v4935
  %v4965 = vsel %vm4344, %v4949, %v4934
  %v4966 = vmul.f32 %v4964, %v4263
  %v4967 = vmul.f32 %v4963, %v4264
  %v4968 = vmul.f32 %v4962, %v4265
  %v4969 = vmul.f32 %v4961, %v4266
  %v4970 = vmul.f32 %v4960, %v4267
  %v4971 = vmul.f32 %v4959, %v4268
  %v4972 = vmul.f32 %v4958, %v4269
  %v4973 = vmul.f32 %v4957, %v4270
  %v4974 = vmul.f32 %v4956, %v4271
  %v4975 = vmul.f32 %v4955, %v4272
  %v4976 = vmul.f32 %v4954, %v4273
  %v4977 = vmul.f32 %v4953, %v4274
  %v4978 = vmul.f32 %v4952, %v4275
  %v4979 = vmul.f32 %v4951, %v4276
  %v4980 = vmul.f32 %v4950, %v4277
  %v4981 = vmul.f32 %v4965, %v4278
  %v4982 = vpack.c.bf16 %v4967, %v4966
  %v4983 = vpack.c.bf16 %v4969, %v4968
  %v4984 = vpack.c.bf16 %v4971, %v4970
  %v4985 = vpack.c.bf16 %v4973, %v4972
  %v4986 = vpack.c.bf16 %v4975, %v4974
  %v4987 = vpack.c.bf16 %v4977, %v4976
  %v4988 = vpack.c.bf16 %v4979, %v4978
  %v4989 = vpack.c.bf16 %v4981, %v4980
  %v4990 = vld [vmem:[%s10] sm:$0xff]
  %v4991 = vld [vmem:[%s10 + $0x8] sm:$0xff]
  %v4992 = vld [vmem:[%s10 + $0x10] sm:$0xff]
  %v4993 = vld [vmem:[%s10 + $0x18] sm:$0xff]
  %v4994 = vld [vmem:[%s10 + $0x20] sm:$0xff]
  %v4995 = vld [vmem:[%s10 + $0x28] sm:$0xff]
  %v4996 = vld [vmem:[%s10 + $0x30] sm:$0xff]
  %v4997 = vld [vmem:[%s10 + $0x38] sm:$0xff]
  %v4998 = vld [vmem:[%s10 + $0x40] sm:$0xff]
  %v4999 = vld [vmem:[%s10 + $0x48] sm:$0xff]
  %v5000 = vld [vmem:[%s10 + $0x50] sm:$0xff]
  %v5001 = vld [vmem:[%s10 + $0x58] sm:$0xff]
  %v5002 = vld [vmem:[%s10 + $0x60] sm:$0xff]
  %v5003 = vld [vmem:[%s10 + $0x68] sm:$0xff]
  %v5004 = vld [vmem:[%s10 + $0x70] sm:$0xff]
  %v5005 = vld [vmem:[%s10 + $0x78] sm:$0xff]
  %v5006 = vpack.c.bf16 %v4871, %v4870
  %v5007 = vpack.c.bf16 %v4873, %v4872
  %v5008 = vpack.c.bf16 %v4875, %v4874
  %v5009 = vpack.c.bf16 %v4877, %v4876
  %v5010 = vpack.c.bf16 %v4879, %v4878
  %v5011 = vpack.c.bf16 %v4881, %v4880
  %v5012 = vpack.c.bf16 %v4883, %v4882
  %v5013 = vpack.c.bf16 %v4885, %v4884
  %s5014 = scalar_lea.vmem %s10, 128
  %v5015 = vld [vmem:[%s5014] sm:$0xff]
  %v5016 = vld [vmem:[%s5014 + $0x8] sm:$0xff]
  %v5017 = vld [vmem:[%s5014 + $0x10] sm:$0xff]
  %v5018 = vld [vmem:[%s5014 + $0x18] sm:$0xff]
  %v5019 = vld [vmem:[%s5014 + $0x20] sm:$0xff]
  %v5020 = vld [vmem:[%s5014 + $0x28] sm:$0xff]
  %v5021 = vld [vmem:[%s5014 + $0x30] sm:$0xff]
  %v5022 = vld [vmem:[%s5014 + $0x38] sm:$0xff]
  %v5023 = vld [vmem:[%s5014 + $0x40] sm:$0xff]
  %v5024 = vld [vmem:[%s5014 + $0x48] sm:$0xff]
  %v5025 = vld [vmem:[%s5014 + $0x50] sm:$0xff]
  %v5026 = vld [vmem:[%s5014 + $0x58] sm:$0xff]
  %v5027 = vld [vmem:[%s5014 + $0x60] sm:$0xff]
  %v5028 = vld [vmem:[%s5014 + $0x68] sm:$0xff]
  %v5029 = vld [vmem:[%s5014 + $0x70] sm:$0xff]
  %v5030 = vld [vmem:[%s5014 + $0x78] sm:$0xff]
  %v5047 = vunpack.c.l.b16 %v5015
  %v5048 = vunpack.c.h.b16 %v5015
  %v5049 = vunpack.c.l.b16 %v5016
  %v5050 = vunpack.c.h.b16 %v5016
  %v5051 = vunpack.c.l.b16 %v5017
  %v5052 = vunpack.c.h.b16 %v5017
  %v5053 = vunpack.c.l.b16 %v5018
  %v5054 = vunpack.c.h.b16 %v5018
  %v5055 = vunpack.c.l.b16 %v5019
  %v5056 = vunpack.c.h.b16 %v5019
  %v5057 = vunpack.c.l.b16 %v5020
  %v5058 = vunpack.c.h.b16 %v5020
  %v5059 = vunpack.c.l.b16 %v5021
  %v5060 = vunpack.c.h.b16 %v5021
  %v5061 = vunpack.c.l.b16 %v5022
  %v5062 = vunpack.c.h.b16 %v5022
  %v5063 = vunpack.c.l.b16 %v5023
  %v5064 = vunpack.c.h.b16 %v5023
  %v5065 = vunpack.c.l.b16 %v5024
  %v5066 = vunpack.c.h.b16 %v5024
  %v5067 = vunpack.c.l.b16 %v5025
  %v5068 = vunpack.c.h.b16 %v5025
  %v5069 = vunpack.c.l.b16 %v5026
  %v5070 = vunpack.c.h.b16 %v5026
  %v5071 = vunpack.c.l.b16 %v5027
  %v5072 = vunpack.c.h.b16 %v5027
  %v5073 = vunpack.c.l.b16 %v5028
  %v5074 = vunpack.c.h.b16 %v5028
  %v5075 = vunpack.c.l.b16 %v5029
  %v5076 = vunpack.c.h.b16 %v5029
  %v5077 = vunpack.c.l.b16 %v5030
  %v5078 = vunpack.c.h.b16 %v5030
  %v5079 = vpack.c.b16 %v5049, %v5047
  %v5080 = vpack.c.b16 %v5050, %v5048
  %v5081 = vpack.c.b16 %v5053, %v5051
  %v5082 = vpack.c.b16 %v5054, %v5052
  %v5083 = vpack.c.b16 %v5057, %v5055
  %v5084 = vpack.c.b16 %v5058, %v5056
  %v5085 = vpack.c.b16 %v5061, %v5059
  %v5086 = vpack.c.b16 %v5062, %v5060
  %v5087 = vpack.c.b16 %v5065, %v5063
  %v5088 = vpack.c.b16 %v5066, %v5064
  %v5089 = vpack.c.b16 %v5069, %v5067
  %v5090 = vpack.c.b16 %v5070, %v5068
  %v5091 = vpack.c.b16 %v5073, %v5071
  %v5092 = vpack.c.b16 %v5074, %v5072
  %v5093 = vpack.c.b16 %v5077, %v5075
  %v5094 = vpack.c.b16 %v5078, %v5076
  %5111 = vmatpush.bf16.msra.mxu0 %v5093
  %5112 = vmatpush.bf16.msra.mxu0 %v5091
  %5113 = vmatpush.bf16.msra.mxu0 %v5089
  %5114 = vmatpush.bf16.msra.mxu0 %v5087
  %5115 = vmatpush.bf16.msra.mxu0 %v5085
  %5116 = vmatpush.bf16.msra.mxu0 %v5083
  %5117 = vmatpush.bf16.msra.mxu0 %v5081
  %5118 = vmatpush.bf16.msra.mxu0 %v5079
  %5119 = vmatmul.bf16.gmra.mxu0 %v5006
  %v5120 = vpop.f32.mrf.mxu0
  %v5121 = vadd.f32 0.0, %v5120
  %v5122 = vpop.f32.mrf.mxu0
  %v5123 = vadd.f32 0.0, %v5122
  %5124 = vmatmul.bf16.gmra.mxu0 %v5007
  %v5125 = vpop.f32.mrf.mxu0
  %v5126 = vadd.f32 0.0, %v5125
  %v5127 = vpop.f32.mrf.mxu0
  %v5128 = vadd.f32 0.0, %v5127
  %5129 = vmatmul.bf16.gmra.mxu0 %v5008
  %v5130 = vpop.f32.mrf.mxu0
  %v5131 = vadd.f32 0.0, %v5130
  %v5132 = vpop.f32.mrf.mxu0
  %v5133 = vadd.f32 0.0, %v5132
  %5134 = vmatmul.bf16.gmra.mxu0 %v5009
  %v5135 = vpop.f32.mrf.mxu0
  %v5136 = vadd.f32 0.0, %v5135
  %v5137 = vpop.f32.mrf.mxu0
  %v5138 = vadd.f32 0.0, %v5137
  %5139 = vmatmul.bf16.gmra.mxu0 %v5010
  %v5140 = vpop.f32.mrf.mxu0
  %v5141 = vadd.f32 0.0, %v5140
  %v5142 = vpop.f32.mrf.mxu0
  %v5143 = vadd.f32 0.0, %v5142
  %5144 = vmatmul.bf16.gmra.mxu0 %v5011
  %v5145 = vpop.f32.mrf.mxu0
  %v5146 = vadd.f32 0.0, %v5145
  %v5147 = vpop.f32.mrf.mxu0
  %v5148 = vadd.f32 0.0, %v5147
  %5149 = vmatmul.bf16.gmra.mxu0 %v5012
  %v5150 = vpop.f32.mrf.mxu0
  %v5151 = vadd.f32 0.0, %v5150
  %v5152 = vpop.f32.mrf.mxu0
  %v5153 = vadd.f32 0.0, %v5152
  %5154 = vmatmul.bf16.gmra.mxu0 %v5013
  %v5155 = vpop.f32.mrf.mxu0
  %v5156 = vadd.f32 0.0, %v5155
  %v5157 = vpop.f32.mrf.mxu0
  %v5158 = vadd.f32 0.0, %v5157
  %5159 = vdwg.mxu0
  %5160 = vmatpush.bf16.msra.mxu0 %v5094
  %5161 = vmatpush.bf16.msra.mxu0 %v5092
  %5162 = vmatpush.bf16.msra.mxu0 %v5090
  %5163 = vmatpush.bf16.msra.mxu0 %v5088
  %5164 = vmatpush.bf16.msra.mxu0 %v5086
  %5165 = vmatpush.bf16.msra.mxu0 %v5084
  %5166 = vmatpush.bf16.msra.mxu0 %v5082
  %5167 = vmatpush.bf16.msra.mxu0 %v5080
  %5168 = vmatmul.bf16.gmra.mxu0 %v5006
  %v5169 = vpop.f32.mrf.mxu0
  %v5170 = vadd.f32 0.0, %v5169
  %v5171 = vpop.f32.mrf.mxu0
  %v5172 = vadd.f32 0.0, %v5171
  %5173 = vmatmul.bf16.gmra.mxu0 %v5007
  %v5174 = vpop.f32.mrf.mxu0
  %v5175 = vadd.f32 0.0, %v5174
  %v5176 = vpop.f32.mrf.mxu0
  %v5177 = vadd.f32 0.0, %v5176
  %5178 = vmatmul.bf16.gmra.mxu0 %v5008
  %v5179 = vpop.f32.mrf.mxu0
  %v5180 = vadd.f32 0.0, %v5179
  %v5181 = vpop.f32.mrf.mxu0
  %v5182 = vadd.f32 0.0, %v5181
  %5183 = vmatmul.bf16.gmra.mxu0 %v5009
  %v5184 = vpop.f32.mrf.mxu0
  %v5185 = vadd.f32 0.0, %v5184
  %v5186 = vpop.f32.mrf.mxu0
  %v5187 = vadd.f32 0.0, %v5186
  %5188 = vmatmul.bf16.gmra.mxu0 %v5010
  %v5189 = vpop.f32.mrf.mxu0
  %v5190 = vadd.f32 0.0, %v5189
  %v5191 = vpop.f32.mrf.mxu0
  %v5192 = vadd.f32 0.0, %v5191
  %5193 = vmatmul.bf16.gmra.mxu0 %v5011
  %v5194 = vpop.f32.mrf.mxu0
  %v5195 = vadd.f32 0.0, %v5194
  %v5196 = vpop.f32.mrf.mxu0
  %v5197 = vadd.f32 0.0, %v5196
  %5198 = vmatmul.bf16.gmra.mxu0 %v5012
  %v5199 = vpop.f32.mrf.mxu0
  %v5200 = vadd.f32 0.0, %v5199
  %v5201 = vpop.f32.mrf.mxu0
  %v5202 = vadd.f32 0.0, %v5201
  %5203 = vmatmul.bf16.gmra.mxu0 %v5013
  %v5204 = vpop.f32.mrf.mxu0
  %v5205 = vadd.f32 0.0, %v5204
  %v5206 = vpop.f32.mrf.mxu0
  %v5207 = vadd.f32 0.0, %v5206
  %5208 = vdwg.mxu0
  %v5225 = vunpack.c.l.b16 %v4990
  %v5226 = vunpack.c.h.b16 %v4990
  %v5227 = vunpack.c.l.b16 %v4991
  %v5228 = vunpack.c.h.b16 %v4991
  %v5229 = vunpack.c.l.b16 %v4992
  %v5230 = vunpack.c.h.b16 %v4992
  %v5231 = vunpack.c.l.b16 %v4993
  %v5232 = vunpack.c.h.b16 %v4993
  %v5233 = vunpack.c.l.b16 %v4994
  %v5234 = vunpack.c.h.b16 %v4994
  %v5235 = vunpack.c.l.b16 %v4995
  %v5236 = vunpack.c.h.b16 %v4995
  %v5237 = vunpack.c.l.b16 %v4996
  %v5238 = vunpack.c.h.b16 %v4996
  %v5239 = vunpack.c.l.b16 %v4997
  %v5240 = vunpack.c.h.b16 %v4997
  %v5241 = vunpack.c.l.b16 %v4998
  %v5242 = vunpack.c.h.b16 %v4998
  %v5243 = vunpack.c.l.b16 %v4999
  %v5244 = vunpack.c.h.b16 %v4999
  %v5245 = vunpack.c.l.b16 %v5000
  %v5246 = vunpack.c.h.b16 %v5000
  %v5247 = vunpack.c.l.b16 %v5001
  %v5248 = vunpack.c.h.b16 %v5001
  %v5249 = vunpack.c.l.b16 %v5002
  %v5250 = vunpack.c.h.b16 %v5002
  %v5251 = vunpack.c.l.b16 %v5003
  %v5252 = vunpack.c.h.b16 %v5003
  %v5253 = vunpack.c.l.b16 %v5004
  %v5254 = vunpack.c.h.b16 %v5004
  %v5255 = vunpack.c.l.b16 %v5005
  %v5256 = vunpack.c.h.b16 %v5005
  %v5257 = vpack.c.b16 %v5227, %v5225
  %v5258 = vpack.c.b16 %v5228, %v5226
  %v5259 = vpack.c.b16 %v5231, %v5229
  %v5260 = vpack.c.b16 %v5232, %v5230
  %v5261 = vpack.c.b16 %v5235, %v5233
  %v5262 = vpack.c.b16 %v5236, %v5234
  %v5263 = vpack.c.b16 %v5239, %v5237
  %v5264 = vpack.c.b16 %v5240, %v5238
  %v5265 = vpack.c.b16 %v5243, %v5241
  %v5266 = vpack.c.b16 %v5244, %v5242
  %v5267 = vpack.c.b16 %v5247, %v5245
  %v5268 = vpack.c.b16 %v5248, %v5246
  %v5269 = vpack.c.b16 %v5251, %v5249
  %v5270 = vpack.c.b16 %v5252, %v5250
  %v5271 = vpack.c.b16 %v5255, %v5253
  %v5272 = vpack.c.b16 %v5256, %v5254
  %5289 = vmatpush.bf16.msra.mxu0 %v5271
  %5290 = vmatpush.bf16.msra.mxu0 %v5269
  %5291 = vmatpush.bf16.msra.mxu0 %v5267
  %5292 = vmatpush.bf16.msra.mxu0 %v5265
  %5293 = vmatpush.bf16.msra.mxu0 %v5263
  %5294 = vmatpush.bf16.msra.mxu0 %v5261
  %5295 = vmatpush.bf16.msra.mxu0 %v5259
  %5296 = vmatpush.bf16.msra.mxu0 %v5257
  %5297 = vmatmul.bf16.gmra.mxu0 %v4982
  %v5298 = vpop.f32.mrf.mxu0
  %v5299 = vadd.f32 %v5121, %v5298
  %v5300 = vpop.f32.mrf.mxu0
  %v5301 = vadd.f32 %v5123, %v5300
  %5302 = vmatmul.bf16.gmra.mxu0 %v4983
  %v5303 = vpop.f32.mrf.mxu0
  %v5304 = vadd.f32 %v5126, %v5303
  %v5305 = vpop.f32.mrf.mxu0
  %v5306 = vadd.f32 %v5128, %v5305
  %5307 = vmatmul.bf16.gmra.mxu0 %v4984
  %v5308 = vpop.f32.mrf.mxu0
  %v5309 = vadd.f32 %v5131, %v5308
  %v5310 = vpop.f32.mrf.mxu0
  %v5311 = vadd.f32 %v5133, %v5310
  %5312 = vmatmul.bf16.gmra.mxu0 %v4985
  %v5313 = vpop.f32.mrf.mxu0
  %v5314 = vadd.f32 %v5136, %v5313
  %v5315 = vpop.f32.mrf.mxu0
  %v5316 = vadd.f32 %v5138, %v5315
  %5317 = vmatmul.bf16.gmra.mxu0 %v4986
  %v5318 = vpop.f32.mrf.mxu0
  %v5319 = vadd.f32 %v5141, %v5318
  %v5320 = vpop.f32.mrf.mxu0
  %v5321 = vadd.f32 %v5143, %v5320
  %5322 = vmatmul.bf16.gmra.mxu0 %v4987
  %v5323 = vpop.f32.mrf.mxu0
  %v5324 = vadd.f32 %v5146, %v5323
  %v5325 = vpop.f32.mrf.mxu0
  %v5326 = vadd.f32 %v5148, %v5325
  %5327 = vmatmul.bf16.gmra.mxu0 %v4988
  %v5328 = vpop.f32.mrf.mxu0
  %v5329 = vadd.f32 %v5151, %v5328
  %v5330 = vpop.f32.mrf.mxu0
  %v5331 = vadd.f32 %v5153, %v5330
  %5332 = vmatmul.bf16.gmra.mxu0 %v4989
  %v5333 = vpop.f32.mrf.mxu0
  %v5334 = vadd.f32 %v5156, %v5333
  %v5335 = vpop.f32.mrf.mxu0
  %v5336 = vadd.f32 %v5158, %v5335
  %5337 = vdwg.mxu0
  %5338 = vmatpush.bf16.msra.mxu0 %v5272
  %5339 = vmatpush.bf16.msra.mxu0 %v5270
  %5340 = vmatpush.bf16.msra.mxu0 %v5268
  %5341 = vmatpush.bf16.msra.mxu0 %v5266
  %5342 = vmatpush.bf16.msra.mxu0 %v5264
  %5343 = vmatpush.bf16.msra.mxu0 %v5262
  %5344 = vmatpush.bf16.msra.mxu0 %v5260
  %5345 = vmatpush.bf16.msra.mxu0 %v5258
  %5346 = vmatmul.bf16.gmra.mxu0 %v4982
  %v5347 = vpop.f32.mrf.mxu0
  %v5348 = vadd.f32 %v5170, %v5347
  %v5349 = vpop.f32.mrf.mxu0
  %v5350 = vadd.f32 %v5172, %v5349
  %5351 = vmatmul.bf16.gmra.mxu0 %v4983
  %v5352 = vpop.f32.mrf.mxu0
  %v5353 = vadd.f32 %v5175, %v5352
  %v5354 = vpop.f32.mrf.mxu0
  %v5355 = vadd.f32 %v5177, %v5354
  %5356 = vmatmul.bf16.gmra.mxu0 %v4984
  %v5357 = vpop.f32.mrf.mxu0
  %v5358 = vadd.f32 %v5180, %v5357
  %v5359 = vpop.f32.mrf.mxu0
  %v5360 = vadd.f32 %v5182, %v5359
  %5361 = vmatmul.bf16.gmra.mxu0 %v4985
  %v5362 = vpop.f32.mrf.mxu0
  %v5363 = vadd.f32 %v5185, %v5362
  %v5364 = vpop.f32.mrf.mxu0
  %v5365 = vadd.f32 %v5187, %v5364
  %5366 = vmatmul.bf16.gmra.mxu0 %v4986
  %v5367 = vpop.f32.mrf.mxu0
  %v5368 = vadd.f32 %v5190, %v5367
  %v5369 = vpop.f32.mrf.mxu0
  %v5370 = vadd.f32 %v5192, %v5369
  %5371 = vmatmul.bf16.gmra.mxu0 %v4987
  %v5372 = vpop.f32.mrf.mxu0
  %v5373 = vadd.f32 %v5195, %v5372
  %v5374 = vpop.f32.mrf.mxu0
  %v5375 = vadd.f32 %v5197, %v5374
  %5376 = vmatmul.bf16.gmra.mxu0 %v4988
  %v5377 = vpop.f32.mrf.mxu0
  %v5378 = vadd.f32 %v5200, %v5377
  %v5379 = vpop.f32.mrf.mxu0
  %v5380 = vadd.f32 %v5202, %v5379
  %5381 = vmatmul.bf16.gmra.mxu0 %v4989
  %v5382 = vpop.f32.mrf.mxu0
  %v5383 = vadd.f32 %v5205, %v5382
  %v5384 = vpop.f32.mrf.mxu0
  %v5385 = vadd.f32 %v5207, %v5384
  %5386 = vdwg.mxu0
  %v5387 = vpack.c.bf16 %v4919, %v4918
  %v5388 = vpack.c.bf16 %v4921, %v4920
  %v5389 = vpack.c.bf16 %v4923, %v4922
  %v5390 = vpack.c.bf16 %v4925, %v4924
  %v5391 = vpack.c.bf16 %v4927, %v4926
  %v5392 = vpack.c.bf16 %v4929, %v4928
  %v5393 = vpack.c.bf16 %v4931, %v4930
  %v5394 = vpack.c.bf16 %v4933, %v4932
  %s5395 = scalar_lea.vmem %s10, 256
  %v5396 = vld [vmem:[%s5395] sm:$0xff]
  %v5397 = vld [vmem:[%s5395 + $0x8] sm:$0xff]
  %v5398 = vld [vmem:[%s5395 + $0x10] sm:$0xff]
  %v5399 = vld [vmem:[%s5395 + $0x18] sm:$0xff]
  %v5400 = vld [vmem:[%s5395 + $0x20] sm:$0xff]
  %v5401 = vld [vmem:[%s5395 + $0x28] sm:$0xff]
  %v5402 = vld [vmem:[%s5395 + $0x30] sm:$0xff]
  %v5403 = vld [vmem:[%s5395 + $0x38] sm:$0xff]
  %v5404 = vld [vmem:[%s5395 + $0x40] sm:$0xff]
  %v5405 = vld [vmem:[%s5395 + $0x48] sm:$0xff]
  %v5406 = vld [vmem:[%s5395 + $0x50] sm:$0xff]
  %v5407 = vld [vmem:[%s5395 + $0x58] sm:$0xff]
  %v5408 = vld [vmem:[%s5395 + $0x60] sm:$0xff]
  %v5409 = vld [vmem:[%s5395 + $0x68] sm:$0xff]
  %v5410 = vld [vmem:[%s5395 + $0x70] sm:$0xff]
  %v5411 = vld [vmem:[%s5395 + $0x78] sm:$0xff]
  %v5428 = vunpack.c.l.b16 %v5396
  %v5429 = vunpack.c.h.b16 %v5396
  %v5430 = vunpack.c.l.b16 %v5397
  %v5431 = vunpack.c.h.b16 %v5397
  %v5432 = vunpack.c.l.b16 %v5398
  %v5433 = vunpack.c.h.b16 %v5398
  %v5434 = vunpack.c.l.b16 %v5399
  %v5435 = vunpack.c.h.b16 %v5399
  %v5436 = vunpack.c.l.b16 %v5400
  %v5437 = vunpack.c.h.b16 %v5400
  %v5438 = vunpack.c.l.b16 %v5401
  %v5439 = vunpack.c.h.b16 %v5401
  %v5440 = vunpack.c.l.b16 %v5402
  %v5441 = vunpack.c.h.b16 %v5402
  %v5442 = vunpack.c.l.b16 %v5403
  %v5443 = vunpack.c.h.b16 %v5403
  %v5444 = vunpack.c.l.b16 %v5404
  %v5445 = vunpack.c.h.b16 %v5404
  %v5446 = vunpack.c.l.b16 %v5405
  %v5447 = vunpack.c.h.b16 %v5405
  %v5448 = vunpack.c.l.b16 %v5406
  %v5449 = vunpack.c.h.b16 %v5406
  %v5450 = vunpack.c.l.b16 %v5407
  %v5451 = vunpack.c.h.b16 %v5407
  %v5452 = vunpack.c.l.b16 %v5408
  %v5453 = vunpack.c.h.b16 %v5408
  %v5454 = vunpack.c.l.b16 %v5409
  %v5455 = vunpack.c.h.b16 %v5409
  %v5456 = vunpack.c.l.b16 %v5410
  %v5457 = vunpack.c.h.b16 %v5410
  %v5458 = vunpack.c.l.b16 %v5411
  %v5459 = vunpack.c.h.b16 %v5411
  %v5460 = vpack.c.b16 %v5430, %v5428
  %v5461 = vpack.c.b16 %v5431, %v5429
  %v5462 = vpack.c.b16 %v5434, %v5432
  %v5463 = vpack.c.b16 %v5435, %v5433
  %v5464 = vpack.c.b16 %v5438, %v5436
  %v5465 = vpack.c.b16 %v5439, %v5437
  %v5466 = vpack.c.b16 %v5442, %v5440
  %v5467 = vpack.c.b16 %v5443, %v5441
  %v5468 = vpack.c.b16 %v5446, %v5444
  %v5469 = vpack.c.b16 %v5447, %v5445
  %v5470 = vpack.c.b16 %v5450, %v5448
  %v5471 = vpack.c.b16 %v5451, %v5449
  %v5472 = vpack.c.b16 %v5454, %v5452
  %v5473 = vpack.c.b16 %v5455, %v5453
  %v5474 = vpack.c.b16 %v5458, %v5456
  %v5475 = vpack.c.b16 %v5459, %v5457
  %5492 = vmatpush.bf16.msra.mxu0 %v5474
  %5493 = vmatpush.bf16.msra.mxu0 %v5472
  %5494 = vmatpush.bf16.msra.mxu0 %v5470
  %5495 = vmatpush.bf16.msra.mxu0 %v5468
  %5496 = vmatpush.bf16.msra.mxu0 %v5466
  %5497 = vmatpush.bf16.msra.mxu0 %v5464
  %5498 = vmatpush.bf16.msra.mxu0 %v5462
  %5499 = vmatpush.bf16.msra.mxu0 %v5460
  %5500 = vmatmul.bf16.gmra.mxu0 %v5387
  %v5501 = vpop.f32.mrf.mxu0
  %v5502 = vadd.f32 0.0, %v5501
  %v5503 = vpop.f32.mrf.mxu0
  %v5504 = vadd.f32 0.0, %v5503
  %5505 = vmatmul.bf16.gmra.mxu0 %v5388
  %v5506 = vpop.f32.mrf.mxu0
  %v5507 = vadd.f32 0.0, %v5506
  %v5508 = vpop.f32.mrf.mxu0
  %v5509 = vadd.f32 0.0, %v5508
  %5510 = vmatmul.bf16.gmra.mxu0 %v5389
  %v5511 = vpop.f32.mrf.mxu0
  %v5512 = vadd.f32 0.0, %v5511
  %v5513 = vpop.f32.mrf.mxu0
  %v5514 = vadd.f32 0.0, %v5513
  %5515 = vmatmul.bf16.gmra.mxu0 %v5390
  %v5516 = vpop.f32.mrf.mxu0
  %v5517 = vadd.f32 0.0, %v5516
  %v5518 = vpop.f32.mrf.mxu0
  %v5519 = vadd.f32 0.0, %v5518
  %5520 = vmatmul.bf16.gmra.mxu0 %v5391
  %v5521 = vpop.f32.mrf.mxu0
  %v5522 = vadd.f32 0.0, %v5521
  %v5523 = vpop.f32.mrf.mxu0
  %v5524 = vadd.f32 0.0, %v5523
  %5525 = vmatmul.bf16.gmra.mxu0 %v5392
  %v5526 = vpop.f32.mrf.mxu0
  %v5527 = vadd.f32 0.0, %v5526
  %v5528 = vpop.f32.mrf.mxu0
  %v5529 = vadd.f32 0.0, %v5528
  %5530 = vmatmul.bf16.gmra.mxu0 %v5393
  %v5531 = vpop.f32.mrf.mxu0
  %v5532 = vadd.f32 0.0, %v5531
  %v5533 = vpop.f32.mrf.mxu0
  %v5534 = vadd.f32 0.0, %v5533
  %5535 = vmatmul.bf16.gmra.mxu0 %v5394
  %v5536 = vpop.f32.mrf.mxu0
  %v5537 = vadd.f32 0.0, %v5536
  %v5538 = vpop.f32.mrf.mxu0
  %v5539 = vadd.f32 0.0, %v5538
  %5540 = vdwg.mxu0
  %5541 = vmatpush.bf16.msra.mxu0 %v5475
  %5542 = vmatpush.bf16.msra.mxu0 %v5473
  %5543 = vmatpush.bf16.msra.mxu0 %v5471
  %5544 = vmatpush.bf16.msra.mxu0 %v5469
  %5545 = vmatpush.bf16.msra.mxu0 %v5467
  %5546 = vmatpush.bf16.msra.mxu0 %v5465
  %5547 = vmatpush.bf16.msra.mxu0 %v5463
  %5548 = vmatpush.bf16.msra.mxu0 %v5461
  %5549 = vmatmul.bf16.gmra.mxu0 %v5387
  %v5550 = vpop.f32.mrf.mxu0
  %v5551 = vadd.f32 0.0, %v5550
  %v5552 = vpop.f32.mrf.mxu0
  %v5553 = vadd.f32 0.0, %v5552
  %5554 = vmatmul.bf16.gmra.mxu0 %v5388
  %v5555 = vpop.f32.mrf.mxu0
  %v5556 = vadd.f32 0.0, %v5555
  %v5557 = vpop.f32.mrf.mxu0
  %v5558 = vadd.f32 0.0, %v5557
  %5559 = vmatmul.bf16.gmra.mxu0 %v5389
  %v5560 = vpop.f32.mrf.mxu0
  %v5561 = vadd.f32 0.0, %v5560
  %v5562 = vpop.f32.mrf.mxu0
  %v5563 = vadd.f32 0.0, %v5562
  %5564 = vmatmul.bf16.gmra.mxu0 %v5390
  %v5565 = vpop.f32.mrf.mxu0
  %v5566 = vadd.f32 0.0, %v5565
  %v5567 = vpop.f32.mrf.mxu0
  %v5568 = vadd.f32 0.0, %v5567
  %5569 = vmatmul.bf16.gmra.mxu0 %v5391
  %v5570 = vpop.f32.mrf.mxu0
  %v5571 = vadd.f32 0.0, %v5570
  %v5572 = vpop.f32.mrf.mxu0
  %v5573 = vadd.f32 0.0, %v5572
  %5574 = vmatmul.bf16.gmra.mxu0 %v5392
  %v5575 = vpop.f32.mrf.mxu0
  %v5576 = vadd.f32 0.0, %v5575
  %v5577 = vpop.f32.mrf.mxu0
  %v5578 = vadd.f32 0.0, %v5577
  %5579 = vmatmul.bf16.gmra.mxu0 %v5393
  %v5580 = vpop.f32.mrf.mxu0
  %v5581 = vadd.f32 0.0, %v5580
  %v5582 = vpop.f32.mrf.mxu0
  %v5583 = vadd.f32 0.0, %v5582
  %5584 = vmatmul.bf16.gmra.mxu0 %v5394
  %v5585 = vpop.f32.mrf.mxu0
  %v5586 = vadd.f32 0.0, %v5585
  %v5587 = vpop.f32.mrf.mxu0
  %v5588 = vadd.f32 0.0, %v5587
  %5589 = vdwg.mxu0
  %v5590 = vadd.f32 %v5299, %v5502
  %v5591 = vadd.f32 %v5348, %v5551
  %v5592 = vadd.f32 %v5301, %v5504
  %v5593 = vadd.f32 %v5350, %v5553
  %v5594 = vadd.f32 %v5304, %v5507
  %v5595 = vadd.f32 %v5353, %v5556
  %v5596 = vadd.f32 %v5306, %v5509
  %v5597 = vadd.f32 %v5355, %v5558
  %v5598 = vadd.f32 %v5309, %v5512
  %v5599 = vadd.f32 %v5358, %v5561
  %v5600 = vadd.f32 %v5311, %v5514
  %v5601 = vadd.f32 %v5360, %v5563
  %v5602 = vadd.f32 %v5314, %v5517
  %v5603 = vadd.f32 %v5363, %v5566
  %v5604 = vadd.f32 %v5316, %v5519
  %v5605 = vadd.f32 %v5365, %v5568
  %v5606 = vadd.f32 %v5319, %v5522
  %v5607 = vadd.f32 %v5368, %v5571
  %v5608 = vadd.f32 %v5321, %v5524
  %v5609 = vadd.f32 %v5370, %v5573
  %v5610 = vadd.f32 %v5324, %v5527
  %v5611 = vadd.f32 %v5373, %v5576
  %v5612 = vadd.f32 %v5326, %v5529
  %v5613 = vadd.f32 %v5375, %v5578
  %v5614 = vadd.f32 %v5329, %v5532
  %v5615 = vadd.f32 %v5378, %v5581
  %v5616 = vadd.f32 %v5331, %v5534
  %v5617 = vadd.f32 %v5380, %v5583
  %v5618 = vadd.f32 %v5334, %v5537
  %v5619 = vadd.f32 %v5383, %v5586
  %v5620 = vadd.f32 %v5336, %v5539
  %v5621 = vadd.f32 %v5385, %v5588
  %v5622 = vadd.f32 %v5590, %v5592
  %v5623 = vadd.f32 %v5622, %v5594
  %v5624 = vadd.f32 %v5623, %v5596
  %v5625 = vadd.f32 %v5624, %v5598
  %v5626 = vadd.f32 %v5625, %v5600
  %v5627 = vadd.f32 %v5626, %v5602
  %v5628 = vadd.f32 %v5627, %v5604
  %v5629 = vadd.f32 %v5628, %v5606
  %v5630 = vadd.f32 %v5629, %v5608
  %v5631 = vadd.f32 %v5630, %v5610
  %v5632 = vadd.f32 %v5631, %v5612
  %v5633 = vadd.f32 %v5632, %v5614
  %v5634 = vadd.f32 %v5633, %v5616
  %v5635 = vadd.f32 %v5634, %v5618
  %v5636 = vadd.f32 %v5635, %v5620
  %v5637 = vrot.slane %v5636, 4
  %v5638 = vadd.f32 %v5636, %v5637
  %v5639 = vrot.slane %v5638, 2
  %v5640 = vadd.f32 %v5638, %v5639
  %v5641 = vrot.slane %v5640, 1
  %v5642 = vadd.f32 %v5640, %v5641
  %v5643 = vadd.f32 %v5591, %v5593
  %v5644 = vadd.f32 %v5643, %v5595
  %v5645 = vadd.f32 %v5644, %v5597
  %v5646 = vadd.f32 %v5645, %v5599
  %v5647 = vadd.f32 %v5646, %v5601
  %v5648 = vadd.f32 %v5647, %v5603
  %v5649 = vadd.f32 %v5648, %v5605
  %v5650 = vadd.f32 %v5649, %v5607
  %v5651 = vadd.f32 %v5650, %v5609
  %v5652 = vadd.f32 %v5651, %v5611
  %v5653 = vadd.f32 %v5652, %v5613
  %v5654 = vadd.f32 %v5653, %v5615
  %v5655 = vadd.f32 %v5654, %v5617
  %v5656 = vadd.f32 %v5655, %v5619
  %v5657 = vadd.f32 %v5656, %v5621
  %v5658 = vrot.slane %v5657, 4
  %v5659 = vadd.f32 %v5657, %v5658
  %v5660 = vrot.slane %v5659, 2
  %v5661 = vadd.f32 %v5659, %v5660
  %v5662 = vrot.slane %v5661, 1
  %v5663 = vadd.f32 %v5661, %v5662
  %v5664 = vmul.f32 %v5642, %v4762
  %v5665 = vmul.f32 %v5663, %v4762
  %v5666 = vsub.f32 %v5590, %v5664
  %v5667 = vsub.f32 %v5591, %v5665
  %v5668 = vsub.f32 %v5592, %v5664
  %v5669 = vsub.f32 %v5593, %v5665
  %v5670 = vsub.f32 %v5594, %v5664
  %v5671 = vsub.f32 %v5595, %v5665
  %v5672 = vsub.f32 %v5596, %v5664
  %v5673 = vsub.f32 %v5597, %v5665
  %v5674 = vsub.f32 %v5598, %v5664
  %v5675 = vsub.f32 %v5599, %v5665
  %v5676 = vsub.f32 %v5600, %v5664
  %v5677 = vsub.f32 %v5601, %v5665
  %v5678 = vsub.f32 %v5602, %v5664
  %v5679 = vsub.f32 %v5603, %v5665
  %v5680 = vsub.f32 %v5604, %v5664
  %v5681 = vsub.f32 %v5605, %v5665
  %v5682 = vsub.f32 %v5606, %v5664
  %v5683 = vsub.f32 %v5607, %v5665
  %v5684 = vsub.f32 %v5608, %v5664
  %v5685 = vsub.f32 %v5609, %v5665
  %v5686 = vsub.f32 %v5610, %v5664
  %v5687 = vsub.f32 %v5611, %v5665
  %v5688 = vsub.f32 %v5612, %v5664
  %v5689 = vsub.f32 %v5613, %v5665
  %v5690 = vsub.f32 %v5614, %v5664
  %v5691 = vsub.f32 %v5615, %v5665
  %v5692 = vsub.f32 %v5616, %v5664
  %v5693 = vsub.f32 %v5617, %v5665
  %v5694 = vsub.f32 %v5618, %v5664
  %v5695 = vsub.f32 %v5619, %v5665
  %v5696 = vsub.f32 %v5620, %v5664
  %v5697 = vsub.f32 %v5621, %v5665
  %v5698 = vmul.f32 %v5666, %v5666
  %v5699 = vmul.f32 %v5667, %v5667
  %v5700 = vmul.f32 %v5668, %v5668
  %v5701 = vmul.f32 %v5669, %v5669
  %v5702 = vmul.f32 %v5670, %v5670
  %v5703 = vmul.f32 %v5671, %v5671
  %v5704 = vmul.f32 %v5672, %v5672
  %v5705 = vmul.f32 %v5673, %v5673
  %v5706 = vmul.f32 %v5674, %v5674
  %v5707 = vmul.f32 %v5675, %v5675
  %v5708 = vmul.f32 %v5676, %v5676
  %v5709 = vmul.f32 %v5677, %v5677
  %v5710 = vmul.f32 %v5678, %v5678
  %v5711 = vmul.f32 %v5679, %v5679
  %v5712 = vmul.f32 %v5680, %v5680
  %v5713 = vmul.f32 %v5681, %v5681
  %v5714 = vmul.f32 %v5682, %v5682
  %v5715 = vmul.f32 %v5683, %v5683
  %v5716 = vmul.f32 %v5684, %v5684
  %v5717 = vmul.f32 %v5685, %v5685
  %v5718 = vmul.f32 %v5686, %v5686
  %v5719 = vmul.f32 %v5687, %v5687
  %v5720 = vmul.f32 %v5688, %v5688
  %v5721 = vmul.f32 %v5689, %v5689
  %v5722 = vmul.f32 %v5690, %v5690
  %v5723 = vmul.f32 %v5691, %v5691
  %v5724 = vmul.f32 %v5692, %v5692
  %v5725 = vmul.f32 %v5693, %v5693
  %v5726 = vmul.f32 %v5694, %v5694
  %v5727 = vmul.f32 %v5695, %v5695
  %v5728 = vmul.f32 %v5696, %v5696
  %v5729 = vmul.f32 %v5697, %v5697
  %v5730 = vadd.f32 %v5698, %v5700
  %v5731 = vadd.f32 %v5730, %v5702
  %v5732 = vadd.f32 %v5731, %v5704
  %v5733 = vadd.f32 %v5732, %v5706
  %v5734 = vadd.f32 %v5733, %v5708
  %v5735 = vadd.f32 %v5734, %v5710
  %v5736 = vadd.f32 %v5735, %v5712
  %v5737 = vadd.f32 %v5736, %v5714
  %v5738 = vadd.f32 %v5737, %v5716
  %v5739 = vadd.f32 %v5738, %v5718
  %v5740 = vadd.f32 %v5739, %v5720
  %v5741 = vadd.f32 %v5740, %v5722
  %v5742 = vadd.f32 %v5741, %v5724
  %v5743 = vadd.f32 %v5742, %v5726
  %v5744 = vadd.f32 %v5743, %v5728
  %v5745 = vrot.slane %v5744, 4
  %v5746 = vadd.f32 %v5744, %v5745
  %v5747 = vrot.slane %v5746, 2
  %v5748 = vadd.f32 %v5746, %v5747
  %v5749 = vrot.slane %v5748, 1
  %v5750 = vadd.f32 %v5748, %v5749
  %v5751 = vadd.f32 %v5699, %v5701
  %v5752 = vadd.f32 %v5751, %v5703
  %v5753 = vadd.f32 %v5752, %v5705
  %v5754 = vadd.f32 %v5753, %v5707
  %v5755 = vadd.f32 %v5754, %v5709
  %v5756 = vadd.f32 %v5755, %v5711
  %v5757 = vadd.f32 %v5756, %v5713
  %v5758 = vadd.f32 %v5757, %v5715
  %v5759 = vadd.f32 %v5758, %v5717
  %v5760 = vadd.f32 %v5759, %v5719
  %v5761 = vadd.f32 %v5760, %v5721
  %v5762 = vadd.f32 %v5761, %v5723
  %v5763 = vadd.f32 %v5762, %v5725
  %v5764 = vadd.f32 %v5763, %v5727
  %v5765 = vadd.f32 %v5764, %v5729
  %v5766 = vrot.slane %v5765, 4
  %v5767 = vadd.f32 %v5765, %v5766
  %v5768 = vrot.slane %v5767, 2
  %v5769 = vadd.f32 %v5767, %v5768
  %v5770 = vrot.slane %v5769, 1
  %v5771 = vadd.f32 %v5769, %v5770
  %v5772 = vmul.f32 %v5750, %v4762
  %v5773 = vmul.f32 %v5771, %v4762
  %v5774 = vld [vmem:[%s11] sm:$0x3]
  %v5775 = vadd.f32 %v5772, 1e-05
  %v5776 = vadd.f32 %v5773, 1e-05
  %v5777 = vrsqrt.pop %v5775
  %v5778 = vmul.f32 %v5777, %v5775
  %v5779 = vmul.f32 %v5778, %v5777
  %v5780 = vmul.f32 0.5, %v5779
  %v5781 = vsub.f32 1.5, %v5780
  %v5782 = vmul.f32 %v5777, %v5781
  %vm5783 = vweird.f32 %v5775
  %vm5784 = vweird.f32 %v5777
  %vm5785 = vmor %vm5783, %vm5784
  %v5786 = vsel %vm5785, %v5777, %v5782
  %v5787 = vrsqrt.pop %v5776
  %v5788 = vmul.f32 %v5787, %v5776
  %v5789 = vmul.f32 %v5788, %v5787
  %v5790 = vmul.f32 0.5, %v5789
  %v5791 = vsub.f32 1.5, %v5790
  %v5792 = vmul.f32 %v5787, %v5791
  %vm5793 = vweird.f32 %v5776
  %vm5794 = vweird.f32 %v5787
  %vm5795 = vmor %vm5793, %vm5794
  %v5796 = vsel %vm5795, %v5787, %v5792
  %v5799 = vrot.slane %v5796, 7
  %vm5800 = vcmask 1040384
  %v5801 = vsel %vm5800, %v5786, %v5799
  %v5803 = vmul.f32 %v5774, %v5801
  %v5805 = vperm.slane %v5803, 0
  %v5806 = vperm.slane %v5803, 1
  %v5809 = vmul.f32 %v5666, %v5805
  %v5810 = vmul.f32 %v5667, %v5806
  %v5811 = vmul.f32 %v5668, %v5805
  %v5812 = vmul.f32 %v5669, %v5806
  %v5813 = vmul.f32 %v5670, %v5805
  %v5814 = vmul.f32 %v5671, %v5806
  %v5815 = vmul.f32 %v5672, %v5805
  %v5816 = vmul.f32 %v5673, %v5806
  %v5817 = vmul.f32 %v5674, %v5805
  %v5818 = vmul.f32 %v5675, %v5806
  %v5819 = vmul.f32 %v5676, %v5805
  %v5820 = vmul.f32 %v5677, %v5806
  %v5821 = vmul.f32 %v5678, %v5805
  %v5822 = vmul.f32 %v5679, %v5806
  %v5823 = vmul.f32 %v5680, %v5805
  %v5824 = vmul.f32 %v5681, %v5806
  %v5825 = vmul.f32 %v5682, %v5805
  %v5826 = vmul.f32 %v5683, %v5806
  %v5827 = vmul.f32 %v5684, %v5805
  %v5828 = vmul.f32 %v5685, %v5806
  %v5829 = vmul.f32 %v5686, %v5805
  %v5830 = vmul.f32 %v5687, %v5806
  %v5831 = vmul.f32 %v5688, %v5805
  %v5832 = vmul.f32 %v5689, %v5806
  %v5833 = vmul.f32 %v5690, %v5805
  %v5834 = vmul.f32 %v5691, %v5806
  %v5835 = vmul.f32 %v5692, %v5805
  %v5836 = vmul.f32 %v5693, %v5806
  %v5837 = vmul.f32 %v5694, %v5805
  %v5838 = vmul.f32 %v5695, %v5806
  %v5839 = vmul.f32 %v5696, %v5805
  %v5840 = vmul.f32 %v5697, %v5806
  %v5841 = vld [vmem:[%s12] sm:$0x3]
  %v5843 = vperm.slane %v5841, 0
  %v5844 = vperm.slane %v5841, 1
  %v5847 = vadd.f32 %v5809, %v5843
  %v5848 = vadd.f32 %v5810, %v5844
  %v5849 = vadd.f32 %v5811, %v5843
  %v5850 = vadd.f32 %v5812, %v5844
  %v5851 = vadd.f32 %v5813, %v5843
  %v5852 = vadd.f32 %v5814, %v5844
  %v5853 = vadd.f32 %v5815, %v5843
  %v5854 = vadd.f32 %v5816, %v5844
  %v5855 = vadd.f32 %v5817, %v5843
  %v5856 = vadd.f32 %v5818, %v5844
  %v5857 = vadd.f32 %v5819, %v5843
  %v5858 = vadd.f32 %v5820, %v5844
  %v5859 = vadd.f32 %v5821, %v5843
  %v5860 = vadd.f32 %v5822, %v5844
  %v5861 = vadd.f32 %v5823, %v5843
  %v5862 = vadd.f32 %v5824, %v5844
  %v5863 = vadd.f32 %v5825, %v5843
  %v5864 = vadd.f32 %v5826, %v5844
  %v5865 = vadd.f32 %v5827, %v5843
  %v5866 = vadd.f32 %v5828, %v5844
  %v5867 = vadd.f32 %v5829, %v5843
  %v5868 = vadd.f32 %v5830, %v5844
  %v5869 = vadd.f32 %v5831, %v5843
  %v5870 = vadd.f32 %v5832, %v5844
  %v5871 = vadd.f32 %v5833, %v5843
  %v5872 = vadd.f32 %v5834, %v5844
  %v5873 = vadd.f32 %v5835, %v5843
  %v5874 = vadd.f32 %v5836, %v5844
  %v5875 = vadd.f32 %v5837, %v5843
  %v5876 = vadd.f32 %v5838, %v5844
  %v5877 = vadd.f32 %v5839, %v5843
  %v5878 = vadd.f32 %v5840, %v5844
  %v5879 = vmax.f32 %v5847, 0.0
  %v5880 = vmax.f32 %v5848, 0.0
  %v5881 = vmax.f32 %v5849, 0.0
  %v5882 = vmax.f32 %v5850, 0.0
  %v5883 = vmax.f32 %v5851, 0.0
  %v5884 = vmax.f32 %v5852, 0.0
  %v5885 = vmax.f32 %v5853, 0.0
  %v5886 = vmax.f32 %v5854, 0.0
  %v5887 = vmax.f32 %v5855, 0.0
  %v5888 = vmax.f32 %v5856, 0.0
  %v5889 = vmax.f32 %v5857, 0.0
  %v5890 = vmax.f32 %v5858, 0.0
  %v5891 = vmax.f32 %v5859, 0.0
  %v5892 = vmax.f32 %v5860, 0.0
  %v5893 = vmax.f32 %v5861, 0.0
  %v5894 = vmax.f32 %v5862, 0.0
  %v5895 = vmax.f32 %v5863, 0.0
  %v5896 = vmax.f32 %v5864, 0.0
  %v5897 = vmax.f32 %v5865, 0.0
  %v5898 = vmax.f32 %v5866, 0.0
  %v5899 = vmax.f32 %v5867, 0.0
  %v5900 = vmax.f32 %v5868, 0.0
  %v5901 = vmax.f32 %v5869, 0.0
  %v5902 = vmax.f32 %v5870, 0.0
  %v5903 = vmax.f32 %v5871, 0.0
  %v5904 = vmax.f32 %v5872, 0.0
  %v5905 = vmax.f32 %v5873, 0.0
  %v5906 = vmax.f32 %v5874, 0.0
  %v5907 = vmax.f32 %v5875, 0.0
  %v5908 = vmax.f32 %v5876, 0.0
  %v5909 = vmax.f32 %v5877, 0.0
  %v5910 = vmax.f32 %v5878, 0.0
  %v5911 = vpack.c.bf16 %v5881, %v5879
  %v5912 = vpack.c.bf16 %v5882, %v5880
  %v5913 = vpack.c.bf16 %v5885, %v5883
  %v5914 = vpack.c.bf16 %v5886, %v5884
  %v5915 = vpack.c.bf16 %v5889, %v5887
  %v5916 = vpack.c.bf16 %v5890, %v5888
  %v5917 = vpack.c.bf16 %v5893, %v5891
  %v5918 = vpack.c.bf16 %v5894, %v5892
  %v5919 = vpack.c.bf16 %v5897, %v5895
  %v5920 = vpack.c.bf16 %v5898, %v5896
  %v5921 = vpack.c.bf16 %v5901, %v5899
  %v5922 = vpack.c.bf16 %v5902, %v5900
  %v5923 = vpack.c.bf16 %v5905, %v5903
  %v5924 = vpack.c.bf16 %v5906, %v5904
  %v5925 = vpack.c.bf16 %v5909, %v5907
  %v5926 = vpack.c.bf16 %v5910, %v5908
  %v5927 = vld [vmem:[%s13] sm:$0xf]
  %v5928 = vld [vmem:[%s13 + $0x4] sm:$0xf]
  %v5929 = vld [vmem:[%s13 + $0x8] sm:$0xf]
  %v5930 = vld [vmem:[%s13 + $0xc] sm:$0xf]
  %v5931 = vld [vmem:[%s13 + $0x10] sm:$0xf]
  %v5932 = vld [vmem:[%s13 + $0x14] sm:$0xf]
  %v5933 = vld [vmem:[%s13 + $0x18] sm:$0xf]
  %v5934 = vld [vmem:[%s13 + $0x1c] sm:$0xf]
  %v5935 = vld [vmem:[%s13 + $0x20] sm:$0xf]
  %v5936 = vld [vmem:[%s13 + $0x24] sm:$0xf]
  %v5937 = vld [vmem:[%s13 + $0x28] sm:$0xf]
  %v5938 = vld [vmem:[%s13 + $0x2c] sm:$0xf]
  %v5939 = vld [vmem:[%s13 + $0x30] sm:$0xf]
  %v5940 = vld [vmem:[%s13 + $0x34] sm:$0xf]
  %v5941 = vld [vmem:[%s13 + $0x38] sm:$0xf]
  %v5942 = vld [vmem:[%s13 + $0x3c] sm:$0xf]
  %v5943 = vld [vmem:[%s13 + $0x40] sm:$0xf]
  %v5944 = vld [vmem:[%s13 + $0x44] sm:$0xf]
  %v5945 = vld [vmem:[%s13 + $0x48] sm:$0xf]
  %v5946 = vld [vmem:[%s13 + $0x4c] sm:$0xf]
  %v5947 = vld [vmem:[%s13 + $0x50] sm:$0xf]
  %v5948 = vld [vmem:[%s13 + $0x54] sm:$0xf]
  %v5949 = vld [vmem:[%s13 + $0x58] sm:$0xf]
  %v5950 = vld [vmem:[%s13 + $0x5c] sm:$0xf]
  %v5951 = vld [vmem:[%s13 + $0x60] sm:$0xf]
  %v5952 = vld [vmem:[%s13 + $0x64] sm:$0xf]
  %v5953 = vld [vmem:[%s13 + $0x68] sm:$0xf]
  %v5954 = vld [vmem:[%s13 + $0x6c] sm:$0xf]
  %v5955 = vld [vmem:[%s13 + $0x70] sm:$0xf]
  %v5956 = vld [vmem:[%s13 + $0x74] sm:$0xf]
  %v5957 = vld [vmem:[%s13 + $0x78] sm:$0xf]
  %v5958 = vld [vmem:[%s13 + $0x7c] sm:$0xf]
  %v5991 = vunpack.c.l.b16 %v5927
  %v5992 = vunpack.c.l.b16 %v5928
  %v5993 = vunpack.c.l.b16 %v5929
  %v5994 = vunpack.c.l.b16 %v5930
  %v5995 = vunpack.c.l.b16 %v5931
  %v5996 = vunpack.c.l.b16 %v5932
  %v5997 = vunpack.c.l.b16 %v5933
  %v5998 = vunpack.c.l.b16 %v5934
  %v5999 = vunpack.c.l.b16 %v5935
  %v6000 = vunpack.c.l.b16 %v5936
  %v6001 = vunpack.c.l.b16 %v5937
  %v6002 = vunpack.c.l.b16 %v5938
  %v6003 = vunpack.c.l.b16 %v5939
  %v6004 = vunpack.c.l.b16 %v5940
  %v6005 = vunpack.c.l.b16 %v5941
  %v6006 = vunpack.c.l.b16 %v5942
  %v6007 = vunpack.c.l.b16 %v5943
  %v6008 = vunpack.c.l.b16 %v5944
  %v6009 = vunpack.c.l.b16 %v5945
  %v6010 = vunpack.c.l.b16 %v5946
  %v6011 = vunpack.c.l.b16 %v5947
  %v6012 = vunpack.c.l.b16 %v5948
  %v6013 = vunpack.c.l.b16 %v5949
  %v6014 = vunpack.c.l.b16 %v5950
  %v6015 = vunpack.c.l.b16 %v5951
  %v6016 = vunpack.c.l.b16 %v5952
  %v6017 = vunpack.c.l.b16 %v5953
  %v6018 = vunpack.c.l.b16 %v5954
  %v6019 = vunpack.c.l.b16 %v5955
  %v6020 = vunpack.c.l.b16 %v5956
  %v6021 = vunpack.c.l.b16 %v5957
  %v6022 = vunpack.c.l.b16 %v5958
  %v6023 = vpack.c.b16 %v5992, %v5991
  %v6024 = vpack.c.b16 %v5994, %v5993
  %v6025 = vpack.c.b16 %v5996, %v5995
  %v6026 = vpack.c.b16 %v5998, %v5997
  %v6027 = vpack.c.b16 %v6000, %v5999
  %v6028 = vpack.c.b16 %v6002, %v6001
  %v6029 = vpack.c.b16 %v6004, %v6003
  %v6030 = vpack.c.b16 %v6006, %v6005
  %v6031 = vpack.c.b16 %v6008, %v6007
  %v6032 = vpack.c.b16 %v6010, %v6009
  %v6033 = vpack.c.b16 %v6012, %v6011
  %v6034 = vpack.c.b16 %v6014, %v6013
  %v6035 = vpack.c.b16 %v6016, %v6015
  %v6036 = vpack.c.b16 %v6018, %v6017
  %v6037 = vpack.c.b16 %v6020, %v6019
  %v6038 = vpack.c.b16 %v6022, %v6021
  %6055 = vmatpush.bf16.msra.mxu0 %v6030
  %6056 = vmatpush.bf16.msra.mxu0 %v6029
  %6057 = vmatpush.bf16.msra.mxu0 %v6028
  %6058 = vmatpush.bf16.msra.mxu0 %v6027
  %6059 = vmatpush.bf16.msra.mxu0 %v6026
  %6060 = vmatpush.bf16.msra.mxu0 %v6025
  %6061 = vmatpush.bf16.msra.mxu0 %v6024
  %6062 = vmatpush.bf16.msra.mxu0 %v6023
  %6063 = vmatmul.bf16.gmra.mxu0 %v5911
  %v6064 = vpop.f32.mrf.mxu0
  %v6065 = vadd.f32 0.0, %v6064
  %v6066 = vpop.f32.mrf.mxu0
  %v6067 = vadd.f32 0.0, %v6066
  %6068 = vmatmul.bf16.gmra.mxu0 %v5913
  %v6069 = vpop.f32.mrf.mxu0
  %v6070 = vadd.f32 0.0, %v6069
  %v6071 = vpop.f32.mrf.mxu0
  %v6072 = vadd.f32 0.0, %v6071
  %6073 = vmatmul.bf16.gmra.mxu0 %v5915
  %v6074 = vpop.f32.mrf.mxu0
  %v6075 = vadd.f32 0.0, %v6074
  %v6076 = vpop.f32.mrf.mxu0
  %v6077 = vadd.f32 0.0, %v6076
  %6078 = vmatmul.bf16.gmra.mxu0 %v5917
  %v6079 = vpop.f32.mrf.mxu0
  %v6080 = vadd.f32 0.0, %v6079
  %v6081 = vpop.f32.mrf.mxu0
  %v6082 = vadd.f32 0.0, %v6081
  %6083 = vmatmul.bf16.gmra.mxu0 %v5919
  %v6084 = vpop.f32.mrf.mxu0
  %v6085 = vadd.f32 0.0, %v6084
  %v6086 = vpop.f32.mrf.mxu0
  %v6087 = vadd.f32 0.0, %v6086
  %6088 = vmatmul.bf16.gmra.mxu0 %v5921
  %v6089 = vpop.f32.mrf.mxu0
  %v6090 = vadd.f32 0.0, %v6089
  %v6091 = vpop.f32.mrf.mxu0
  %v6092 = vadd.f32 0.0, %v6091
  %6093 = vmatmul.bf16.gmra.mxu0 %v5923
  %v6094 = vpop.f32.mrf.mxu0
  %v6095 = vadd.f32 0.0, %v6094
  %v6096 = vpop.f32.mrf.mxu0
  %v6097 = vadd.f32 0.0, %v6096
  %6098 = vmatmul.bf16.gmra.mxu0 %v5925
  %v6099 = vpop.f32.mrf.mxu0
  %v6100 = vadd.f32 0.0, %v6099
  %v6101 = vpop.f32.mrf.mxu0
  %v6102 = vadd.f32 0.0, %v6101
  %6103 = vdwg.mxu0
  %6104 = vmatpush.bf16.msra.mxu0 %v6038
  %6105 = vmatpush.bf16.msra.mxu0 %v6037
  %6106 = vmatpush.bf16.msra.mxu0 %v6036
  %6107 = vmatpush.bf16.msra.mxu0 %v6035
  %6108 = vmatpush.bf16.msra.mxu0 %v6034
  %6109 = vmatpush.bf16.msra.mxu0 %v6033
  %6110 = vmatpush.bf16.msra.mxu0 %v6032
  %6111 = vmatpush.bf16.msra.mxu0 %v6031
  %6112 = vmatmul.bf16.gmra.mxu0 %v5912
  %v6113 = vpop.f32.mrf.mxu0
  %v6114 = vadd.f32 %v6065, %v6113
  %v6115 = vpop.f32.mrf.mxu0
  %v6116 = vadd.f32 %v6067, %v6115
  %6117 = vmatmul.bf16.gmra.mxu0 %v5914
  %v6118 = vpop.f32.mrf.mxu0
  %v6119 = vadd.f32 %v6070, %v6118
  %v6120 = vpop.f32.mrf.mxu0
  %v6121 = vadd.f32 %v6072, %v6120
  %6122 = vmatmul.bf16.gmra.mxu0 %v5916
  %v6123 = vpop.f32.mrf.mxu0
  %v6124 = vadd.f32 %v6075, %v6123
  %v6125 = vpop.f32.mrf.mxu0
  %v6126 = vadd.f32 %v6077, %v6125
  %6127 = vmatmul.bf16.gmra.mxu0 %v5918
  %v6128 = vpop.f32.mrf.mxu0
  %v6129 = vadd.f32 %v6080, %v6128
  %v6130 = vpop.f32.mrf.mxu0
  %v6131 = vadd.f32 %v6082, %v6130
  %6132 = vmatmul.bf16.gmra.mxu0 %v5920
  %v6133 = vpop.f32.mrf.mxu0
  %v6134 = vadd.f32 %v6085, %v6133
  %v6135 = vpop.f32.mrf.mxu0
  %v6136 = vadd.f32 %v6087, %v6135
  %6137 = vmatmul.bf16.gmra.mxu0 %v5922
  %v6138 = vpop.f32.mrf.mxu0
  %v6139 = vadd.f32 %v6090, %v6138
  %v6140 = vpop.f32.mrf.mxu0
  %v6141 = vadd.f32 %v6092, %v6140
  %6142 = vmatmul.bf16.gmra.mxu0 %v5924
  %v6143 = vpop.f32.mrf.mxu0
  %v6144 = vadd.f32 %v6095, %v6143
  %v6145 = vpop.f32.mrf.mxu0
  %v6146 = vadd.f32 %v6097, %v6145
  %6147 = vmatmul.bf16.gmra.mxu0 %v5926
  %v6148 = vpop.f32.mrf.mxu0
  %v6149 = vadd.f32 %v6100, %v6148
  %v6150 = vpop.f32.mrf.mxu0
  %v6151 = vadd.f32 %v6102, %v6150
  %6152 = vdwg.mxu0
  %s6153 = scalar_lea.vmem %s13, 128
  %v6154 = vld [vmem:[%s6153] sm:$0xf]
  %v6155 = vld [vmem:[%s6153 + $0x4] sm:$0xf]
  %v6156 = vld [vmem:[%s6153 + $0x8] sm:$0xf]
  %v6157 = vld [vmem:[%s6153 + $0xc] sm:$0xf]
  %v6158 = vld [vmem:[%s6153 + $0x10] sm:$0xf]
  %v6159 = vld [vmem:[%s6153 + $0x14] sm:$0xf]
  %v6160 = vld [vmem:[%s6153 + $0x18] sm:$0xf]
  %v6161 = vld [vmem:[%s6153 + $0x1c] sm:$0xf]
  %v6162 = vld [vmem:[%s6153 + $0x20] sm:$0xf]
  %v6163 = vld [vmem:[%s6153 + $0x24] sm:$0xf]
  %v6164 = vld [vmem:[%s6153 + $0x28] sm:$0xf]
  %v6165 = vld [vmem:[%s6153 + $0x2c] sm:$0xf]
  %v6166 = vld [vmem:[%s6153 + $0x30] sm:$0xf]
  %v6167 = vld [vmem:[%s6153 + $0x34] sm:$0xf]
  %v6168 = vld [vmem:[%s6153 + $0x38] sm:$0xf]
  %v6169 = vld [vmem:[%s6153 + $0x3c] sm:$0xf]
  %v6170 = vld [vmem:[%s6153 + $0x40] sm:$0xf]
  %v6171 = vld [vmem:[%s6153 + $0x44] sm:$0xf]
  %v6172 = vld [vmem:[%s6153 + $0x48] sm:$0xf]
  %v6173 = vld [vmem:[%s6153 + $0x4c] sm:$0xf]
  %v6174 = vld [vmem:[%s6153 + $0x50] sm:$0xf]
  %v6175 = vld [vmem:[%s6153 + $0x54] sm:$0xf]
  %v6176 = vld [vmem:[%s6153 + $0x58] sm:$0xf]
  %v6177 = vld [vmem:[%s6153 + $0x5c] sm:$0xf]
  %v6178 = vld [vmem:[%s6153 + $0x60] sm:$0xf]
  %v6179 = vld [vmem:[%s6153 + $0x64] sm:$0xf]
  %v6180 = vld [vmem:[%s6153 + $0x68] sm:$0xf]
  %v6181 = vld [vmem:[%s6153 + $0x6c] sm:$0xf]
  %v6182 = vld [vmem:[%s6153 + $0x70] sm:$0xf]
  %v6183 = vld [vmem:[%s6153 + $0x74] sm:$0xf]
  %v6184 = vld [vmem:[%s6153 + $0x78] sm:$0xf]
  %v6185 = vld [vmem:[%s6153 + $0x7c] sm:$0xf]
  %s6186 = scalar_lea.vmem %s13, 256
  %v6187 = vld [vmem:[%s6186] sm:$0xf]
  %v6188 = vld [vmem:[%s6186 + $0x4] sm:$0xf]
  %v6189 = vld [vmem:[%s6186 + $0x8] sm:$0xf]
  %v6190 = vld [vmem:[%s6186 + $0xc] sm:$0xf]
  %v6191 = vld [vmem:[%s6186 + $0x10] sm:$0xf]
  %v6192 = vld [vmem:[%s6186 + $0x14] sm:$0xf]
  %v6193 = vld [vmem:[%s6186 + $0x18] sm:$0xf]
  %v6194 = vld [vmem:[%s6186 + $0x1c] sm:$0xf]
  %v6195 = vld [vmem:[%s6186 + $0x20] sm:$0xf]
  %v6196 = vld [vmem:[%s6186 + $0x24] sm:$0xf]
  %v6197 = vld [vmem:[%s6186 + $0x28] sm:$0xf]
  %v6198 = vld [vmem:[%s6186 + $0x2c] sm:$0xf]
  %v6199 = vld [vmem:[%s6186 + $0x30] sm:$0xf]
  %v6200 = vld [vmem:[%s6186 + $0x34] sm:$0xf]
  %v6201 = vld [vmem:[%s6186 + $0x38] sm:$0xf]
  %v6202 = vld [vmem:[%s6186 + $0x3c] sm:$0xf]
  %v6203 = vld [vmem:[%s6186 + $0x40] sm:$0xf]
  %v6204 = vld [vmem:[%s6186 + $0x44] sm:$0xf]
  %v6205 = vld [vmem:[%s6186 + $0x48] sm:$0xf]
  %v6206 = vld [vmem:[%s6186 + $0x4c] sm:$0xf]
  %v6207 = vld [vmem:[%s6186 + $0x50] sm:$0xf]
  %v6208 = vld [vmem:[%s6186 + $0x54] sm:$0xf]
  %v6209 = vld [vmem:[%s6186 + $0x58] sm:$0xf]
  %v6210 = vld [vmem:[%s6186 + $0x5c] sm:$0xf]
  %v6211 = vld [vmem:[%s6186 + $0x60] sm:$0xf]
  %v6212 = vld [vmem:[%s6186 + $0x64] sm:$0xf]
  %v6213 = vld [vmem:[%s6186 + $0x68] sm:$0xf]
  %v6214 = vld [vmem:[%s6186 + $0x6c] sm:$0xf]
  %v6215 = vld [vmem:[%s6186 + $0x70] sm:$0xf]
  %v6216 = vld [vmem:[%s6186 + $0x74] sm:$0xf]
  %v6217 = vld [vmem:[%s6186 + $0x78] sm:$0xf]
  %v6218 = vld [vmem:[%s6186 + $0x7c] sm:$0xf]
  %v6251 = vunpack.c.l.b16 %v6187
  %v6252 = vunpack.c.l.b16 %v6188
  %v6253 = vunpack.c.l.b16 %v6189
  %v6254 = vunpack.c.l.b16 %v6190
  %v6255 = vunpack.c.l.b16 %v6191
  %v6256 = vunpack.c.l.b16 %v6192
  %v6257 = vunpack.c.l.b16 %v6193
  %v6258 = vunpack.c.l.b16 %v6194
  %v6259 = vunpack.c.l.b16 %v6195
  %v6260 = vunpack.c.l.b16 %v6196
  %v6261 = vunpack.c.l.b16 %v6197
  %v6262 = vunpack.c.l.b16 %v6198
  %v6263 = vunpack.c.l.b16 %v6199
  %v6264 = vunpack.c.l.b16 %v6200
  %v6265 = vunpack.c.l.b16 %v6201
  %v6266 = vunpack.c.l.b16 %v6202
  %v6267 = vunpack.c.l.b16 %v6203
  %v6268 = vunpack.c.l.b16 %v6204
  %v6269 = vunpack.c.l.b16 %v6205
  %v6270 = vunpack.c.l.b16 %v6206
  %v6271 = vunpack.c.l.b16 %v6207
  %v6272 = vunpack.c.l.b16 %v6208
  %v6273 = vunpack.c.l.b16 %v6209
  %v6274 = vunpack.c.l.b16 %v6210
  %v6275 = vunpack.c.l.b16 %v6211
  %v6276 = vunpack.c.l.b16 %v6212
  %v6277 = vunpack.c.l.b16 %v6213
  %v6278 = vunpack.c.l.b16 %v6214
  %v6279 = vunpack.c.l.b16 %v6215
  %v6280 = vunpack.c.l.b16 %v6216
  %v6281 = vunpack.c.l.b16 %v6217
  %v6282 = vunpack.c.l.b16 %v6218
  %v6283 = vpack.c.b16 %v6252, %v6251
  %v6284 = vpack.c.b16 %v6254, %v6253
  %v6285 = vpack.c.b16 %v6256, %v6255
  %v6286 = vpack.c.b16 %v6258, %v6257
  %v6287 = vpack.c.b16 %v6260, %v6259
  %v6288 = vpack.c.b16 %v6262, %v6261
  %v6289 = vpack.c.b16 %v6264, %v6263
  %v6290 = vpack.c.b16 %v6266, %v6265
  %v6291 = vpack.c.b16 %v6268, %v6267
  %v6292 = vpack.c.b16 %v6270, %v6269
  %v6293 = vpack.c.b16 %v6272, %v6271
  %v6294 = vpack.c.b16 %v6274, %v6273
  %v6295 = vpack.c.b16 %v6276, %v6275
  %v6296 = vpack.c.b16 %v6278, %v6277
  %v6297 = vpack.c.b16 %v6280, %v6279
  %v6298 = vpack.c.b16 %v6282, %v6281
  %6315 = vmatpush.bf16.msra.mxu0 %v6290
  %6316 = vmatpush.bf16.msra.mxu0 %v6289
  %6317 = vmatpush.bf16.msra.mxu0 %v6288
  %6318 = vmatpush.bf16.msra.mxu0 %v6287
  %6319 = vmatpush.bf16.msra.mxu0 %v6286
  %6320 = vmatpush.bf16.msra.mxu0 %v6285
  %6321 = vmatpush.bf16.msra.mxu0 %v6284
  %6322 = vmatpush.bf16.msra.mxu0 %v6283
  %6323 = vmatmul.bf16.gmra.mxu0 %v5911
  %v6324 = vpop.f32.mrf.mxu0
  %v6325 = vadd.f32 0.0, %v6324
  %v6326 = vpop.f32.mrf.mxu0
  %v6327 = vadd.f32 0.0, %v6326
  %6328 = vmatmul.bf16.gmra.mxu0 %v5913
  %v6329 = vpop.f32.mrf.mxu0
  %v6330 = vadd.f32 0.0, %v6329
  %v6331 = vpop.f32.mrf.mxu0
  %v6332 = vadd.f32 0.0, %v6331
  %6333 = vmatmul.bf16.gmra.mxu0 %v5915
  %v6334 = vpop.f32.mrf.mxu0
  %v6335 = vadd.f32 0.0, %v6334
  %v6336 = vpop.f32.mrf.mxu0
  %v6337 = vadd.f32 0.0, %v6336
  %6338 = vmatmul.bf16.gmra.mxu0 %v5917
  %v6339 = vpop.f32.mrf.mxu0
  %v6340 = vadd.f32 0.0, %v6339
  %v6341 = vpop.f32.mrf.mxu0
  %v6342 = vadd.f32 0.0, %v6341
  %6343 = vmatmul.bf16.gmra.mxu0 %v5919
  %v6344 = vpop.f32.mrf.mxu0
  %v6345 = vadd.f32 0.0, %v6344
  %v6346 = vpop.f32.mrf.mxu0
  %v6347 = vadd.f32 0.0, %v6346
  %6348 = vmatmul.bf16.gmra.mxu0 %v5921
  %v6349 = vpop.f32.mrf.mxu0
  %v6350 = vadd.f32 0.0, %v6349
  %v6351 = vpop.f32.mrf.mxu0
  %v6352 = vadd.f32 0.0, %v6351
  %6353 = vmatmul.bf16.gmra.mxu0 %v5923
  %v6354 = vpop.f32.mrf.mxu0
  %v6355 = vadd.f32 0.0, %v6354
  %v6356 = vpop.f32.mrf.mxu0
  %v6357 = vadd.f32 0.0, %v6356
  %6358 = vmatmul.bf16.gmra.mxu0 %v5925
  %v6359 = vpop.f32.mrf.mxu0
  %v6360 = vadd.f32 0.0, %v6359
  %v6361 = vpop.f32.mrf.mxu0
  %v6362 = vadd.f32 0.0, %v6361
  %6363 = vdwg.mxu0
  %6364 = vmatpush.bf16.msra.mxu0 %v6298
  %6365 = vmatpush.bf16.msra.mxu0 %v6297
  %6366 = vmatpush.bf16.msra.mxu0 %v6296
  %6367 = vmatpush.bf16.msra.mxu0 %v6295
  %6368 = vmatpush.bf16.msra.mxu0 %v6294
  %6369 = vmatpush.bf16.msra.mxu0 %v6293
  %6370 = vmatpush.bf16.msra.mxu0 %v6292
  %6371 = vmatpush.bf16.msra.mxu0 %v6291
  %6372 = vmatmul.bf16.gmra.mxu0 %v5912
  %v6373 = vpop.f32.mrf.mxu0
  %v6374 = vadd.f32 %v6325, %v6373
  %v6375 = vpop.f32.mrf.mxu0
  %v6376 = vadd.f32 %v6327, %v6375
  %6377 = vmatmul.bf16.gmra.mxu0 %v5914
  %v6378 = vpop.f32.mrf.mxu0
  %v6379 = vadd.f32 %v6330, %v6378
  %v6380 = vpop.f32.mrf.mxu0
  %v6381 = vadd.f32 %v6332, %v6380
  %6382 = vmatmul.bf16.gmra.mxu0 %v5916
  %v6383 = vpop.f32.mrf.mxu0
  %v6384 = vadd.f32 %v6335, %v6383
  %v6385 = vpop.f32.mrf.mxu0
  %v6386 = vadd.f32 %v6337, %v6385
  %6387 = vmatmul.bf16.gmra.mxu0 %v5918
  %v6388 = vpop.f32.mrf.mxu0
  %v6389 = vadd.f32 %v6340, %v6388
  %v6390 = vpop.f32.mrf.mxu0
  %v6391 = vadd.f32 %v6342, %v6390
  %6392 = vmatmul.bf16.gmra.mxu0 %v5920
  %v6393 = vpop.f32.mrf.mxu0
  %v6394 = vadd.f32 %v6345, %v6393
  %v6395 = vpop.f32.mrf.mxu0
  %v6396 = vadd.f32 %v6347, %v6395
  %6397 = vmatmul.bf16.gmra.mxu0 %v5922
  %v6398 = vpop.f32.mrf.mxu0
  %v6399 = vadd.f32 %v6350, %v6398
  %v6400 = vpop.f32.mrf.mxu0
  %v6401 = vadd.f32 %v6352, %v6400
  %6402 = vmatmul.bf16.gmra.mxu0 %v5924
  %v6403 = vpop.f32.mrf.mxu0
  %v6404 = vadd.f32 %v6355, %v6403
  %v6405 = vpop.f32.mrf.mxu0
  %v6406 = vadd.f32 %v6357, %v6405
  %6407 = vmatmul.bf16.gmra.mxu0 %v5926
  %v6408 = vpop.f32.mrf.mxu0
  %v6409 = vadd.f32 %v6360, %v6408
  %v6410 = vpop.f32.mrf.mxu0
  %v6411 = vadd.f32 %v6362, %v6410
  %6412 = vdwg.mxu0
  %v6413 = vrot.slane %v6114, 1
  %v6414 = vrot.slane %v6116, 1
  %v6415 = vrot.slane %v6119, 1
  %v6416 = vrot.slane %v6121, 1
  %v6417 = vrot.slane %v6124, 1
  %v6418 = vrot.slane %v6126, 1
  %v6419 = vrot.slane %v6129, 1
  %v6420 = vrot.slane %v6131, 1
  %v6421 = vrot.slane %v6134, 1
  %v6422 = vrot.slane %v6136, 1
  %v6423 = vrot.slane %v6139, 1
  %v6424 = vrot.slane %v6141, 1
  %v6425 = vrot.slane %v6144, 1
  %v6426 = vrot.slane %v6146, 1
  %v6427 = vrot.slane %v6149, 1
  %v6428 = vrot.slane %v6151, 1
  %v6429 = vsel %vm4344, %v6427, %v6428
  %v6430 = vsel %vm4344, %v6426, %v6427
  %v6431 = vsel %vm4344, %v6425, %v6426
  %v6432 = vsel %vm4344, %v6424, %v6425
  %v6433 = vsel %vm4344, %v6423, %v6424
  %v6434 = vsel %vm4344, %v6422, %v6423
  %v6435 = vsel %vm4344, %v6421, %v6422
  %v6436 = vsel %vm4344, %v6420, %v6421
  %v6437 = vsel %vm4344, %v6419, %v6420
  %v6438 = vsel %vm4344, %v6418, %v6419
  %v6439 = vsel %vm4344, %v6417, %v6418
  %v6440 = vsel %vm4344, %v6416, %v6417
  %v6441 = vsel %vm4344, %v6415, %v6416
  %v6442 = vsel %vm4344, %v6414, %v6415
  %v6443 = vsel %vm4344, %v6413, %v6414
  %v6444 = vsel %vm4344, %v6428, %v6413
  %v6445 = vmul.f32 %v6443, %v4263
  %v6446 = vmul.f32 %v6442, %v4264
  %v6447 = vmul.f32 %v6441, %v4265
  %v6448 = vmul.f32 %v6440, %v4266
  %v6449 = vmul.f32 %v6439, %v4267
  %v6450 = vmul.f32 %v6438, %v4268
  %v6451 = vmul.f32 %v6437, %v4269
  %v6452 = vmul.f32 %v6436, %v4270
  %v6453 = vmul.f32 %v6435, %v4271
  %v6454 = vmul.f32 %v6434, %v4272
  %v6455 = vmul.f32 %v6433, %v4273
  %v6456 = vmul.f32 %v6432, %v4274
  %v6457 = vmul.f32 %v6431, %v4275
  %v6458 = vmul.f32 %v6430, %v4276
  %v6459 = vmul.f32 %v6429, %v4277
  %v6460 = vmul.f32 %v6444, %v4278
  %v6493 = vunpack.c.l.b16 %v6154
  %v6494 = vunpack.c.l.b16 %v6155
  %v6495 = vunpack.c.l.b16 %v6156
  %v6496 = vunpack.c.l.b16 %v6157
  %v6497 = vunpack.c.l.b16 %v6158
  %v6498 = vunpack.c.l.b16 %v6159
  %v6499 = vunpack.c.l.b16 %v6160
  %v6500 = vunpack.c.l.b16 %v6161
  %v6501 = vunpack.c.l.b16 %v6162
  %v6502 = vunpack.c.l.b16 %v6163
  %v6503 = vunpack.c.l.b16 %v6164
  %v6504 = vunpack.c.l.b16 %v6165
  %v6505 = vunpack.c.l.b16 %v6166
  %v6506 = vunpack.c.l.b16 %v6167
  %v6507 = vunpack.c.l.b16 %v6168
  %v6508 = vunpack.c.l.b16 %v6169
  %v6509 = vunpack.c.l.b16 %v6170
  %v6510 = vunpack.c.l.b16 %v6171
  %v6511 = vunpack.c.l.b16 %v6172
  %v6512 = vunpack.c.l.b16 %v6173
  %v6513 = vunpack.c.l.b16 %v6174
  %v6514 = vunpack.c.l.b16 %v6175
  %v6515 = vunpack.c.l.b16 %v6176
  %v6516 = vunpack.c.l.b16 %v6177
  %v6517 = vunpack.c.l.b16 %v6178
  %v6518 = vunpack.c.l.b16 %v6179
  %v6519 = vunpack.c.l.b16 %v6180
  %v6520 = vunpack.c.l.b16 %v6181
  %v6521 = vunpack.c.l.b16 %v6182
  %v6522 = vunpack.c.l.b16 %v6183
  %v6523 = vunpack.c.l.b16 %v6184
  %v6524 = vunpack.c.l.b16 %v6185
  %v6525 = vpack.c.b16 %v6494, %v6493
  %v6526 = vpack.c.b16 %v6496, %v6495
  %v6527 = vpack.c.b16 %v6498, %v6497
  %v6528 = vpack.c.b16 %v6500, %v6499
  %v6529 = vpack.c.b16 %v6502, %v6501
  %v6530 = vpack.c.b16 %v6504, %v6503
  %v6531 = vpack.c.b16 %v6506, %v6505
  %v6532 = vpack.c.b16 %v6508, %v6507
  %v6533 = vpack.c.b16 %v6510, %v6509
  %v6534 = vpack.c.b16 %v6512, %v6511
  %v6535 = vpack.c.b16 %v6514, %v6513
  %v6536 = vpack.c.b16 %v6516, %v6515
  %v6537 = vpack.c.b16 %v6518, %v6517
  %v6538 = vpack.c.b16 %v6520, %v6519
  %v6539 = vpack.c.b16 %v6522, %v6521
  %v6540 = vpack.c.b16 %v6524, %v6523
  %6557 = vmatpush.bf16.msra.mxu0 %v6532
  %6558 = vmatpush.bf16.msra.mxu0 %v6531
  %6559 = vmatpush.bf16.msra.mxu0 %v6530
  %6560 = vmatpush.bf16.msra.mxu0 %v6529
  %6561 = vmatpush.bf16.msra.mxu0 %v6528
  %6562 = vmatpush.bf16.msra.mxu0 %v6527
  %6563 = vmatpush.bf16.msra.mxu0 %v6526
  %6564 = vmatpush.bf16.msra.mxu0 %v6525
  %6565 = vmatmul.bf16.gmra.mxu0 %v5911
  %v6566 = vpop.f32.mrf.mxu0
  %v6567 = vadd.f32 %v6445, %v6566
  %v6568 = vpop.f32.mrf.mxu0
  %v6569 = vadd.f32 %v6446, %v6568
  %6570 = vmatmul.bf16.gmra.mxu0 %v5913
  %v6571 = vpop.f32.mrf.mxu0
  %v6572 = vadd.f32 %v6447, %v6571
  %v6573 = vpop.f32.mrf.mxu0
  %v6574 = vadd.f32 %v6448, %v6573
  %6575 = vmatmul.bf16.gmra.mxu0 %v5915
  %v6576 = vpop.f32.mrf.mxu0
  %v6577 = vadd.f32 %v6449, %v6576
  %v6578 = vpop.f32.mrf.mxu0
  %v6579 = vadd.f32 %v6450, %v6578
  %6580 = vmatmul.bf16.gmra.mxu0 %v5917
  %v6581 = vpop.f32.mrf.mxu0
  %v6582 = vadd.f32 %v6451, %v6581
  %v6583 = vpop.f32.mrf.mxu0
  %v6584 = vadd.f32 %v6452, %v6583
  %6585 = vmatmul.bf16.gmra.mxu0 %v5919
  %v6586 = vpop.f32.mrf.mxu0
  %v6587 = vadd.f32 %v6453, %v6586
  %v6588 = vpop.f32.mrf.mxu0
  %v6589 = vadd.f32 %v6454, %v6588
  %6590 = vmatmul.bf16.gmra.mxu0 %v5921
  %v6591 = vpop.f32.mrf.mxu0
  %v6592 = vadd.f32 %v6455, %v6591
  %v6593 = vpop.f32.mrf.mxu0
  %v6594 = vadd.f32 %v6456, %v6593
  %6595 = vmatmul.bf16.gmra.mxu0 %v5923
  %v6596 = vpop.f32.mrf.mxu0
  %v6597 = vadd.f32 %v6457, %v6596
  %v6598 = vpop.f32.mrf.mxu0
  %v6599 = vadd.f32 %v6458, %v6598
  %6600 = vmatmul.bf16.gmra.mxu0 %v5925
  %v6601 = vpop.f32.mrf.mxu0
  %v6602 = vadd.f32 %v6459, %v6601
  %v6603 = vpop.f32.mrf.mxu0
  %v6604 = vadd.f32 %v6460, %v6603
  %6605 = vdwg.mxu0
  %6606 = vmatpush.bf16.msra.mxu0 %v6540
  %6607 = vmatpush.bf16.msra.mxu0 %v6539
  %6608 = vmatpush.bf16.msra.mxu0 %v6538
  %6609 = vmatpush.bf16.msra.mxu0 %v6537
  %6610 = vmatpush.bf16.msra.mxu0 %v6536
  %6611 = vmatpush.bf16.msra.mxu0 %v6535
  %6612 = vmatpush.bf16.msra.mxu0 %v6534
  %6613 = vmatpush.bf16.msra.mxu0 %v6533
  %6614 = vmatmul.bf16.gmra.mxu0 %v5912
  %v6615 = vpop.f32.mrf.mxu0
  %v6616 = vadd.f32 %v6567, %v6615
  %v6617 = vpop.f32.mrf.mxu0
  %v6618 = vadd.f32 %v6569, %v6617
  %6619 = vmatmul.bf16.gmra.mxu0 %v5914
  %v6620 = vpop.f32.mrf.mxu0
  %v6621 = vadd.f32 %v6572, %v6620
  %v6622 = vpop.f32.mrf.mxu0
  %v6623 = vadd.f32 %v6574, %v6622
  %6624 = vmatmul.bf16.gmra.mxu0 %v5916
  %v6625 = vpop.f32.mrf.mxu0
  %v6626 = vadd.f32 %v6577, %v6625
  %v6627 = vpop.f32.mrf.mxu0
  %v6628 = vadd.f32 %v6579, %v6627
  %6629 = vmatmul.bf16.gmra.mxu0 %v5918
  %v6630 = vpop.f32.mrf.mxu0
  %v6631 = vadd.f32 %v6582, %v6630
  %v6632 = vpop.f32.mrf.mxu0
  %v6633 = vadd.f32 %v6584, %v6632
  %6634 = vmatmul.bf16.gmra.mxu0 %v5920
  %v6635 = vpop.f32.mrf.mxu0
  %v6636 = vadd.f32 %v6587, %v6635
  %v6637 = vpop.f32.mrf.mxu0
  %v6638 = vadd.f32 %v6589, %v6637
  %6639 = vmatmul.bf16.gmra.mxu0 %v5922
  %v6640 = vpop.f32.mrf.mxu0
  %v6641 = vadd.f32 %v6592, %v6640
  %v6642 = vpop.f32.mrf.mxu0
  %v6643 = vadd.f32 %v6594, %v6642
  %6644 = vmatmul.bf16.gmra.mxu0 %v5924
  %v6645 = vpop.f32.mrf.mxu0
  %v6646 = vadd.f32 %v6597, %v6645
  %v6647 = vpop.f32.mrf.mxu0
  %v6648 = vadd.f32 %v6599, %v6647
  %6649 = vmatmul.bf16.gmra.mxu0 %v5926
  %v6650 = vpop.f32.mrf.mxu0
  %v6651 = vadd.f32 %v6602, %v6650
  %v6652 = vpop.f32.mrf.mxu0
  %v6653 = vadd.f32 %v6604, %v6652
  %6654 = vdwg.mxu0
  %v6655 = vrot.slane %v6374, 7
  %v6656 = vrot.slane %v6376, 7
  %v6657 = vrot.slane %v6379, 7
  %v6658 = vrot.slane %v6381, 7
  %v6659 = vrot.slane %v6384, 7
  %v6660 = vrot.slane %v6386, 7
  %v6661 = vrot.slane %v6389, 7
  %v6662 = vrot.slane %v6391, 7
  %v6663 = vrot.slane %v6394, 7
  %v6664 = vrot.slane %v6396, 7
  %v6665 = vrot.slane %v6399, 7
  %v6666 = vrot.slane %v6401, 7
  %v6667 = vrot.slane %v6404, 7
  %v6668 = vrot.slane %v6406, 7
  %v6669 = vrot.slane %v6409, 7
  %v6670 = vrot.slane %v6411, 7
  %v6671 = vsel %vm4295, %v6669, %v6670
  %v6672 = vsel %vm4295, %v6668, %v6669
  %v6673 = vsel %vm4295, %v6667, %v6668
  %v6674 = vsel %vm4295, %v6666, %v6667
  %v6675 = vsel %vm4295, %v6665, %v6666
  %v6676 = vsel %vm4295, %v6664, %v6665
  %v6677 = vsel %vm4295, %v6663, %v6664
  %v6678 = vsel %vm4295, %v6662, %v6663
  %v6679 = vsel %vm4295, %v6661, %v6662
  %v6680 = vsel %vm4295, %v6660, %v6661
  %v6681 = vsel %vm4295, %v6659, %v6660
  %v6682 = vsel %vm4295, %v6658, %v6659
  %v6683 = vsel %vm4295, %v6657, %v6658
  %v6684 = vsel %vm4295, %v6656, %v6657
  %v6685 = vsel %vm4295, %v6655, %v6656
  %v6686 = vsel %vm4295, %v6670, %v6655
  %v6687 = vmul.f32 %v6686, %v4215
  %v6688 = vmul.f32 %v6685, %v4216
  %v6689 = vmul.f32 %v6684, %v4217
  %v6690 = vmul.f32 %v6683, %v4218
  %v6691 = vmul.f32 %v6682, %v4219
  %v6692 = vmul.f32 %v6681, %v4220
  %v6693 = vmul.f32 %v6680, %v4221
  %v6694 = vmul.f32 %v6679, %v4222
  %v6695 = vmul.f32 %v6678, %v4223
  %v6696 = vmul.f32 %v6677, %v4224
  %v6697 = vmul.f32 %v6676, %v4225
  %v6698 = vmul.f32 %v6675, %v4226
  %v6699 = vmul.f32 %v6674, %v4227
  %v6700 = vmul.f32 %v6673, %v4228
  %v6701 = vmul.f32 %v6672, %v4229
  %v6702 = vmul.f32 %v6671, %v4230
  %v6703 = vadd.f32 %v6616, %v6687
  %v6704 = vadd.f32 %v6618, %v6688
  %v6705 = vadd.f32 %v6621, %v6689
  %v6706 = vadd.f32 %v6623, %v6690
  %v6707 = vadd.f32 %v6626, %v6691
  %v6708 = vadd.f32 %v6628, %v6692
  %v6709 = vadd.f32 %v6631, %v6693
  %v6710 = vadd.f32 %v6633, %v6694
  %v6711 = vadd.f32 %v6636, %v6695
  %v6712 = vadd.f32 %v6638, %v6696
  %v6713 = vadd.f32 %v6641, %v6697
  %v6714 = vadd.f32 %v6643, %v6698
  %v6715 = vadd.f32 %v6646, %v6699
  %v6716 = vadd.f32 %v6648, %v6700
  %v6717 = vadd.f32 %v6651, %v6701
  %v6718 = vadd.f32 %v6653, %v6702
  %v6719 = vld [vmem:[%s14] sm:$0x1]
  %v6721 = vperm.slane %v6719, 0
  %v6723 = vadd.f32 %v6703, %v6721
  %v6724 = vadd.f32 %v6704, %v6721
  %v6725 = vadd.f32 %v6705, %v6721
  %v6726 = vadd.f32 %v6706, %v6721
  %v6727 = vadd.f32 %v6707, %v6721
  %v6728 = vadd.f32 %v6708, %v6721
  %v6729 = vadd.f32 %v6709, %v6721
  %v6730 = vadd.f32 %v6710, %v6721
  %v6731 = vadd.f32 %v6711, %v6721
  %v6732 = vadd.f32 %v6712, %v6721
  %v6733 = vadd.f32 %v6713, %v6721
  %v6734 = vadd.f32 %v6714, %v6721
  %v6735 = vadd.f32 %v6715, %v6721
  %v6736 = vadd.f32 %v6716, %v6721
  %v6737 = vadd.f32 %v6717, %v6721
  %v6738 = vadd.f32 %v6718, %v6721
  %v6739 = vtanh.pop %v6723
  %v6740 = vtanh.pop %v6724
  %v6741 = vtanh.pop %v6725
  %v6742 = vtanh.pop %v6726
  %v6743 = vtanh.pop %v6727
  %v6744 = vtanh.pop %v6728
  %v6745 = vtanh.pop %v6729
  %v6746 = vtanh.pop %v6730
  %v6747 = vtanh.pop %v6731
  %v6748 = vtanh.pop %v6732
  %v6749 = vtanh.pop %v6733
  %v6750 = vtanh.pop %v6734
  %v6751 = vtanh.pop %v6735
  %v6752 = vtanh.pop %v6736
  %v6753 = vtanh.pop %v6737
  %v6754 = vtanh.pop %v6738
  %v6755 = vpack.c.bf16 %v6739, %v6739
  %v6756 = vpack.c.bf16 %v6740, %v6740
  %v6757 = vpack.c.bf16 %v6741, %v6741
  %v6758 = vpack.c.bf16 %v6742, %v6742
  %v6759 = vpack.c.bf16 %v6743, %v6743
  %v6760 = vpack.c.bf16 %v6744, %v6744
  %v6761 = vpack.c.bf16 %v6745, %v6745
  %v6762 = vpack.c.bf16 %v6746, %v6746
  %v6763 = vpack.c.bf16 %v6747, %v6747
  %v6764 = vpack.c.bf16 %v6748, %v6748
  %v6765 = vpack.c.bf16 %v6749, %v6749
  %v6766 = vpack.c.bf16 %v6750, %v6750
  %v6767 = vpack.c.bf16 %v6751, %v6751
  %v6768 = vpack.c.bf16 %v6752, %v6752
  %v6769 = vpack.c.bf16 %v6753, %v6753
  %v6770 = vpack.c.bf16 %v6754, %v6754
  %6771 = vst [vmem:[%s15] sm:$0xf] %v6755
  %6772 = vst [vmem:[%s15 + $0x4] sm:$0xf] %v6756
  %6773 = vst [vmem:[%s15 + $0x8] sm:$0xf] %v6757
  %6774 = vst [vmem:[%s15 + $0xc] sm:$0xf] %v6758
  %6775 = vst [vmem:[%s15 + $0x10] sm:$0xf] %v6759
  %6776 = vst [vmem:[%s15 + $0x14] sm:$0xf] %v6760
  %6777 = vst [vmem:[%s15 + $0x18] sm:$0xf] %v6761
  %6778 = vst [vmem:[%s15 + $0x1c] sm:$0xf] %v6762
  %6779 = vst [vmem:[%s15 + $0x20] sm:$0xf] %v6763
  %6780 = vst [vmem:[%s15 + $0x24] sm:$0xf] %v6764
  %6781 = vst [vmem:[%s15 + $0x28] sm:$0xf] %v6765
  %6782 = vst [vmem:[%s15 + $0x2c] sm:$0xf] %v6766
  %6783 = vst [vmem:[%s15 + $0x30] sm:$0xf] %v6767
  %6784 = vst [vmem:[%s15 + $0x34] sm:$0xf] %v6768
  %6785 = vst [vmem:[%s15 + $0x38] sm:$0xf] %v6769
  %6786 = vst [vmem:[%s15 + $0x3c] sm:$0xf] %v6770
  // Predicated region
  $region62: #{decoder_forward.1} parent=0 // pred_check
    _
  $region63: #{decoder_forward.1} parent=0 // pred_check_branch
    %6788 = sbr.rel (0) target = $region65
  $region64: #{decoder_forward.1} parent=0 // pred_region
    _
  $region65: #{decoder_forward.1} parent=0 // pred_fallthru
    _
  // Predicated region
  $region66: #{decoder_forward.1} parent=0 // pred_check
    _
  $region67: #{decoder_forward.1} parent=0 // pred_check_branch
    %6790 = sbr.rel (0) target = $region69
  $region68: #{decoder_forward.1} parent=0 // pred_region
    _
  $region69: #{decoder_forward.1} parent=0 // pred_fallthru
    _

</llo_original>
